<compile_context>
chip_gen: v5e
topology: v5e:2x2
jax: 0.10.0
libtpu: 0.0.40
codegen_flags: <defaults>
</compile_context>

<pallas_src>
import math
import numpy as np
import jax
import jax.numpy as jnp
from jax import lax
from jax.experimental import pallas as pl
from jax.experimental.pallas import tpu as pltpu


# ----------------------------------------------------------------------------
# Fused Pallas kernel: 4 implicit-GEMM conv blocks + fused heads.
# ----------------------------------------------------------------------------
def _make_fused_kernel(n_classes):
    def kernel(x_ref,
               s1_ref, b1_ref, a1_ref,
               s2_ref, b2_ref, a2_ref,
               s3_ref, b3_ref, a3_ref,
               s4_ref, b4_ref, a4_ref,
               p_ref, wh_ref, bh_ref,
               o_ref):

        def conv_block(x, s_ref, b_ref, a_ref):
            # x: (rows_in, W*Cin) f32  ->  (rows_out, Wo*Cout) f32
            xb = x.astype(jnp.bfloat16)
            acc = None
            for kh in range(3):
                # 0/1 row selection: folds kh tap + stride-2 H + H zero-pad.
                rows = jnp.dot(s_ref[kh], xb,
                               preferred_element_type=jnp.float32)
                # Banded weight: folds kw taps + stride-2 W + W zero-pad.
                part = jnp.dot(rows.astype(jnp.bfloat16), b_ref[kh],
                               preferred_element_type=jnp.float32)
                acc = part if acc is None else acc + part
            y = acc + a_ref[0]                       # conv bias (tiled per wo)
            y = jnp.where(y > 0, y, 0.2 * y)         # LeakyReLU(0.2)
            # Dropout2d(0.25): identity in eval mode.
            return y * a_ref[1] + a_ref[2]           # BatchNorm2d (eval) affine

        x = x_ref[0]                                 # (nb*H, W*Cin) f32
        x = conv_block(x, s1_ref, b1_ref, a1_ref)
        x = conv_block(x, s2_ref, b2_ref, a2_ref)
        x = conv_block(x, s3_ref, b3_ref, a3_ref)
        x = conv_block(x, s4_ref, b4_ref, a4_ref)    # (nb*2, 2*128)

        # ---- fused heads (adv + aux) -> lane-dense (nb, 128) output slab.
        xb = x.astype(jnp.bfloat16)
        logits = None
        for h in range(p_ref.shape[0]):              # final spatial rows (=2)
            feat_h = jnp.dot(p_ref[h], xb,
                             preferred_element_type=jnp.float32)
            t = jnp.dot(feat_h.astype(jnp.bfloat16), wh_ref[h],
                        preferred_element_type=jnp.float32)
            logits = t if logits is None else logits + t
        logits = logits + bh_ref[...]                # (nb, 128) f32

        col = lax.broadcasted_iota(jnp.int32, logits.shape, 1)
        validity = 1.0 / (1.0 + jnp.exp(-logits))    # Sigmoid (column 0)
        aux_mask = jnp.logical_and(col >= 1, col < 1 + n_classes)
        z = jnp.where(aux_mask, logits, -1e30)       # masked Softmax(dim=1)
        z = z - jnp.max(z, axis=-1, keepdims=True)
        e = jnp.exp(z) * aux_mask.astype(jnp.float32)
        probs = e * pl.reciprocal(jnp.sum(e, axis=-1, keepdims=True))
        o_ref[0] = jnp.where(col == 0, validity, probs)

    return kernel


def discriminator_forward(img_nchw, params, n_classes):
    N, C, H, W = img_nchw.shape
    nb = params["P"].shape[1]                        # samples per grid program
    assert N % nb == 0
    n_prog = N // nb

    # Single input relayout (NCHW -> NHWC rows); all inter-layer layout work
    # is folded into the precomputed S/B/head matrices.
    x_rows = (jnp.transpose(img_nchw, (0, 2, 3, 1))
              .astype(jnp.float32)
              .reshape(n_prog, nb * H, W * C))

    weight_ins = []
    for blk in params["blocks"]:
        weight_ins += [blk["S"], blk["B"], blk["aff"]]
    weight_ins += [params["P"], params["Wh"], params["bh"]]

    def const_spec(a):
        nd = a.ndim
        return pl.BlockSpec(a.shape, lambda i, _nd=nd: (0,) * _nd)

    out = pl.pallas_call(
        _make_fused_kernel(n_classes),
        out_shape=jax.ShapeDtypeStruct((n_prog, nb, 128), jnp.float32),
        grid=(n_prog,),
        in_specs=[pl.BlockSpec((1, nb * H, W * C), lambda i: (i, 0, 0))]
                 + [const_spec(a) for a in weight_ins],
        out_specs=pl.BlockSpec((1, nb, 128), lambda i: (i, 0, 0)),
        compiler_params=pltpu.CompilerParams(
            dimension_semantics=("parallel",)),
    )(x_rows, *weight_ins)

    out = out.reshape(N, 128)
    validity = out[:, 0:1]
    label = out[:, 1:1 + n_classes]
    return validity, label


# ----------------------------------------------------------------------------
# Parameter construction: PyTorch-style init, then fold conv structure into
# banded / selection matrices and fold the NCHW flatten into the head weights.
# ----------------------------------------------------------------------------
def init_params(key, nb, channels, img_size, n_classes):
    eps = 0.8   # nn.BatchNorm2d(out_filters, 0.8): positional arg is eps.
    cfg = [(channels, 16, False), (16, 32, True), (32, 64, True), (64, 128, True)]
    blocks, ref_blocks = [], []
    H = img_size
    for cin, cout, bn in cfg:
        Ho = (H - 1) // 2 + 1
        key, kw_, kb_, kg_, kbe_ = jax.random.split(key, 5)
        fan_in = cin * 9
        bound = 1.0 / math.sqrt(fan_in)
        w_pt = jax.random.uniform(kw_, (cout, cin, 3, 3), jnp.float32, -bound, bound)
        b = jax.random.uniform(kb_, (cout,), jnp.float32, -bound, bound)
        if bn:
            gamma = jax.random.uniform(kg_, (cout,), jnp.float32, 0.5, 1.5)
            beta = jax.random.uniform(kbe_, (cout,), jnp.float32, -0.5, 0.5)
            mean = jnp.zeros((cout,), jnp.float32)
            var = jnp.ones((cout,), jnp.float32)
            scale = gamma / jnp.sqrt(var + eps)
            shift = beta - mean * scale
        else:
            scale = jnp.ones((cout,), jnp.float32)
            shift = jnp.zeros((cout,), jnp.float32)

        # Banded weight B_kh: (W*Cin, Wo*Cout), folds kw taps + stride 2 + pad.
        w_np = np.asarray(jax.device_get(w_pt))          # (cout, cin, 3, 3)
        B = np.zeros((3, H * cin, Ho * cout), np.float32)
        for kh in range(3):
            for wo in range(Ho):
                for kw in range(3):
                    w_in = 2 * wo + kw - 1
                    if 0 <= w_in < H:
                        B[kh,
                          w_in * cin:(w_in + 1) * cin,
                          wo * cout:(wo + 1) * cout] = w_np[:, :, kh, kw].T
        # Row-selection S_kh: (nb*Ho, nb*H), block-diagonal over the samples.
        S = np.zeros((3, nb * Ho, nb * H), np.float32)
        for kh in range(3):
            for n in range(nb):
                for ho in range(Ho):
                    r = 2 * ho + kh - 1
                    if 0 <= r < H:
                        S[kh, n * Ho + ho, n * H + r] = 1.0
        aff = jnp.stack([jnp.tile(b, Ho),
                         jnp.tile(scale, Ho),
                         jnp.tile(shift, Ho)])[:, None, :]   # (3, 1, Ho*cout)
        blocks.append(dict(S=jnp.asarray(S, jnp.bfloat16),
                           B=jnp.asarray(B, jnp.bfloat16),
                           aff=aff.astype(jnp.float32)))
        ref_blocks.append(dict(w=w_pt, b=b, scale=scale, shift=shift))
        H = Ho

    # ---- heads: fuse adv+aux into one matmul, fold NCHW flatten order into
    # the weights, pad the fused output to 128 lanes (lane-dense store).
    Hs = H                          # final spatial size (2 for img_size=32)
    C4 = cfg[-1][1]                 # 128
    feat_dim = C4 * Hs * Hs         # 512  (== 128 * 4 in the PyTorch module)
    key, k1, k2, k3, k4 = jax.random.split(key, 5)
    bound = 1.0 / math.sqrt(feat_dim)
    w_adv = jax.random.uniform(k1, (feat_dim, 1), jnp.float32, -bound, bound)
    b_adv = jax.random.uniform(k2, (1,), jnp.float32, -bound, bound)
    w_aux = jax.random.uniform(k3, (feat_dim, n_classes), jnp.float32, -bound, bound)
    b_aux = jax.random.uniform(k4, (n_classes,), jnp.float32, -bound, bound)

    w_cat = jnp.concatenate([w_adv, w_aux], axis=1)          # (feat, 1+nc)
    w_r = w_cat.reshape(C4, Hs, Hs, 1 + n_classes)           # (c, h, w, j)
    w_r = jnp.transpose(w_r, (1, 2, 0, 3)).reshape(Hs, Hs * C4, 1 + n_classes)
    Wh = jnp.zeros((Hs, Hs * C4, 128), jnp.float32)
    Wh = Wh.at[:, :, :1 + n_classes].set(w_r)
    bh = jnp.zeros((1, 128), jnp.float32)
    bh = bh.at[0, :1 + n_classes].set(jnp.concatenate([b_adv, b_aux]))

    P = np.zeros((Hs, nb, nb * Hs), np.float32)               # head row select
    for h in range(Hs):
        for n in range(nb):
            P[h, n, n * Hs + h] = 1.0

    params = dict(blocks=blocks,
                  P=jnp.asarray(P, jnp.bfloat16),
                  Wh=Wh.astype(jnp.bfloat16),
                  bh=bh)
    ref = dict(blocks=ref_blocks, w_adv=w_adv, b_adv=b_adv,
               w_aux=w_aux, b_aux=b_aux)
    return params, ref


# ----------------------------------------------------------------------------
# Plain-XLA f32 reference with the exact PyTorch forward semantics.
# ----------------------------------------------------------------------------
def reference_forward(img_nchw, ref_params, n_classes):
    x = jnp.transpose(img_nchw, (0, 2, 3, 1)).astype(jnp.float32)   # NHWC
    for blk in ref_params["blocks"]:
        w_hwio = jnp.transpose(blk["w"], (2, 3, 1, 0))
        x = lax.conv_general_dilated(
            x, w_hwio, window_strides=(2, 2), padding=((1, 1), (1, 1)),
            dimension_numbers=("NHWC", "HWIO", "NHWC"),
            precision=lax.Precision.HIGHEST)
        x = x + blk["b"]
        x = jnp.where(x > 0, x, 0.2 * x)
        x = x * blk["scale"] + blk["shift"]
    feat = jnp.transpose(x, (0, 3, 1, 2)).reshape(x.shape[0], -1)   # NCHW flat
    v = jax.nn.sigmoid(feat @ ref_params["w_adv"] + ref_params["b_adv"])
    l = jax.nn.softmax(feat @ ref_params["w_aux"] + ref_params["b_aux"], axis=-1)
    return v, l


if __name__ == "__main__":
    # acgan.py: channels=1, img_size=32 (Linear(128*4, .) implies 32), n_classes=10.
    batch, channels, img_size, n_classes = 2, 1, 32, 10

    key = jax.random.PRNGKey(0)
    key, k_img = jax.random.split(key)
    img = jax.random.normal(k_img, (batch, channels, img_size, img_size), jnp.float32)

    params, ref_params = init_params(key, nb=1, channels=channels,
                                     img_size=img_size, n_classes=n_classes)

    fwd = jax.jit(discriminator_forward, static_argnums=2)
    validity, label = fwd(img, params, n_classes)
    jax.block_until_ready((validity, label))

    assert validity.shape == (batch, 1)
    assert label.shape == (batch, n_classes)
    assert bool(jnp.all((validity >= 0) & (validity <= 1)))
    assert bool(jnp.allclose(jnp.sum(label, axis=-1), 1.0, atol=1e-5))

    # Cross-check against the plain-XLA f32 reference (kernel uses bf16 MXU
    # operands -> loose tolerance).
    v_ref, l_ref = reference_forward(img, ref_params, n_classes)
    assert float(jnp.max(jnp.abs(validity - v_ref))) < 2e-2
    assert float(jnp.max(jnp.abs(label - l_ref))) < 2e-2

    print("KERNEL_OK")
</pallas_src>

<mosaic_0001>
module attributes {stable_mosaic.version = 11 : i64} {
  func.func @kernel(%arg0: i32, %arg1: memref<1x32x32xf32, #tpu.memory_space<vmem>>, %arg2: memref<3x16x32xbf16, #tpu.memory_space<vmem>>, %arg3: memref<3x32x256xbf16, #tpu.memory_space<vmem>>, %arg4: memref<3x1x256xf32, #tpu.memory_space<vmem>>, %arg5: memref<3x8x16xbf16, #tpu.memory_space<vmem>>, %arg6: memref<3x256x256xbf16, #tpu.memory_space<vmem>>, %arg7: memref<3x1x256xf32, #tpu.memory_space<vmem>>, %arg8: memref<3x4x8xbf16, #tpu.memory_space<vmem>>, %arg9: memref<3x256x256xbf16, #tpu.memory_space<vmem>>, %arg10: memref<3x1x256xf32, #tpu.memory_space<vmem>>, %arg11: memref<3x2x4xbf16, #tpu.memory_space<vmem>>, %arg12: memref<3x256x256xbf16, #tpu.memory_space<vmem>>, %arg13: memref<3x1x256xf32, #tpu.memory_space<vmem>>, %arg14: memref<2x1x2xbf16, #tpu.memory_space<vmem>>, %arg15: memref<2x256x128xbf16, #tpu.memory_space<vmem>>, %arg16: memref<1x128xf32, #tpu.memory_space<vmem>>, %arg17: memref<1x1x128xf32, #tpu.memory_space<vmem>>) attributes {dimension_semantics = [#tpu.dimension_semantics<parallel>], iteration_bounds = array<i64: 2>, scalar_prefetch = 0 : i64, scratch_operands = 0 : i64, tpu.core_type = #tpu.core_type<tc>, window_params = [{transform_indices = @transform_0, window_bounds = array<i64: 1, 32, 32>}, {pipeline_mode = #tpu.pipeline_mode<synchronous>, transform_indices = @transform_1, window_bounds = array<i64: 3, 16, 32>}, {pipeline_mode = #tpu.pipeline_mode<synchronous>, transform_indices = @transform_2, window_bounds = array<i64: 3, 32, 256>}, {pipeline_mode = #tpu.pipeline_mode<synchronous>, transform_indices = @transform_3, window_bounds = array<i64: 3, 1, 256>}, {pipeline_mode = #tpu.pipeline_mode<synchronous>, transform_indices = @transform_4, window_bounds = array<i64: 3, 8, 16>}, {pipeline_mode = #tpu.pipeline_mode<synchronous>, transform_indices = @transform_5, window_bounds = array<i64: 3, 256, 256>}, {pipeline_mode = #tpu.pipeline_mode<synchronous>, transform_indices = @transform_6, window_bounds = array<i64: 3, 1, 256>}, {pipeline_mode = #tpu.pipeline_mode<synchronous>, transform_indices = @transform_7, window_bounds = array<i64: 3, 4, 8>}, {pipeline_mode = #tpu.pipeline_mode<synchronous>, transform_indices = @transform_8, window_bounds = array<i64: 3, 256, 256>}, {pipeline_mode = #tpu.pipeline_mode<synchronous>, transform_indices = @transform_9, window_bounds = array<i64: 3, 1, 256>}, {pipeline_mode = #tpu.pipeline_mode<synchronous>, transform_indices = @transform_10, window_bounds = array<i64: 3, 2, 4>}, {pipeline_mode = #tpu.pipeline_mode<synchronous>, transform_indices = @transform_11, window_bounds = array<i64: 3, 256, 256>}, {pipeline_mode = #tpu.pipeline_mode<synchronous>, transform_indices = @transform_12, window_bounds = array<i64: 3, 1, 256>}, {pipeline_mode = #tpu.pipeline_mode<synchronous>, transform_indices = @transform_13, window_bounds = array<i64: 2, 1, 2>}, {pipeline_mode = #tpu.pipeline_mode<synchronous>, transform_indices = @transform_14, window_bounds = array<i64: 2, 256, 128>}, {pipeline_mode = #tpu.pipeline_mode<synchronous>, transform_indices = @transform_15, window_bounds = array<i64: 1, 128>}, {transform_indices = @transform_16, window_bounds = array<i64: 1, 1, 128>}]} {
    %c0 = arith.constant 0 : index
    %c0_0 = arith.constant 0 : index
    %c0_1 = arith.constant 0 : index
    %0 = vector.load %arg1[%c0, %c0_0, %c0_1] : memref<1x32x32xf32, #tpu.memory_space<vmem>>, vector<1x32x32xf32>
    %1 = vector.shape_cast %0 : vector<1x32x32xf32> to vector<32x32xf32>
    %2 = arith.truncf %1 : vector<32x32xf32> to vector<32x32xbf16>
    %c0_2 = arith.constant 0 : index
    %c0_3 = arith.constant 0 : index
    %c0_4 = arith.constant 0 : index
    %3 = vector.load %arg2[%c0_2, %c0_3, %c0_4] : memref<3x16x32xbf16, #tpu.memory_space<vmem>>, vector<1x16x32xbf16>
    %4 = vector.shape_cast %3 : vector<1x16x32xbf16> to vector<16x32xbf16>
    %cst = arith.constant dense<0.000000e+00> : vector<16x32xf32>
    %5 = tpu.matmul %4, %2, %cst {dimension_numbers = #tpu.dot_dimension_numbers<[1], [0], [0], [1], [0, 0, 1, 1], [], []>} : vector<16x32xbf16>, vector<32x32xbf16>, vector<16x32xf32> -> vector<16x32xf32>
    %6 = arith.truncf %5 : vector<16x32xf32> to vector<16x32xbf16>
    %c0_5 = arith.constant 0 : index
    %c0_6 = arith.constant 0 : index
    %c0_7 = arith.constant 0 : index
    %7 = vector.load %arg3[%c0_5, %c0_6, %c0_7] : memref<3x32x256xbf16, #tpu.memory_space<vmem>>, vector<1x32x256xbf16>
    %8 = vector.shape_cast %7 : vector<1x32x256xbf16> to vector<32x256xbf16>
    %cst_8 = arith.constant dense<0.000000e+00> : vector<16x256xf32>
    %9 = tpu.matmul %6, %8, %cst_8 {dimension_numbers = #tpu.dot_dimension_numbers<[1], [0], [0], [1], [0, 0, 1, 1], [], []>} : vector<16x32xbf16>, vector<32x256xbf16>, vector<16x256xf32> -> vector<16x256xf32>
    %c1 = arith.constant 1 : index
    %c0_9 = arith.constant 0 : index
    %c0_10 = arith.constant 0 : index
    %10 = vector.load %arg2[%c1, %c0_9, %c0_10] : memref<3x16x32xbf16, #tpu.memory_space<vmem>>, vector<1x16x32xbf16>
    %11 = vector.shape_cast %10 : vector<1x16x32xbf16> to vector<16x32xbf16>
    %cst_11 = arith.constant dense<0.000000e+00> : vector<16x32xf32>
    %12 = tpu.matmul %11, %2, %cst_11 {dimension_numbers = #tpu.dot_dimension_numbers<[1], [0], [0], [1], [0, 0, 1, 1], [], []>} : vector<16x32xbf16>, vector<32x32xbf16>, vector<16x32xf32> -> vector<16x32xf32>
    %13 = arith.truncf %12 : vector<16x32xf32> to vector<16x32xbf16>
    %c1_12 = arith.constant 1 : index
    %c0_13 = arith.constant 0 : index
    %c0_14 = arith.constant 0 : index
    %14 = vector.load %arg3[%c1_12, %c0_13, %c0_14] : memref<3x32x256xbf16, #tpu.memory_space<vmem>>, vector<1x32x256xbf16>
    %15 = vector.shape_cast %14 : vector<1x32x256xbf16> to vector<32x256xbf16>
    %cst_15 = arith.constant dense<0.000000e+00> : vector<16x256xf32>
    %16 = tpu.matmul %13, %15, %cst_15 {dimension_numbers = #tpu.dot_dimension_numbers<[1], [0], [0], [1], [0, 0, 1, 1], [], []>} : vector<16x32xbf16>, vector<32x256xbf16>, vector<16x256xf32> -> vector<16x256xf32>
    %17 = arith.addf %9, %16 : vector<16x256xf32>
    %c2 = arith.constant 2 : index
    %c0_16 = arith.constant 0 : index
    %c0_17 = arith.constant 0 : index
    %18 = vector.load %arg2[%c2, %c0_16, %c0_17] : memref<3x16x32xbf16, #tpu.memory_space<vmem>>, vector<1x16x32xbf16>
    %19 = vector.shape_cast %18 : vector<1x16x32xbf16> to vector<16x32xbf16>
    %cst_18 = arith.constant dense<0.000000e+00> : vector<16x32xf32>
    %20 = tpu.matmul %19, %2, %cst_18 {dimension_numbers = #tpu.dot_dimension_numbers<[1], [0], [0], [1], [0, 0, 1, 1], [], []>} : vector<16x32xbf16>, vector<32x32xbf16>, vector<16x32xf32> -> vector<16x32xf32>
    %21 = arith.truncf %20 : vector<16x32xf32> to vector<16x32xbf16>
    %c2_19 = arith.constant 2 : index
    %c0_20 = arith.constant 0 : index
    %c0_21 = arith.constant 0 : index
    %22 = vector.load %arg3[%c2_19, %c0_20, %c0_21] : memref<3x32x256xbf16, #tpu.memory_space<vmem>>, vector<1x32x256xbf16>
    %23 = vector.shape_cast %22 : vector<1x32x256xbf16> to vector<32x256xbf16>
    %cst_22 = arith.constant dense<0.000000e+00> : vector<16x256xf32>
    %24 = tpu.matmul %21, %23, %cst_22 {dimension_numbers = #tpu.dot_dimension_numbers<[1], [0], [0], [1], [0, 0, 1, 1], [], []>} : vector<16x32xbf16>, vector<32x256xbf16>, vector<16x256xf32> -> vector<16x256xf32>
    %25 = arith.addf %17, %24 : vector<16x256xf32>
    %c0_23 = arith.constant 0 : index
    %c0_24 = arith.constant 0 : index
    %c0_25 = arith.constant 0 : index
    %26 = vector.load %arg4[%c0_23, %c0_24, %c0_25] : memref<3x1x256xf32, #tpu.memory_space<vmem>>, vector<1x1x256xf32>
    %27 = vector.shape_cast %26 : vector<1x1x256xf32> to vector<1x256xf32>
    %28 = vector.broadcast %27 : vector<1x256xf32> to vector<16x256xf32>
    %29 = arith.addf %25, %28 : vector<16x256xf32>
    %cst_26 = arith.constant 0.000000e+00 : f32
    %30 = vector.broadcast %cst_26 : f32 to vector<16x256xf32>
    %31 = arith.cmpf ogt, %29, %30 : vector<16x256xf32>
    %cst_27 = arith.constant 2.000000e-01 : f32
    %32 = vector.broadcast %cst_27 : f32 to vector<16x256xf32>
    %33 = arith.mulf %32, %29 : vector<16x256xf32>
    %34 = arith.select %31, %29, %33 : vector<16x256xi1>, vector<16x256xf32>
    %c1_28 = arith.constant 1 : index
    %c0_29 = arith.constant 0 : index
    %c0_30 = arith.constant 0 : index
    %35 = vector.load %arg4[%c1_28, %c0_29, %c0_30] : memref<3x1x256xf32, #tpu.memory_space<vmem>>, vector<1x1x256xf32>
    %36 = vector.shape_cast %35 : vector<1x1x256xf32> to vector<1x256xf32>
    %37 = vector.broadcast %36 : vector<1x256xf32> to vector<16x256xf32>
    %38 = arith.mulf %34, %37 : vector<16x256xf32>
    %c2_31 = arith.constant 2 : index
    %c0_32 = arith.constant 0 : index
    %c0_33 = arith.constant 0 : index
    %39 = vector.load %arg4[%c2_31, %c0_32, %c0_33] : memref<3x1x256xf32, #tpu.memory_space<vmem>>, vector<1x1x256xf32>
    %40 = vector.shape_cast %39 : vector<1x1x256xf32> to vector<1x256xf32>
    %41 = vector.broadcast %40 : vector<1x256xf32> to vector<16x256xf32>
    %42 = arith.addf %38, %41 : vector<16x256xf32>
    %43 = arith.truncf %42 : vector<16x256xf32> to vector<16x256xbf16>
    %c0_34 = arith.constant 0 : index
    %c0_35 = arith.constant 0 : index
    %c0_36 = arith.constant 0 : index
    %44 = vector.load %arg5[%c0_34, %c0_35, %c0_36] : memref<3x8x16xbf16, #tpu.memory_space<vmem>>, vector<1x8x16xbf16>
    %45 = vector.shape_cast %44 : vector<1x8x16xbf16> to vector<8x16xbf16>
    %cst_37 = arith.constant dense<0.000000e+00> : vector<8x256xf32>
    %46 = tpu.matmul %45, %43, %cst_37 {dimension_numbers = #tpu.dot_dimension_numbers<[1], [0], [0], [1], [0, 0, 1, 1], [], []>} : vector<8x16xbf16>, vector<16x256xbf16>, vector<8x256xf32> -> vector<8x256xf32>
    %47 = arith.truncf %46 : vector<8x256xf32> to vector<8x256xbf16>
    %c0_38 = arith.constant 0 : index
    %c0_39 = arith.constant 0 : index
    %c0_40 = arith.constant 0 : index
    %48 = vector.load %arg6[%c0_38, %c0_39, %c0_40] : memref<3x256x256xbf16, #tpu.memory_space<vmem>>, vector<1x256x256xbf16>
    %49 = vector.shape_cast %48 : vector<1x256x256xbf16> to vector<256x256xbf16>
    %cst_41 = arith.constant dense<0.000000e+00> : vector<8x256xf32>
    %50 = tpu.matmul %47, %49, %cst_41 {dimension_numbers = #tpu.dot_dimension_numbers<[1], [0], [0], [1], [0, 0, 1, 1], [], []>} : vector<8x256xbf16>, vector<256x256xbf16>, vector<8x256xf32> -> vector<8x256xf32>
    %c1_42 = arith.constant 1 : index
    %c0_43 = arith.constant 0 : index
    %c0_44 = arith.constant 0 : index
    %51 = vector.load %arg5[%c1_42, %c0_43, %c0_44] : memref<3x8x16xbf16, #tpu.memory_space<vmem>>, vector<1x8x16xbf16>
    %52 = vector.shape_cast %51 : vector<1x8x16xbf16> to vector<8x16xbf16>
    %cst_45 = arith.constant dense<0.000000e+00> : vector<8x256xf32>
    %53 = tpu.matmul %52, %43, %cst_45 {dimension_numbers = #tpu.dot_dimension_numbers<[1], [0], [0], [1], [0, 0, 1, 1], [], []>} : vector<8x16xbf16>, vector<16x256xbf16>, vector<8x256xf32> -> vector<8x256xf32>
    %54 = arith.truncf %53 : vector<8x256xf32> to vector<8x256xbf16>
    %c1_46 = arith.constant 1 : index
    %c0_47 = arith.constant 0 : index
    %c0_48 = arith.constant 0 : index
    %55 = vector.load %arg6[%c1_46, %c0_47, %c0_48] : memref<3x256x256xbf16, #tpu.memory_space<vmem>>, vector<1x256x256xbf16>
    %56 = vector.shape_cast %55 : vector<1x256x256xbf16> to vector<256x256xbf16>
    %cst_49 = arith.constant dense<0.000000e+00> : vector<8x256xf32>
    %57 = tpu.matmul %54, %56, %cst_49 {dimension_numbers = #tpu.dot_dimension_numbers<[1], [0], [0], [1], [0, 0, 1, 1], [], []>} : vector<8x256xbf16>, vector<256x256xbf16>, vector<8x256xf32> -> vector<8x256xf32>
    %58 = arith.addf %50, %57 : vector<8x256xf32>
    %c2_50 = arith.constant 2 : index
    %c0_51 = arith.constant 0 : index
    %c0_52 = arith.constant 0 : index
    %59 = vector.load %arg5[%c2_50, %c0_51, %c0_52] : memref<3x8x16xbf16, #tpu.memory_space<vmem>>, vector<1x8x16xbf16>
    %60 = vector.shape_cast %59 : vector<1x8x16xbf16> to vector<8x16xbf16>
    %cst_53 = arith.constant dense<0.000000e+00> : vector<8x256xf32>
    %61 = tpu.matmul %60, %43, %cst_53 {dimension_numbers = #tpu.dot_dimension_numbers<[1], [0], [0], [1], [0, 0, 1, 1], [], []>} : vector<8x16xbf16>, vector<16x256xbf16>, vector<8x256xf32> -> vector<8x256xf32>
    %62 = arith.truncf %61 : vector<8x256xf32> to vector<8x256xbf16>
    %c2_54 = arith.constant 2 : index
    %c0_55 = arith.constant 0 : index
    %c0_56 = arith.constant 0 : index
    %63 = vector.load %arg6[%c2_54, %c0_55, %c0_56] : memref<3x256x256xbf16, #tpu.memory_space<vmem>>, vector<1x256x256xbf16>
    %64 = vector.shape_cast %63 : vector<1x256x256xbf16> to vector<256x256xbf16>
    %cst_57 = arith.constant dense<0.000000e+00> : vector<8x256xf32>
    %65 = tpu.matmul %62, %64, %cst_57 {dimension_numbers = #tpu.dot_dimension_numbers<[1], [0], [0], [1], [0, 0, 1, 1], [], []>} : vector<8x256xbf16>, vector<256x256xbf16>, vector<8x256xf32> -> vector<8x256xf32>
    %66 = arith.addf %58, %65 : vector<8x256xf32>
    %c0_58 = arith.constant 0 : index
    %c0_59 = arith.constant 0 : index
    %c0_60 = arith.constant 0 : index
    %67 = vector.load %arg7[%c0_58, %c0_59, %c0_60] : memref<3x1x256xf32, #tpu.memory_space<vmem>>, vector<1x1x256xf32>
    %68 = vector.shape_cast %67 : vector<1x1x256xf32> to vector<1x256xf32>
    %69 = vector.broadcast %68 : vector<1x256xf32> to vector<8x256xf32>
    %70 = arith.addf %66, %69 : vector<8x256xf32>
    %cst_61 = arith.constant 0.000000e+00 : f32
    %71 = vector.broadcast %cst_61 : f32 to vector<8x256xf32>
    %72 = arith.cmpf ogt, %70, %71 : vector<8x256xf32>
    %cst_62 = arith.constant 2.000000e-01 : f32
    %73 = vector.broadcast %cst_62 : f32 to vector<8x256xf32>
    %74 = arith.mulf %73, %70 : vector<8x256xf32>
    %75 = arith.select %72, %70, %74 : vector<8x256xi1>, vector<8x256xf32>
    %c1_63 = arith.constant 1 : index
    %c0_64 = arith.constant 0 : index
    %c0_65 = arith.constant 0 : index
    %76 = vector.load %arg7[%c1_63, %c0_64, %c0_65] : memref<3x1x256xf32, #tpu.memory_space<vmem>>, vector<1x1x256xf32>
    %77 = vector.shape_cast %76 : vector<1x1x256xf32> to vector<1x256xf32>
    %78 = vector.broadcast %77 : vector<1x256xf32> to vector<8x256xf32>
    %79 = arith.mulf %75, %78 : vector<8x256xf32>
    %c2_66 = arith.constant 2 : index
    %c0_67 = arith.constant 0 : index
    %c0_68 = arith.constant 0 : index
    %80 = vector.load %arg7[%c2_66, %c0_67, %c0_68] : memref<3x1x256xf32, #tpu.memory_space<vmem>>, vector<1x1x256xf32>
    %81 = vector.shape_cast %80 : vector<1x1x256xf32> to vector<1x256xf32>
    %82 = vector.broadcast %81 : vector<1x256xf32> to vector<8x256xf32>
    %83 = arith.addf %79, %82 : vector<8x256xf32>
    %84 = arith.truncf %83 : vector<8x256xf32> to vector<8x256xbf16>
    %c0_69 = arith.constant 0 : index
    %c0_70 = arith.constant 0 : index
    %c0_71 = arith.constant 0 : index
    %85 = vector.load %arg8[%c0_69, %c0_70, %c0_71] : memref<3x4x8xbf16, #tpu.memory_space<vmem>>, vector<1x4x8xbf16>
    %86 = vector.shape_cast %85 : vector<1x4x8xbf16> to vector<4x8xbf16>
    %cst_72 = arith.constant dense<0.000000e+00> : vector<4x256xf32>
    %87 = tpu.matmul %86, %84, %cst_72 {dimension_numbers = #tpu.dot_dimension_numbers<[1], [0], [0], [1], [0, 0, 1, 1], [], []>} : vector<4x8xbf16>, vector<8x256xbf16>, vector<4x256xf32> -> vector<4x256xf32>
    %88 = arith.truncf %87 : vector<4x256xf32> to vector<4x256xbf16>
    %c0_73 = arith.constant 0 : index
    %c0_74 = arith.constant 0 : index
    %c0_75 = arith.constant 0 : index
    %89 = vector.load %arg9[%c0_73, %c0_74, %c0_75] : memref<3x256x256xbf16, #tpu.memory_space<vmem>>, vector<1x256x256xbf16>
    %90 = vector.shape_cast %89 : vector<1x256x256xbf16> to vector<256x256xbf16>
    %cst_76 = arith.constant dense<0.000000e+00> : vector<4x256xf32>
    %91 = tpu.matmul %88, %90, %cst_76 {dimension_numbers = #tpu.dot_dimension_numbers<[1], [0], [0], [1], [0, 0, 1, 1], [], []>} : vector<4x256xbf16>, vector<256x256xbf16>, vector<4x256xf32> -> vector<4x256xf32>
    %c1_77 = arith.constant 1 : index
    %c0_78 = arith.constant 0 : index
    %c0_79 = arith.constant 0 : index
    %92 = vector.load %arg8[%c1_77, %c0_78, %c0_79] : memref<3x4x8xbf16, #tpu.memory_space<vmem>>, vector<1x4x8xbf16>
    %93 = vector.shape_cast %92 : vector<1x4x8xbf16> to vector<4x8xbf16>
    %cst_80 = arith.constant dense<0.000000e+00> : vector<4x256xf32>
    %94 = tpu.matmul %93, %84, %cst_80 {dimension_numbers = #tpu.dot_dimension_numbers<[1], [0], [0], [1], [0, 0, 1, 1], [], []>} : vector<4x8xbf16>, vector<8x256xbf16>, vector<4x256xf32> -> vector<4x256xf32>
    %95 = arith.truncf %94 : vector<4x256xf32> to vector<4x256xbf16>
    %c1_81 = arith.constant 1 : index
    %c0_82 = arith.constant 0 : index
    %c0_83 = arith.constant 0 : index
    %96 = vector.load %arg9[%c1_81, %c0_82, %c0_83] : memref<3x256x256xbf16, #tpu.memory_space<vmem>>, vector<1x256x256xbf16>
    %97 = vector.shape_cast %96 : vector<1x256x256xbf16> to vector<256x256xbf16>
    %cst_84 = arith.constant dense<0.000000e+00> : vector<4x256xf32>
    %98 = tpu.matmul %95, %97, %cst_84 {dimension_numbers = #tpu.dot_dimension_numbers<[1], [0], [0], [1], [0, 0, 1, 1], [], []>} : vector<4x256xbf16>, vector<256x256xbf16>, vector<4x256xf32> -> vector<4x256xf32>
    %99 = arith.addf %91, %98 : vector<4x256xf32>
    %c2_85 = arith.constant 2 : index
    %c0_86 = arith.constant 0 : index
    %c0_87 = arith.constant 0 : index
    %100 = vector.load %arg8[%c2_85, %c0_86, %c0_87] : memref<3x4x8xbf16, #tpu.memory_space<vmem>>, vector<1x4x8xbf16>
    %101 = vector.shape_cast %100 : vector<1x4x8xbf16> to vector<4x8xbf16>
    %cst_88 = arith.constant dense<0.000000e+00> : vector<4x256xf32>
    %102 = tpu.matmul %101, %84, %cst_88 {dimension_numbers = #tpu.dot_dimension_numbers<[1], [0], [0], [1], [0, 0, 1, 1], [], []>} : vector<4x8xbf16>, vector<8x256xbf16>, vector<4x256xf32> -> vector<4x256xf32>
    %103 = arith.truncf %102 : vector<4x256xf32> to vector<4x256xbf16>
    %c2_89 = arith.constant 2 : index
    %c0_90 = arith.constant 0 : index
    %c0_91 = arith.constant 0 : index
    %104 = vector.load %arg9[%c2_89, %c0_90, %c0_91] : memref<3x256x256xbf16, #tpu.memory_space<vmem>>, vector<1x256x256xbf16>
    %105 = vector.shape_cast %104 : vector<1x256x256xbf16> to vector<256x256xbf16>
    %cst_92 = arith.constant dense<0.000000e+00> : vector<4x256xf32>
    %106 = tpu.matmul %103, %105, %cst_92 {dimension_numbers = #tpu.dot_dimension_numbers<[1], [0], [0], [1], [0, 0, 1, 1], [], []>} : vector<4x256xbf16>, vector<256x256xbf16>, vector<4x256xf32> -> vector<4x256xf32>
    %107 = arith.addf %99, %106 : vector<4x256xf32>
    %c0_93 = arith.constant 0 : index
    %c0_94 = arith.constant 0 : index
    %c0_95 = arith.constant 0 : index
    %108 = vector.load %arg10[%c0_93, %c0_94, %c0_95] : memref<3x1x256xf32, #tpu.memory_space<vmem>>, vector<1x1x256xf32>
    %109 = vector.shape_cast %108 : vector<1x1x256xf32> to vector<1x256xf32>
    %110 = vector.broadcast %109 : vector<1x256xf32> to vector<4x256xf32>
    %111 = arith.addf %107, %110 : vector<4x256xf32>
    %cst_96 = arith.constant 0.000000e+00 : f32
    %112 = vector.broadcast %cst_96 : f32 to vector<4x256xf32>
    %113 = arith.cmpf ogt, %111, %112 : vector<4x256xf32>
    %cst_97 = arith.constant 2.000000e-01 : f32
    %114 = vector.broadcast %cst_97 : f32 to vector<4x256xf32>
    %115 = arith.mulf %114, %111 : vector<4x256xf32>
    %116 = arith.select %113, %111, %115 : vector<4x256xi1>, vector<4x256xf32>
    %c1_98 = arith.constant 1 : index
    %c0_99 = arith.constant 0 : index
    %c0_100 = arith.constant 0 : index
    %117 = vector.load %arg10[%c1_98, %c0_99, %c0_100] : memref<3x1x256xf32, #tpu.memory_space<vmem>>, vector<1x1x256xf32>
    %118 = vector.shape_cast %117 : vector<1x1x256xf32> to vector<1x256xf32>
    %119 = vector.broadcast %118 : vector<1x256xf32> to vector<4x256xf32>
    %120 = arith.mulf %116, %119 : vector<4x256xf32>
    %c2_101 = arith.constant 2 : index
    %c0_102 = arith.constant 0 : index
    %c0_103 = arith.constant 0 : index
    %121 = vector.load %arg10[%c2_101, %c0_102, %c0_103] : memref<3x1x256xf32, #tpu.memory_space<vmem>>, vector<1x1x256xf32>
    %122 = vector.shape_cast %121 : vector<1x1x256xf32> to vector<1x256xf32>
    %123 = vector.broadcast %122 : vector<1x256xf32> to vector<4x256xf32>
    %124 = arith.addf %120, %123 : vector<4x256xf32>
    %125 = arith.truncf %124 : vector<4x256xf32> to vector<4x256xbf16>
    %c0_104 = arith.constant 0 : index
    %c0_105 = arith.constant 0 : index
    %c0_106 = arith.constant 0 : index
    %126 = vector.load %arg11[%c0_104, %c0_105, %c0_106] : memref<3x2x4xbf16, #tpu.memory_space<vmem>>, vector<1x2x4xbf16>
    %127 = vector.shape_cast %126 : vector<1x2x4xbf16> to vector<2x4xbf16>
    %cst_107 = arith.constant dense<0.000000e+00> : vector<2x256xf32>
    %128 = tpu.matmul %127, %125, %cst_107 {dimension_numbers = #tpu.dot_dimension_numbers<[1], [0], [0], [1], [0, 0, 1, 1], [], []>} : vector<2x4xbf16>, vector<4x256xbf16>, vector<2x256xf32> -> vector<2x256xf32>
    %129 = arith.truncf %128 : vector<2x256xf32> to vector<2x256xbf16>
    %c0_108 = arith.constant 0 : index
    %c0_109 = arith.constant 0 : index
    %c0_110 = arith.constant 0 : index
    %130 = vector.load %arg12[%c0_108, %c0_109, %c0_110] : memref<3x256x256xbf16, #tpu.memory_space<vmem>>, vector<1x256x256xbf16>
    %131 = vector.shape_cast %130 : vector<1x256x256xbf16> to vector<256x256xbf16>
    %cst_111 = arith.constant dense<0.000000e+00> : vector<2x256xf32>
    %132 = tpu.matmul %129, %131, %cst_111 {dimension_numbers = #tpu.dot_dimension_numbers<[1], [0], [0], [1], [0, 0, 1, 1], [], []>} : vector<2x256xbf16>, vector<256x256xbf16>, vector<2x256xf32> -> vector<2x256xf32>
    %c1_112 = arith.constant 1 : index
    %c0_113 = arith.constant 0 : index
    %c0_114 = arith.constant 0 : index
    %133 = vector.load %arg11[%c1_112, %c0_113, %c0_114] : memref<3x2x4xbf16, #tpu.memory_space<vmem>>, vector<1x2x4xbf16>
    %134 = vector.shape_cast %133 : vector<1x2x4xbf16> to vector<2x4xbf16>
    %cst_115 = arith.constant dense<0.000000e+00> : vector<2x256xf32>
    %135 = tpu.matmul %134, %125, %cst_115 {dimension_numbers = #tpu.dot_dimension_numbers<[1], [0], [0], [1], [0, 0, 1, 1], [], []>} : vector<2x4xbf16>, vector<4x256xbf16>, vector<2x256xf32> -> vector<2x256xf32>
    %136 = arith.truncf %135 : vector<2x256xf32> to vector<2x256xbf16>
    %c1_116 = arith.constant 1 : index
    %c0_117 = arith.constant 0 : index
    %c0_118 = arith.constant 0 : index
    %137 = vector.load %arg12[%c1_116, %c0_117, %c0_118] : memref<3x256x256xbf16, #tpu.memory_space<vmem>>, vector<1x256x256xbf16>
    %138 = vector.shape_cast %137 : vector<1x256x256xbf16> to vector<256x256xbf16>
    %cst_119 = arith.constant dense<0.000000e+00> : vector<2x256xf32>
    %139 = tpu.matmul %136, %138, %cst_119 {dimension_numbers = #tpu.dot_dimension_numbers<[1], [0], [0], [1], [0, 0, 1, 1], [], []>} : vector<2x256xbf16>, vector<256x256xbf16>, vector<2x256xf32> -> vector<2x256xf32>
    %140 = arith.addf %132, %139 : vector<2x256xf32>
    %c2_120 = arith.constant 2 : index
    %c0_121 = arith.constant 0 : index
    %c0_122 = arith.constant 0 : index
    %141 = vector.load %arg11[%c2_120, %c0_121, %c0_122] : memref<3x2x4xbf16, #tpu.memory_space<vmem>>, vector<1x2x4xbf16>
    %142 = vector.shape_cast %141 : vector<1x2x4xbf16> to vector<2x4xbf16>
    %cst_123 = arith.constant dense<0.000000e+00> : vector<2x256xf32>
    %143 = tpu.matmul %142, %125, %cst_123 {dimension_numbers = #tpu.dot_dimension_numbers<[1], [0], [0], [1], [0, 0, 1, 1], [], []>} : vector<2x4xbf16>, vector<4x256xbf16>, vector<2x256xf32> -> vector<2x256xf32>
    %144 = arith.truncf %143 : vector<2x256xf32> to vector<2x256xbf16>
    %c2_124 = arith.constant 2 : index
    %c0_125 = arith.constant 0 : index
    %c0_126 = arith.constant 0 : index
    %145 = vector.load %arg12[%c2_124, %c0_125, %c0_126] : memref<3x256x256xbf16, #tpu.memory_space<vmem>>, vector<1x256x256xbf16>
    %146 = vector.shape_cast %145 : vector<1x256x256xbf16> to vector<256x256xbf16>
    %cst_127 = arith.constant dense<0.000000e+00> : vector<2x256xf32>
    %147 = tpu.matmul %144, %146, %cst_127 {dimension_numbers = #tpu.dot_dimension_numbers<[1], [0], [0], [1], [0, 0, 1, 1], [], []>} : vector<2x256xbf16>, vector<256x256xbf16>, vector<2x256xf32> -> vector<2x256xf32>
    %148 = arith.addf %140, %147 : vector<2x256xf32>
    %c0_128 = arith.constant 0 : index
    %c0_129 = arith.constant 0 : index
    %c0_130 = arith.constant 0 : index
    %149 = vector.load %arg13[%c0_128, %c0_129, %c0_130] : memref<3x1x256xf32, #tpu.memory_space<vmem>>, vector<1x1x256xf32>
    %150 = vector.shape_cast %149 : vector<1x1x256xf32> to vector<1x256xf32>
    %151 = vector.broadcast %150 : vector<1x256xf32> to vector<2x256xf32>
    %152 = arith.addf %148, %151 : vector<2x256xf32>
    %cst_131 = arith.constant 0.000000e+00 : f32
    %153 = vector.broadcast %cst_131 : f32 to vector<2x256xf32>
    %154 = arith.cmpf ogt, %152, %153 : vector<2x256xf32>
    %cst_132 = arith.constant 2.000000e-01 : f32
    %155 = vector.broadcast %cst_132 : f32 to vector<2x256xf32>
    %156 = arith.mulf %155, %152 : vector<2x256xf32>
    %157 = arith.select %154, %152, %156 : vector<2x256xi1>, vector<2x256xf32>
    %c1_133 = arith.constant 1 : index
    %c0_134 = arith.constant 0 : index
    %c0_135 = arith.constant 0 : index
    %158 = vector.load %arg13[%c1_133, %c0_134, %c0_135] : memref<3x1x256xf32, #tpu.memory_space<vmem>>, vector<1x1x256xf32>
    %159 = vector.shape_cast %158 : vector<1x1x256xf32> to vector<1x256xf32>
    %160 = vector.broadcast %159 : vector<1x256xf32> to vector<2x256xf32>
    %161 = arith.mulf %157, %160 : vector<2x256xf32>
    %c2_136 = arith.constant 2 : index
    %c0_137 = arith.constant 0 : index
    %c0_138 = arith.constant 0 : index
    %162 = vector.load %arg13[%c2_136, %c0_137, %c0_138] : memref<3x1x256xf32, #tpu.memory_space<vmem>>, vector<1x1x256xf32>
    %163 = vector.shape_cast %162 : vector<1x1x256xf32> to vector<1x256xf32>
    %164 = vector.broadcast %163 : vector<1x256xf32> to vector<2x256xf32>
    %165 = arith.addf %161, %164 : vector<2x256xf32>
    %166 = arith.truncf %165 : vector<2x256xf32> to vector<2x256xbf16>
    %c0_139 = arith.constant 0 : index
    %c0_140 = arith.constant 0 : index
    %c0_141 = arith.constant 0 : index
    %167 = vector.load %arg14[%c0_139, %c0_140, %c0_141] : memref<2x1x2xbf16, #tpu.memory_space<vmem>>, vector<1x1x2xbf16>
    %168 = vector.shape_cast %167 : vector<1x1x2xbf16> to vector<1x2xbf16>
    %cst_142 = arith.constant dense<0.000000e+00> : vector<1x256xf32>
    %169 = tpu.matmul %168, %166, %cst_142 {dimension_numbers = #tpu.dot_dimension_numbers<[1], [0], [0], [1], [0, 0, 1, 1], [], []>} : vector<1x2xbf16>, vector<2x256xbf16>, vector<1x256xf32> -> vector<1x256xf32>
    %170 = arith.truncf %169 : vector<1x256xf32> to vector<1x256xbf16>
    %c0_143 = arith.constant 0 : index
    %c0_144 = arith.constant 0 : index
    %c0_145 = arith.constant 0 : index
    %171 = vector.load %arg15[%c0_143, %c0_144, %c0_145] : memref<2x256x128xbf16, #tpu.memory_space<vmem>>, vector<1x256x128xbf16>
    %172 = vector.shape_cast %171 : vector<1x256x128xbf16> to vector<256x128xbf16>
    %cst_146 = arith.constant dense<0.000000e+00> : vector<1x128xf32>
    %173 = tpu.matmul %170, %172, %cst_146 {dimension_numbers = #tpu.dot_dimension_numbers<[1], [0], [0], [1], [0, 0, 1, 1], [], []>} : vector<1x256xbf16>, vector<256x128xbf16>, vector<1x128xf32> -> vector<1x128xf32>
    %c1_147 = arith.constant 1 : index
    %c0_148 = arith.constant 0 : index
    %c0_149 = arith.constant 0 : index
    %174 = vector.load %arg14[%c1_147, %c0_148, %c0_149] : memref<2x1x2xbf16, #tpu.memory_space<vmem>>, vector<1x1x2xbf16>
    %175 = vector.shape_cast %174 : vector<1x1x2xbf16> to vector<1x2xbf16>
    %cst_150 = arith.constant dense<0.000000e+00> : vector<1x256xf32>
    %176 = tpu.matmul %175, %166, %cst_150 {dimension_numbers = #tpu.dot_dimension_numbers<[1], [0], [0], [1], [0, 0, 1, 1], [], []>} : vector<1x2xbf16>, vector<2x256xbf16>, vector<1x256xf32> -> vector<1x256xf32>
    %177 = arith.truncf %176 : vector<1x256xf32> to vector<1x256xbf16>
    %c1_151 = arith.constant 1 : index
    %c0_152 = arith.constant 0 : index
    %c0_153 = arith.constant 0 : index
    %178 = vector.load %arg15[%c1_151, %c0_152, %c0_153] : memref<2x256x128xbf16, #tpu.memory_space<vmem>>, vector<1x256x128xbf16>
    %179 = vector.shape_cast %178 : vector<1x256x128xbf16> to vector<256x128xbf16>
    %cst_154 = arith.constant dense<0.000000e+00> : vector<1x128xf32>
    %180 = tpu.matmul %177, %179, %cst_154 {dimension_numbers = #tpu.dot_dimension_numbers<[1], [0], [0], [1], [0, 0, 1, 1], [], []>} : vector<1x256xbf16>, vector<256x128xbf16>, vector<1x128xf32> -> vector<1x128xf32>
    %181 = arith.addf %173, %180 : vector<1x128xf32>
    %c0_155 = arith.constant 0 : index
    %c0_156 = arith.constant 0 : index
    %182 = vector.load %arg16[%c0_155, %c0_156] : memref<1x128xf32, #tpu.memory_space<vmem>>, vector<1x128xf32>
    %183 = arith.addf %181, %182 : vector<1x128xf32>
    %184 = tpu.iota {dimensions = array<i32: 1>} : vector<1x128xi32>
    %cst_157 = arith.constant 0.000000e+00 : f32
    %185 = vector.broadcast %cst_157 : f32 to vector<1x128xf32>
    %186 = arith.subf %185, %183 : vector<1x128xf32>
    %187 = math.exp %186 : vector<1x128xf32>
    %cst_158 = arith.constant 1.000000e+00 : f32
    %188 = vector.broadcast %cst_158 : f32 to vector<1x128xf32>
    %189 = arith.addf %188, %187 : vector<1x128xf32>
    %cst_159 = arith.constant 1.000000e+00 : f32
    %190 = vector.broadcast %cst_159 : f32 to vector<1x128xf32>
    %191 = arith.divf %190, %189 : vector<1x128xf32>
    %c1_i32 = arith.constant 1 : i32
    %192 = vector.broadcast %c1_i32 : i32 to vector<1x128xi32>
    %193 = arith.cmpi sge, %184, %192 : vector<1x128xi32>
    %c11_i32 = arith.constant 11 : i32
    %194 = vector.broadcast %c11_i32 : i32 to vector<1x128xi32>
    %195 = arith.cmpi slt, %184, %194 : vector<1x128xi32>
    %196 = arith.andi %193, %195 : vector<1x128xi1>
    %cst_160 = arith.constant -1.000000e+30 : f32
    %197 = vector.broadcast %cst_160 : f32 to vector<1x128xf32>
    %198 = arith.select %196, %183, %197 : vector<1x128xi1>, vector<1x128xf32>
    %cst_161 = arith.constant dense<0xFF800000> : vector<1xf32>
    %199 = vector.multi_reduction <maximumf>, %198, %cst_161 [1] : vector<1x128xf32> to vector<1xf32>
    %200 = vector.shape_cast %199 : vector<1xf32> to vector<1x1xf32>
    %201 = vector.broadcast %200 : vector<1x1xf32> to vector<1x128xf32>
    %202 = arith.subf %198, %201 : vector<1x128xf32>
    %203 = math.exp %202 : vector<1x128xf32>
    %204 = arith.extui %196 : vector<1x128xi1> to vector<1x128xi32>
    %205 = arith.sitofp %204 : vector<1x128xi32> to vector<1x128xf32>
    %206 = arith.mulf %203, %205 : vector<1x128xf32>
    %cst_162 = arith.constant dense<0.000000e+00> : vector<1xf32>
    %207 = vector.multi_reduction <add>, %206, %cst_162 [1] : vector<1x128xf32> to vector<1xf32>
    %208 = vector.shape_cast %207 : vector<1xf32> to vector<1x1xf32>
    %209 = tpu.reciprocal %208 : vector<1x1xf32> -> vector<1x1xf32>
    %210 = vector.broadcast %209 : vector<1x1xf32> to vector<1x128xf32>
    %211 = arith.mulf %206, %210 : vector<1x128xf32>
    %c0_i32 = arith.constant 0 : i32
    %212 = vector.broadcast %c0_i32 : i32 to vector<1x128xi32>
    %213 = arith.cmpi eq, %184, %212 : vector<1x128xi32>
    %214 = arith.select %213, %191, %211 : vector<1x128xi1>, vector<1x128xf32>
    %c0_163 = arith.constant 0 : index
    %c0_164 = arith.constant 0 : index
    %c0_165 = arith.constant 0 : index
    %215 = vector.load %arg17[%c0_163, %c0_164, %c0_165] : memref<1x1x128xf32, #tpu.memory_space<vmem>>, vector<1x1x128xf32>
    %216 = vector.shape_cast %215 : vector<1x1x128xf32> to vector<1x128xf32>
    %217 = vector.shape_cast %214 : vector<1x128xf32> to vector<1x1x128xf32>
    tpu.vector_store %arg17[%c0_163, %c0_164, %c0_165], %217 {strides = array<i32>} : memref<1x1x128xf32, #tpu.memory_space<vmem>>, vector<1x1x128xf32>,
    return
  }
  func.func @transform_0(%arg0: i32) -> (i32, i32, i32) {
    %c0_i32 = arith.constant 0 : i32
    %c0_i32_0 = arith.constant 0 : i32
    %c0_i32_1 = arith.constant 0 : i32
    return %arg0, %c0_i32, %c0_i32_0 : i32, i32, i32
  }
  func.func @transform_1(%arg0: i32) -> (i32, i32, i32) {
    %c0_i32 = arith.constant 0 : i32
    %c0_i32_0 = arith.constant 0 : i32
    %c0_i32_1 = arith.constant 0 : i32
    %c0_i32_2 = arith.constant 0 : i32
    return %c0_i32, %c0_i32_0, %c0_i32_1 : i32, i32, i32
  }
  func.func @transform_2(%arg0: i32) -> (i32, i32, i32) {
    %c0_i32 = arith.constant 0 : i32
    %c0_i32_0 = arith.constant 0 : i32
    %c0_i32_1 = arith.constant 0 : i32
    %c0_i32_2 = arith.constant 0 : i32
    return %c0_i32, %c0_i32_0, %c0_i32_1 : i32, i32, i32
  }
  func.func @transform_3(%arg0: i32) -> (i32, i32, i32) {
    %c0_i32 = arith.constant 0 : i32
    %c0_i32_0 = arith.constant 0 : i32
    %c0_i32_1 = arith.constant 0 : i32
    %c0_i32_2 = arith.constant 0 : i32
    return %c0_i32, %c0_i32_0, %c0_i32_1 : i32, i32, i32
  }
  func.func @transform_4(%arg0: i32) -> (i32, i32, i32) {
    %c0_i32 = arith.constant 0 : i32
    %c0_i32_0 = arith.constant 0 : i32
    %c0_i32_1 = arith.constant 0 : i32
    %c0_i32_2 = arith.constant 0 : i32
    return %c0_i32, %c0_i32_0, %c0_i32_1 : i32, i32, i32
  }
  func.func @transform_5(%arg0: i32) -> (i32, i32, i32) {
    %c0_i32 = arith.constant 0 : i32
    %c0_i32_0 = arith.constant 0 : i32
    %c0_i32_1 = arith.constant 0 : i32
    %c0_i32_2 = arith.constant 0 : i32
    return %c0_i32, %c0_i32_0, %c0_i32_1 : i32, i32, i32
  }
  func.func @transform_6(%arg0: i32) -> (i32, i32, i32) {
    %c0_i32 = arith.constant 0 : i32
    %c0_i32_0 = arith.constant 0 : i32
    %c0_i32_1 = arith.constant 0 : i32
    %c0_i32_2 = arith.constant 0 : i32
    return %c0_i32, %c0_i32_0, %c0_i32_1 : i32, i32, i32
  }
  func.func @transform_7(%arg0: i32) -> (i32, i32, i32) {
    %c0_i32 = arith.constant 0 : i32
    %c0_i32_0 = arith.constant 0 : i32
    %c0_i32_1 = arith.constant 0 : i32
    %c0_i32_2 = arith.constant 0 : i32
    return %c0_i32, %c0_i32_0, %c0_i32_1 : i32, i32, i32
  }
  func.func @transform_8(%arg0: i32) -> (i32, i32, i32) {
    %c0_i32 = arith.constant 0 : i32
    %c0_i32_0 = arith.constant 0 : i32
    %c0_i32_1 = arith.constant 0 : i32
    %c0_i32_2 = arith.constant 0 : i32
    return %c0_i32, %c0_i32_0, %c0_i32_1 : i32, i32, i32
  }
  func.func @transform_9(%arg0: i32) -> (i32, i32, i32) {
    %c0_i32 = arith.constant 0 : i32
    %c0_i32_0 = arith.constant 0 : i32
    %c0_i32_1 = arith.constant 0 : i32
    %c0_i32_2 = arith.constant 0 : i32
    return %c0_i32, %c0_i32_0, %c0_i32_1 : i32, i32, i32
  }
  func.func @transform_10(%arg0: i32) -> (i32, i32, i32) {
    %c0_i32 = arith.constant 0 : i32
    %c0_i32_0 = arith.constant 0 : i32
    %c0_i32_1 = arith.constant 0 : i32
    %c0_i32_2 = arith.constant 0 : i32
    return %c0_i32, %c0_i32_0, %c0_i32_1 : i32, i32, i32
  }
  func.func @transform_11(%arg0: i32) -> (i32, i32, i32) {
    %c0_i32 = arith.constant 0 : i32
    %c0_i32_0 = arith.constant 0 : i32
    %c0_i32_1 = arith.constant 0 : i32
    %c0_i32_2 = arith.constant 0 : i32
    return %c0_i32, %c0_i32_0, %c0_i32_1 : i32, i32, i32
  }
  func.func @transform_12(%arg0: i32) -> (i32, i32, i32) {
    %c0_i32 = arith.constant 0 : i32
    %c0_i32_0 = arith.constant 0 : i32
    %c0_i32_1 = arith.constant 0 : i32
    %c0_i32_2 = arith.constant 0 : i32
    return %c0_i32, %c0_i32_0, %c0_i32_1 : i32, i32, i32
  }
  func.func @transform_13(%arg0: i32) -> (i32, i32, i32) {
    %c0_i32 = arith.constant 0 : i32
    %c0_i32_0 = arith.constant 0 : i32
    %c0_i32_1 = arith.constant 0 : i32
    %c0_i32_2 = arith.constant 0 : i32
    return %c0_i32, %c0_i32_0, %c0_i32_1 : i32, i32, i32
  }
  func.func @transform_14(%arg0: i32) -> (i32, i32, i32) {
    %c0_i32 = arith.constant 0 : i32
    %c0_i32_0 = arith.constant 0 : i32
    %c0_i32_1 = arith.constant 0 : i32
    %c0_i32_2 = arith.constant 0 : i32
    return %c0_i32, %c0_i32_0, %c0_i32_1 : i32, i32, i32
  }
  func.func @transform_15(%arg0: i32) -> (i32, i32) {
    %c0_i32 = arith.constant 0 : i32
    %c0_i32_0 = arith.constant 0 : i32
    %c0_i32_1 = arith.constant 0 : i32
    return %c0_i32, %c0_i32_0 : i32, i32
  }
  func.func @transform_16(%arg0: i32) -> (i32, i32, i32) {
    %c0_i32 = arith.constant 0 : i32
    %c0_i32_0 = arith.constant 0 : i32
    %c0_i32_1 = arith.constant 0 : i32
    return %arg0, %c0_i32, %c0_i32_0 : i32, i32, i32
  }
}

</mosaic_0001>

<llo_original>
// kernel: discriminator_forward.1
$region0: #{discriminator_forward.1}
  #allocation0 [shape = 'u32[]', space=smem, size = 0x4, offset = 0x4, fixed_abs, tag = 'smem constant byte address 0x4 - core index']
  #allocation1 [shape = 'u32[72,128]{1,0:T(1,128)}', space=vmem, size = 0x9000, scoped, tag = 'internal scratch']
  %s0 = inlined_call_operand.hbm [shape: f32[2,32,32], index: 0, kind: input, shape index: {}]
  %s1 = inlined_call_operand.hbm [shape: bf16[3,16,32], index: 1, kind: input, shape index: {}]
  %s2 = inlined_call_operand.hbm [shape: bf16[3,32,256], index: 2, kind: input, shape index: {}]
  %s3 = inlined_call_operand.hbm [shape: f32[3,1,256], index: 3, kind: input, shape index: {}]
  %s4 = inlined_call_operand.hbm [shape: bf16[3,8,16], index: 4, kind: input, shape index: {}]
  %s5 = inlined_call_operand.hbm [shape: bf16[3,256,256], index: 5, kind: input, shape index: {}]
  %s6 = inlined_call_operand.vmem [shape: f32[3,1,256], index: 6, kind: input, shape index: {}]
  %s7 = inlined_call_operand.hbm [shape: bf16[3,4,8], index: 7, kind: input, shape index: {}]
  %s8 = inlined_call_operand.hbm [shape: bf16[3,256,256], index: 8, kind: input, shape index: {}]
  %s9 = inlined_call_operand.hbm [shape: f32[3,1,256], index: 9, kind: input, shape index: {}]
  %s10 = inlined_call_operand.vmem [shape: bf16[3,2,4], index: 10, kind: input, shape index: {}]
  %s11 = inlined_call_operand.hbm [shape: bf16[3,256,256], index: 11, kind: input, shape index: {}]
  %s12 = inlined_call_operand.vmem [shape: f32[3,1,256], index: 12, kind: input, shape index: {}]
  %s13 = inlined_call_operand.vmem [shape: bf16[2,1,2], index: 13, kind: input, shape index: {}]
  %s14 = inlined_call_operand.hbm [shape: bf16[2,256,128], index: 14, kind: input, shape index: {}]
  %s15 = inlined_call_operand.hbm [shape: f32[1,128], index: 15, kind: input, shape index: {}]
  %s16 = inlined_call_operand.vmem [shape: f32[2,1,128], index: 16, kind: output, shape index: {}]
  %s17 = sld [smem:[#allocation0]]
  $region145: #{discriminator_forward.1} parent=0
    _
  %s19 = ssub.s32 1, %s17
  %s20 = scalar_select 0, %s19, %s17
  $region1: #{discriminator_forward.1} parent=0
    #allocation2 [shape = 'u8[32768]{0}', space=vmem, size = 0x8000, scoped, tag = 'input window, operand 0']
    #allocation3 [shape = 's32[2]{0}', space=sflag, size = 0x8, scoped, tag = 'scoped memory for discriminator_forward.1']
    #allocation4 [shape = 'u8[12288]{0}', space=vmem, size = 0x3000, scoped, tag = 'input window, operand 1, single buffered']
    #allocation5 [shape = 's32[1]{0}', space=sflag, size = 0x4, scoped, tag = 'scoped memory for discriminator_forward.1']
    #allocation6 [shape = 'u8[49152]{0}', space=vmem, size = 0xc000, scoped, tag = 'input window, operand 2, single buffered']
    #allocation7 [shape = 'u8[3072]{0}', space=vmem, size = 0xc00, scoped, tag = 'input window, operand 3, single buffered']
    #allocation8 [shape = 's32[1]{0}', space=sflag, size = 0x4, scoped, tag = 'scoped memory for discriminator_forward.1']
    #allocation9 [shape = 'u8[6144]{0}', space=vmem, size = 0x1800, scoped, tag = 'input window, operand 4, single buffered']
    #allocation10 [shape = 'u8[393216]{0}', space=vmem, size = 0x60000, scoped, tag = 'input window, operand 5, single buffered']
    #allocation11 [shape = 's32[1]{0}', space=sflag, size = 0x4, scoped, tag = 'scoped memory for discriminator_forward.1']
    #allocation12 [shape = 'u8[3072]{0}', space=vmem, size = 0xc00, scoped, tag = 'input window, operand 7, single buffered']
    #allocation13 [shape = 'u8[393216]{0}', space=vmem, size = 0x60000, scoped, tag = 'input window, operand 8, single buffered']
    #allocation14 [shape = 's32[1]{0}', space=sflag, size = 0x4, scoped, tag = 'scoped memory for discriminator_forward.1']
    #allocation15 [shape = 'u8[3072]{0}', space=vmem, size = 0xc00, scoped, tag = 'input window, operand 9, single buffered']
    #allocation16 [shape = 'u8[393216]{0}', space=vmem, size = 0x60000, scoped, tag = 'input window, operand 11, single buffered']
    #allocation17 [shape = 's32[1]{0}', space=sflag, size = 0x4, scoped, tag = 'scoped memory for discriminator_forward.1']
    #allocation18 [shape = 'u8[131072]{0}', space=vmem, size = 0x20000, scoped, tag = 'input window, operand 14, single buffered']
    #allocation19 [shape = 'u8[512]{0}', space=vmem, size = 0x400, scoped, tag = 'input window, operand 15, single buffered']
    #allocation20 [shape = 's32[1]{0}', space=sflag, size = 0x4, scoped, tag = 'scoped memory for discriminator_forward.1']
    %21 = vsyncpa [#allocation3], 0
    %s22 = scalar_lea.sflag [#allocation3], 1
    %23 = vsyncpa %s22, 0
    %24 = vsyncpa [#allocation5], 0
    %25 = vsyncpa [#allocation8], 0
    %26 = vsyncpa [#allocation11], 0
    %27 = vsyncpa [#allocation14], 0
    %28 = vsyncpa [#allocation17], 0
    %29 = vsyncpa [#allocation20], 0
    loop: start=0, step=1, limit=4
    $region2: #{discriminator_forward.1} parent=1 // loop_pre_header
      _
    $region3: #{discriminator_forward.1} parent=1 // loop_header
      %s31 = sphi 0, %s35
      %p32 = scmp.ge.s32.totalorder %s31, 4
      %s41 = sphi 0, %s43
      %s44 = sphi 0, %s41
      %s45 = sphi 0, %s44
      %s61 = sphi 0, %s45
      %s65 = sphi 0, %s65
      %s67 = sphi 0, %s65
      %s68 = sphi 0, %s67
      %s82 = sphi 0, %s68
      %s86 = sphi 0, %s86
      %s88 = sphi 0, %s86
      %s89 = sphi 0, %s88
      %s103 = sphi 0, %s89
      %s107 = sphi 0, %s107
      %s109 = sphi 0, %s107
      %s110 = sphi 0, %s109
      %s124 = sphi 0, %s110
      %s128 = sphi 0, %s128
      %s130 = sphi 0, %s128
      %s131 = sphi 0, %s130
      %s145 = sphi 0, %s131
      %s149 = sphi 0, %s149
      %s151 = sphi 0, %s149
      %s152 = sphi 0, %s151
      %s166 = sphi 0, %s152
      %s170 = sphi 0, %s170
      %s172 = sphi 0, %s170
      %s173 = sphi 0, %s172
      %s187 = sphi 0, %s173
      %s191 = sphi 0, %s191
      %s193 = sphi 0, %s191
      %s194 = sphi 0, %s193
      %s208 = sphi 0, %s194
      %s212 = sphi 0, %s212
      %s214 = sphi 0, %s212
      %s215 = sphi 0, %s214
      %s229 = sphi 0, %s215
      %s233 = sphi 0, %s233
      %s235 = sphi 0, %s233
      %s236 = sphi 0, %s235
      %s250 = sphi 0, %s236
      %s254 = sphi 0, %s254
      %s256 = sphi 0, %s254
      %s257 = sphi 0, %s256
      %s271 = sphi 0, %s257
      %s275 = sphi 0, %s275
      %s277 = sphi 0, %s275
      %s278 = sphi 0, %s277
      %s292 = sphi 0, %s278
      %s296 = sphi 0, %s296
      %s298 = sphi 0, %s296
      %s299 = sphi 0, %s298
      %s313 = sphi 0, %s299
      %s317 = sphi 0, %s317
      %s319 = sphi 0, %s317
      %s320 = sphi 0, %s319
      %s334 = sphi 0, %s320
      %s338 = sphi 0, %s338
      %s340 = sphi 0, %s338
      %s341 = sphi 0, %s340
      %s355 = sphi 0, %s341
      %s359 = sphi 0, %s359
      %s361 = sphi 0, %s359
      %s362 = sphi 0, %s361
      %s376 = sphi 0, %s362
      %s382 = sphi 0, %s384
      %s385 = sphi 0, %s382
      %s386 = sphi 0, %s385
      %s402 = sphi 0, %s386
    $region4: #{discriminator_forward.1} parent=1 // loop_header_branch
      %34 = sbr.rel (%p32) target = $region8
    $region5: #{discriminator_forward.1} parent=1 // loop_body
      %s36 = ssub.s32 %s31, 1
      %s37 = ssub.s32 %s31, 2
      %s38 = sadd.s32 %s31, 1
      %s39 = ssub.s32 %s31, %s38
      %p40 = scmp.eq.s32.totalorder %s39, 0
      %s42 = sadd.s32 %s41, 1
      %s43 = scalar_select %p40, %s41, %s42
      %p46 = pneg %p40
      %p47 = scmp.eq.s32.totalorder %s31, 1
      %p48 = por %p46, %p47
      %p49 = scmp.ne.s32.totalorder %s41, %s44
      %p50 = scmp.eq.s32.totalorder %s31, 0
      %p51 = por %p49, %p50
      %p52 = scmp.ne.s32.totalorder %s41, %s44
      %p53 = scmp.eq.s32.totalorder %s36, 1
      %p54 = por %p52, %p53
      %p55 = scmp.ne.s32.totalorder %s44, %s45
      %p56 = scmp.eq.s32.totalorder %s36, 0
      %p57 = por %p55, %p56
      %p58 = scmp.ne.s32.totalorder %s44, %s45
      %p59 = scmp.eq.s32.totalorder %s37, 1
      %p60 = por %p58, %p59
      %p62 = scmp.ne.s32.totalorder %s45, %s61
      %p63 = scmp.eq.s32.totalorder %s37, 0
      %p64 = por %p62, %p63
      %s66 = sadd.s32 %s65, 1
      %p69 = scmp.eq.s32.totalorder %s31, 1
      %p70 = scmp.ne.s32.totalorder %s65, %s67
      %p71 = scmp.eq.s32.totalorder %s31, 0
      %p72 = por %p70, %p71
      %p73 = scmp.ne.s32.totalorder %s65, %s67
      %p74 = scmp.eq.s32.totalorder %s36, 1
      %p75 = por %p73, %p74
      %p76 = scmp.ne.s32.totalorder %s67, %s68
      %p77 = scmp.eq.s32.totalorder %s36, 0
      %p78 = por %p76, %p77
      %p79 = scmp.ne.s32.totalorder %s67, %s68
      %p80 = scmp.eq.s32.totalorder %s37, 1
      %p81 = por %p79, %p80
      %p83 = scmp.ne.s32.totalorder %s68, %s82
      %p84 = scmp.eq.s32.totalorder %s37, 0
      %p85 = por %p83, %p84
      %s87 = sadd.s32 %s86, 1
      %p90 = scmp.eq.s32.totalorder %s31, 1
      %p91 = scmp.ne.s32.totalorder %s86, %s88
      %p92 = scmp.eq.s32.totalorder %s31, 0
      %p93 = por %p91, %p92
      %p94 = scmp.ne.s32.totalorder %s86, %s88
      %p95 = scmp.eq.s32.totalorder %s36, 1
      %p96 = por %p94, %p95
      %p97 = scmp.ne.s32.totalorder %s88, %s89
      %p98 = scmp.eq.s32.totalorder %s36, 0
      %p99 = por %p97, %p98
      %p100 = scmp.ne.s32.totalorder %s88, %s89
      %p101 = scmp.eq.s32.totalorder %s37, 1
      %p102 = por %p100, %p101
      %p104 = scmp.ne.s32.totalorder %s89, %s103
      %p105 = scmp.eq.s32.totalorder %s37, 0
      %p106 = por %p104, %p105
      %s108 = sadd.s32 %s107, 1
      %p111 = scmp.eq.s32.totalorder %s31, 1
      %p112 = scmp.ne.s32.totalorder %s107, %s109
      %p113 = scmp.eq.s32.totalorder %s31, 0
      %p114 = por %p112, %p113
      %p115 = scmp.ne.s32.totalorder %s107, %s109
      %p116 = scmp.eq.s32.totalorder %s36, 1
      %p117 = por %p115, %p116
      %p118 = scmp.ne.s32.totalorder %s109, %s110
      %p119 = scmp.eq.s32.totalorder %s36, 0
      %p120 = por %p118, %p119
      %p121 = scmp.ne.s32.totalorder %s109, %s110
      %p122 = scmp.eq.s32.totalorder %s37, 1
      %p123 = por %p121, %p122
      %p125 = scmp.ne.s32.totalorder %s110, %s124
      %p126 = scmp.eq.s32.totalorder %s37, 0
      %p127 = por %p125, %p126
      %s129 = sadd.s32 %s128, 1
      %p132 = scmp.eq.s32.totalorder %s31, 1
      %p133 = scmp.ne.s32.totalorder %s128, %s130
      %p134 = scmp.eq.s32.totalorder %s31, 0
      %p135 = por %p133, %p134
      %p136 = scmp.ne.s32.totalorder %s128, %s130
      %p137 = scmp.eq.s32.totalorder %s36, 1
      %p138 = por %p136, %p137
      %p139 = scmp.ne.s32.totalorder %s130, %s131
      %p140 = scmp.eq.s32.totalorder %s36, 0
      %p141 = por %p139, %p140
      %p142 = scmp.ne.s32.totalorder %s130, %s131
      %p143 = scmp.eq.s32.totalorder %s37, 1
      %p144 = por %p142, %p143
      %p146 = scmp.ne.s32.totalorder %s131, %s145
      %p147 = scmp.eq.s32.totalorder %s37, 0
      %p148 = por %p146, %p147
      %s150 = sadd.s32 %s149, 1
      %p153 = scmp.eq.s32.totalorder %s31, 1
      %p154 = scmp.ne.s32.totalorder %s149, %s151
      %p155 = scmp.eq.s32.totalorder %s31, 0
      %p156 = por %p154, %p155
      %p157 = scmp.ne.s32.totalorder %s149, %s151
      %p158 = scmp.eq.s32.totalorder %s36, 1
      %p159 = por %p157, %p158
      %p160 = scmp.ne.s32.totalorder %s151, %s152
      %p161 = scmp.eq.s32.totalorder %s36, 0
      %p162 = por %p160, %p161
      %p163 = scmp.ne.s32.totalorder %s151, %s152
      %p164 = scmp.eq.s32.totalorder %s37, 1
      %p165 = por %p163, %p164
      %p167 = scmp.ne.s32.totalorder %s152, %s166
      %p168 = scmp.eq.s32.totalorder %s37, 0
      %p169 = por %p167, %p168
      %s171 = sadd.s32 %s170, 1
      %p174 = scmp.eq.s32.totalorder %s31, 1
      %p175 = scmp.ne.s32.totalorder %s170, %s172
      %p176 = scmp.eq.s32.totalorder %s31, 0
      %p177 = por %p175, %p176
      %p178 = scmp.ne.s32.totalorder %s170, %s172
      %p179 = scmp.eq.s32.totalorder %s36, 1
      %p180 = por %p178, %p179
      %p181 = scmp.ne.s32.totalorder %s172, %s173
      %p182 = scmp.eq.s32.totalorder %s36, 0
      %p183 = por %p181, %p182
      %p184 = scmp.ne.s32.totalorder %s172, %s173
      %p185 = scmp.eq.s32.totalorder %s37, 1
      %p186 = por %p184, %p185
      %p188 = scmp.ne.s32.totalorder %s173, %s187
      %p189 = scmp.eq.s32.totalorder %s37, 0
      %p190 = por %p188, %p189
      %s192 = sadd.s32 %s191, 1
      %p195 = scmp.eq.s32.totalorder %s31, 1
      %p196 = scmp.ne.s32.totalorder %s191, %s193
      %p197 = scmp.eq.s32.totalorder %s31, 0
      %p198 = por %p196, %p197
      %p199 = scmp.ne.s32.totalorder %s191, %s193
      %p200 = scmp.eq.s32.totalorder %s36, 1
      %p201 = por %p199, %p200
      %p202 = scmp.ne.s32.totalorder %s193, %s194
      %p203 = scmp.eq.s32.totalorder %s36, 0
      %p204 = por %p202, %p203
      %p205 = scmp.ne.s32.totalorder %s193, %s194
      %p206 = scmp.eq.s32.totalorder %s37, 1
      %p207 = por %p205, %p206
      %p209 = scmp.ne.s32.totalorder %s194, %s208
      %p210 = scmp.eq.s32.totalorder %s37, 0
      %p211 = por %p209, %p210
      %s213 = sadd.s32 %s212, 1
      %p216 = scmp.eq.s32.totalorder %s31, 1
      %p217 = scmp.ne.s32.totalorder %s212, %s214
      %p218 = scmp.eq.s32.totalorder %s31, 0
      %p219 = por %p217, %p218
      %p220 = scmp.ne.s32.totalorder %s212, %s214
      %p221 = scmp.eq.s32.totalorder %s36, 1
      %p222 = por %p220, %p221
      %p223 = scmp.ne.s32.totalorder %s214, %s215
      %p224 = scmp.eq.s32.totalorder %s36, 0
      %p225 = por %p223, %p224
      %p226 = scmp.ne.s32.totalorder %s214, %s215
      %p227 = scmp.eq.s32.totalorder %s37, 1
      %p228 = por %p226, %p227
      %p230 = scmp.ne.s32.totalorder %s215, %s229
      %p231 = scmp.eq.s32.totalorder %s37, 0
      %p232 = por %p230, %p231
      %s234 = sadd.s32 %s233, 1
      %p237 = scmp.eq.s32.totalorder %s31, 1
      %p238 = scmp.ne.s32.totalorder %s233, %s235
      %p239 = scmp.eq.s32.totalorder %s31, 0
      %p240 = por %p238, %p239
      %p241 = scmp.ne.s32.totalorder %s233, %s235
      %p242 = scmp.eq.s32.totalorder %s36, 1
      %p243 = por %p241, %p242
      %p244 = scmp.ne.s32.totalorder %s235, %s236
      %p245 = scmp.eq.s32.totalorder %s36, 0
      %p246 = por %p244, %p245
      %p247 = scmp.ne.s32.totalorder %s235, %s236
      %p248 = scmp.eq.s32.totalorder %s37, 1
      %p249 = por %p247, %p248
      %p251 = scmp.ne.s32.totalorder %s236, %s250
      %p252 = scmp.eq.s32.totalorder %s37, 0
      %p253 = por %p251, %p252
      %s255 = sadd.s32 %s254, 1
      %p258 = scmp.eq.s32.totalorder %s31, 1
      %p259 = scmp.ne.s32.totalorder %s254, %s256
      %p260 = scmp.eq.s32.totalorder %s31, 0
      %p261 = por %p259, %p260
      %p262 = scmp.ne.s32.totalorder %s254, %s256
      %p263 = scmp.eq.s32.totalorder %s36, 1
      %p264 = por %p262, %p263
      %p265 = scmp.ne.s32.totalorder %s256, %s257
      %p266 = scmp.eq.s32.totalorder %s36, 0
      %p267 = por %p265, %p266
      %p268 = scmp.ne.s32.totalorder %s256, %s257
      %p269 = scmp.eq.s32.totalorder %s37, 1
      %p270 = por %p268, %p269
      %p272 = scmp.ne.s32.totalorder %s257, %s271
      %p273 = scmp.eq.s32.totalorder %s37, 0
      %p274 = por %p272, %p273
      %s276 = sadd.s32 %s275, 1
      %p279 = scmp.eq.s32.totalorder %s31, 1
      %p280 = scmp.ne.s32.totalorder %s275, %s277
      %p281 = scmp.eq.s32.totalorder %s31, 0
      %p282 = por %p280, %p281
      %p283 = scmp.ne.s32.totalorder %s275, %s277
      %p284 = scmp.eq.s32.totalorder %s36, 1
      %p285 = por %p283, %p284
      %p286 = scmp.ne.s32.totalorder %s277, %s278
      %p287 = scmp.eq.s32.totalorder %s36, 0
      %p288 = por %p286, %p287
      %p289 = scmp.ne.s32.totalorder %s277, %s278
      %p290 = scmp.eq.s32.totalorder %s37, 1
      %p291 = por %p289, %p290
      %p293 = scmp.ne.s32.totalorder %s278, %s292
      %p294 = scmp.eq.s32.totalorder %s37, 0
      %p295 = por %p293, %p294
      %s297 = sadd.s32 %s296, 1
      %p300 = scmp.eq.s32.totalorder %s31, 1
      %p301 = scmp.ne.s32.totalorder %s296, %s298
      %p302 = scmp.eq.s32.totalorder %s31, 0
      %p303 = por %p301, %p302
      %p304 = scmp.ne.s32.totalorder %s296, %s298
      %p305 = scmp.eq.s32.totalorder %s36, 1
      %p306 = por %p304, %p305
      %p307 = scmp.ne.s32.totalorder %s298, %s299
      %p308 = scmp.eq.s32.totalorder %s36, 0
      %p309 = por %p307, %p308
      %p310 = scmp.ne.s32.totalorder %s298, %s299
      %p311 = scmp.eq.s32.totalorder %s37, 1
      %p312 = por %p310, %p311
      %p314 = scmp.ne.s32.totalorder %s299, %s313
      %p315 = scmp.eq.s32.totalorder %s37, 0
      %p316 = por %p314, %p315
      %s318 = sadd.s32 %s317, 1
      %p321 = scmp.eq.s32.totalorder %s31, 1
      %p322 = scmp.ne.s32.totalorder %s317, %s319
      %p323 = scmp.eq.s32.totalorder %s31, 0
      %p324 = por %p322, %p323
      %p325 = scmp.ne.s32.totalorder %s317, %s319
      %p326 = scmp.eq.s32.totalorder %s36, 1
      %p327 = por %p325, %p326
      %p328 = scmp.ne.s32.totalorder %s319, %s320
      %p329 = scmp.eq.s32.totalorder %s36, 0
      %p330 = por %p328, %p329
      %p331 = scmp.ne.s32.totalorder %s319, %s320
      %p332 = scmp.eq.s32.totalorder %s37, 1
      %p333 = por %p331, %p332
      %p335 = scmp.ne.s32.totalorder %s320, %s334
      %p336 = scmp.eq.s32.totalorder %s37, 0
      %p337 = por %p335, %p336
      %s339 = sadd.s32 %s338, 1
      %p342 = scmp.eq.s32.totalorder %s31, 1
      %p343 = scmp.ne.s32.totalorder %s338, %s340
      %p344 = scmp.eq.s32.totalorder %s31, 0
      %p345 = por %p343, %p344
      %p346 = scmp.ne.s32.totalorder %s338, %s340
      %p347 = scmp.eq.s32.totalorder %s36, 1
      %p348 = por %p346, %p347
      %p349 = scmp.ne.s32.totalorder %s340, %s341
      %p350 = scmp.eq.s32.totalorder %s36, 0
      %p351 = por %p349, %p350
      %p352 = scmp.ne.s32.totalorder %s340, %s341
      %p353 = scmp.eq.s32.totalorder %s37, 1
      %p354 = por %p352, %p353
      %p356 = scmp.ne.s32.totalorder %s341, %s355
      %p357 = scmp.eq.s32.totalorder %s37, 0
      %p358 = por %p356, %p357
      %s360 = sadd.s32 %s359, 1
      %p363 = scmp.eq.s32.totalorder %s31, 1
      %p364 = scmp.ne.s32.totalorder %s359, %s361
      %p365 = scmp.eq.s32.totalorder %s31, 0
      %p366 = por %p364, %p365
      %p367 = scmp.ne.s32.totalorder %s359, %s361
      %p368 = scmp.eq.s32.totalorder %s36, 1
      %p369 = por %p367, %p368
      %p370 = scmp.ne.s32.totalorder %s361, %s362
      %p371 = scmp.eq.s32.totalorder %s36, 0
      %p372 = por %p370, %p371
      %p373 = scmp.ne.s32.totalorder %s361, %s362
      %p374 = scmp.eq.s32.totalorder %s37, 1
      %p375 = por %p373, %p374
      %p377 = scmp.ne.s32.totalorder %s362, %s376
      %p378 = scmp.eq.s32.totalorder %s37, 0
      %p379 = por %p377, %p378
      %s380 = ssub.s32 %s31, %s38
      %p381 = scmp.eq.s32.totalorder %s380, 0
      %s383 = sadd.s32 %s382, 1
      %s384 = scalar_select %p381, %s382, %s383
      %p387 = pneg %p381
      %p388 = scmp.eq.s32.totalorder %s31, 1
      %p389 = por %p387, %p388
      %p390 = scmp.ne.s32.totalorder %s382, %s385
      %p391 = scmp.eq.s32.totalorder %s31, 0
      %p392 = por %p390, %p391
      %p393 = scmp.ne.s32.totalorder %s382, %s385
      %p394 = scmp.eq.s32.totalorder %s36, 1
      %p395 = por %p393, %p394
      %p396 = scmp.ne.s32.totalorder %s385, %s386
      %p397 = scmp.eq.s32.totalorder %s36, 0
      %p398 = por %p396, %p397
      %p399 = scmp.ne.s32.totalorder %s385, %s386
      %p400 = scmp.eq.s32.totalorder %s37, 1
      %p401 = por %p399, %p400
      %p403 = scmp.ne.s32.totalorder %s386, %s402
      %p404 = scmp.eq.s32.totalorder %s37, 0
      %p405 = por %p403, %p404
      %p406 = scmp.le.s32.totalorder 1, %s31
      %p407 = scmp.lt.s32.totalorder %s31, 3
      %p408 = pnand %p406, %p407
      %p409 = pneg %p408
      // Predicated region
      $region9: #{discriminator_forward.1} parent=5 // pred_check
        _
      $region10: #{discriminator_forward.1} parent=5 // pred_check_branch
        %411 = sbr.rel (%p408) target = $region12
      $region11: #{discriminator_forward.1} parent=5 // pred_region
        %s412 = ssub.s32 %s31, 1
        // Predicated region
        $region13: #{discriminator_forward.1} parent=11 // pred_check
          %p413 = pneg %p78
        $region14: #{discriminator_forward.1} parent=11 // pred_check_branch
          %415 = sbr.rel (%p413) target = $region16
        $region15: #{discriminator_forward.1} parent=11 // pred_region
          %417 = vsyncadd [#allocation5], 0
          %s418 = sshll.u32 %s1, 4
          %s419 = int_to_ptr.hbm [resolvable:$true] %s418
          %s420 = sshll.u32 [#allocation4], 4
          %s421 = int_to_ptr.vmem [resolvable:$true] %s420
          %426 = dma.hbm_to_vmem [thread:$0]  %s419, 384, %s421, [#allocation5], 64, 64, 4
        $region16: #{discriminator_forward.1} parent=11 // pred_fallthru
          _
        // Predicated region
        $region17: #{discriminator_forward.1} parent=11 // pred_check
          %p427 = pneg %p99
        $region18: #{discriminator_forward.1} parent=11 // pred_check_branch
          %429 = sbr.rel (%p427) target = $region20
        $region19: #{discriminator_forward.1} parent=11 // pred_region
          %431 = vsyncadd [#allocation5], 0
          %s432 = sshll.u32 %s2, 4
          %s433 = int_to_ptr.hbm [resolvable:$true] %s432
          %s434 = sshll.u32 [#allocation6], 4
          %s435 = int_to_ptr.vmem [resolvable:$true] %s434
          %440 = dma.hbm_to_vmem [thread:$0]  %s433, 1536, %s435, [#allocation5], 128, 128, 8
        $region20: #{discriminator_forward.1} parent=11 // pred_fallthru
          _
        // Predicated region
        $region21: #{discriminator_forward.1} parent=11 // pred_check
          %p441 = pneg %p120
        $region22: #{discriminator_forward.1} parent=11 // pred_check_branch
          %443 = sbr.rel (%p441) target = $region24
        $region23: #{discriminator_forward.1} parent=11 // pred_region
          %445 = vsyncadd [#allocation8], 0
          %s446 = sshll.u32 %s3, 4
          %s447 = int_to_ptr.hbm [resolvable:$true] %s446
          %s448 = sshll.u32 [#allocation7], 4
          %s449 = int_to_ptr.vmem [resolvable:$true] %s448
          %454 = dma.hbm_to_vmem [thread:$0]  %s447, 96, %s449, [#allocation8], 32, 32, 2
        $region24: #{discriminator_forward.1} parent=11 // pred_fallthru
          _
        // Predicated region
        $region25: #{discriminator_forward.1} parent=11 // pred_check
          %p455 = pneg %p141
        $region26: #{discriminator_forward.1} parent=11 // pred_check_branch
          %457 = sbr.rel (%p455) target = $region28
        $region27: #{discriminator_forward.1} parent=11 // pred_region
          %459 = vsyncadd [#allocation8], 0
          %s460 = sshll.u32 %s4, 4
          %s461 = int_to_ptr.hbm [resolvable:$true] %s460
          %s462 = sshll.u32 [#allocation9], 4
          %s463 = int_to_ptr.vmem [resolvable:$true] %s462
          %468 = dma.hbm_to_vmem [thread:$0]  %s461, 192, %s463, [#allocation8], 64, 64, 4
        $region28: #{discriminator_forward.1} parent=11 // pred_fallthru
          _
        // Predicated region
        $region29: #{discriminator_forward.1} parent=11 // pred_check
          %p469 = pneg %p162
        $region30: #{discriminator_forward.1} parent=11 // pred_check_branch
          %471 = sbr.rel (%p469) target = $region32
        $region31: #{discriminator_forward.1} parent=11 // pred_region
          %473 = vsyncadd [#allocation11], 0
          %s474 = sshll.u32 %s5, 4
          %s475 = int_to_ptr.hbm [resolvable:$true] %s474
          %s476 = sshll.u32 [#allocation10], 4
          %s477 = int_to_ptr.vmem [resolvable:$true] %s476
          %482 = dma.hbm_to_vmem [thread:$0]  %s475, 12288, %s477, [#allocation11], 128, 128, 8
        $region32: #{discriminator_forward.1} parent=11 // pred_fallthru
          _
        // Predicated region
        $region33: #{discriminator_forward.1} parent=11 // pred_check
          %p483 = pneg %p183
        $region34: #{discriminator_forward.1} parent=11 // pred_check_branch
          %485 = sbr.rel (%p483) target = $region36
        $region35: #{discriminator_forward.1} parent=11 // pred_region
          _
        $region36: #{discriminator_forward.1} parent=11 // pred_fallthru
          _
        // Predicated region
        $region37: #{discriminator_forward.1} parent=11 // pred_check
          %p486 = pneg %p204
        $region38: #{discriminator_forward.1} parent=11 // pred_check_branch
          %488 = sbr.rel (%p486) target = $region40
        $region39: #{discriminator_forward.1} parent=11 // pred_region
          %490 = vsyncadd [#allocation11], 0
          %s491 = sshll.u32 %s7, 4
          %s492 = int_to_ptr.hbm [resolvable:$true] %s491
          %s493 = sshll.u32 [#allocation12], 4
          %s494 = int_to_ptr.vmem [resolvable:$true] %s493
          %499 = dma.hbm_to_vmem [thread:$0]  %s492, 96, %s494, [#allocation11], 32, 32, 2
        $region40: #{discriminator_forward.1} parent=11 // pred_fallthru
          _
        // Predicated region
        $region41: #{discriminator_forward.1} parent=11 // pred_check
          %p500 = pneg %p225
        $region42: #{discriminator_forward.1} parent=11 // pred_check_branch
          %502 = sbr.rel (%p500) target = $region44
        $region43: #{discriminator_forward.1} parent=11 // pred_region
          %504 = vsyncadd [#allocation14], 0
          %s505 = sshll.u32 %s8, 4
          %s506 = int_to_ptr.hbm [resolvable:$true] %s505
          %s507 = sshll.u32 [#allocation13], 4
          %s508 = int_to_ptr.vmem [resolvable:$true] %s507
          %513 = dma.hbm_to_vmem [thread:$0]  %s506, 12288, %s508, [#allocation14], 128, 128, 8
        $region44: #{discriminator_forward.1} parent=11 // pred_fallthru
          _
        // Predicated region
        $region45: #{discriminator_forward.1} parent=11 // pred_check
          %p514 = pneg %p246
        $region46: #{discriminator_forward.1} parent=11 // pred_check_branch
          %516 = sbr.rel (%p514) target = $region48
        $region47: #{discriminator_forward.1} parent=11 // pred_region
          %518 = vsyncadd [#allocation14], 0
          %s519 = sshll.u32 %s9, 4
          %s520 = int_to_ptr.hbm [resolvable:$true] %s519
          %s521 = sshll.u32 [#allocation15], 4
          %s522 = int_to_ptr.vmem [resolvable:$true] %s521
          %527 = dma.hbm_to_vmem [thread:$0]  %s520, 96, %s522, [#allocation14], 32, 32, 2
        $region48: #{discriminator_forward.1} parent=11 // pred_fallthru
          _
        // Predicated region
        $region49: #{discriminator_forward.1} parent=11 // pred_check
          %p528 = pneg %p267
        $region50: #{discriminator_forward.1} parent=11 // pred_check_branch
          %530 = sbr.rel (%p528) target = $region52
        $region51: #{discriminator_forward.1} parent=11 // pred_region
          _
        $region52: #{discriminator_forward.1} parent=11 // pred_fallthru
          _
        // Predicated region
        $region53: #{discriminator_forward.1} parent=11 // pred_check
          %p531 = pneg %p288
        $region54: #{discriminator_forward.1} parent=11 // pred_check_branch
          %533 = sbr.rel (%p531) target = $region56
        $region55: #{discriminator_forward.1} parent=11 // pred_region
          %535 = vsyncadd [#allocation17], 0
          %s536 = sshll.u32 %s11, 4
          %s537 = int_to_ptr.hbm [resolvable:$true] %s536
          %s538 = sshll.u32 [#allocation16], 4
          %s539 = int_to_ptr.vmem [resolvable:$true] %s538
          %544 = dma.hbm_to_vmem [thread:$0]  %s537, 12288, %s539, [#allocation17], 128, 128, 8
        $region56: #{discriminator_forward.1} parent=11 // pred_fallthru
          _
        // Predicated region
        $region57: #{discriminator_forward.1} parent=11 // pred_check
          %p545 = pneg %p309
        $region58: #{discriminator_forward.1} parent=11 // pred_check_branch
          %547 = sbr.rel (%p545) target = $region60
        $region59: #{discriminator_forward.1} parent=11 // pred_region
          _
        $region60: #{discriminator_forward.1} parent=11 // pred_fallthru
          _
        // Predicated region
        $region61: #{discriminator_forward.1} parent=11 // pred_check
          %p548 = pneg %p330
        $region62: #{discriminator_forward.1} parent=11 // pred_check_branch
          %550 = sbr.rel (%p548) target = $region64
        $region63: #{discriminator_forward.1} parent=11 // pred_region
          _
        $region64: #{discriminator_forward.1} parent=11 // pred_fallthru
          _
        // Predicated region
        $region65: #{discriminator_forward.1} parent=11 // pred_check
          %p551 = pneg %p351
        $region66: #{discriminator_forward.1} parent=11 // pred_check_branch
          %553 = sbr.rel (%p551) target = $region68
        $region67: #{discriminator_forward.1} parent=11 // pred_region
          %555 = vsyncadd [#allocation17], 0
          %s556 = sshll.u32 %s14, 4
          %s557 = int_to_ptr.hbm [resolvable:$true] %s556
          %s558 = sshll.u32 [#allocation18], 4
          %s559 = int_to_ptr.vmem [resolvable:$true] %s558
          %564 = dma.hbm_to_vmem [thread:$0]  %s557, 4096, %s559, [#allocation17], 64, 64, 4
        $region68: #{discriminator_forward.1} parent=11 // pred_fallthru
          _
        // Predicated region
        $region69: #{discriminator_forward.1} parent=11 // pred_check
          %p565 = pneg %p372
        $region70: #{discriminator_forward.1} parent=11 // pred_check_branch
          %567 = sbr.rel (%p565) target = $region72
        $region71: #{discriminator_forward.1} parent=11 // pred_region
          %569 = vsyncadd [#allocation20], 0
          %s571 = sshll.u32 %s15, 4
          %s572 = int_to_ptr.hbm [resolvable:$true] %s571
          %s573 = sshll.u32 [#allocation19], 4
          %s574 = int_to_ptr.vmem [resolvable:$true] %s573
          %576 = dma.hbm_to_vmem [thread:$0]  %s572, 16, %s574, [#allocation20]
        $region72: #{discriminator_forward.1} parent=11 // pred_fallthru
          _
      $region12: #{discriminator_forward.1} parent=5 // pred_fallthru
        _
      %p577 = scmp.lt.s32.totalorder %s31, 2
      // Predicated region
      $region73: #{discriminator_forward.1} parent=5 // pred_check
        %p578 = pneg %p577
      $region74: #{discriminator_forward.1} parent=5 // pred_check_branch
        %580 = sbr.rel (%p578) target = $region76
      $region75: #{discriminator_forward.1} parent=5 // pred_region
        // Predicated region
        $region77: #{discriminator_forward.1} parent=75 // pred_check
          %p581 = pneg %p51
        $region78: #{discriminator_forward.1} parent=75 // pred_check_branch
          %583 = sbr.rel (%p581) target = $region80
        $region79: #{discriminator_forward.1} parent=75 // pred_region
          %s584 = sand.u32 %s41, 1
          %s585 = scalar_lea.sflag [#allocation3], %s584
          %s586 = sand.u32 %s41, 1
          %s587 = smul.addr %s586, 32
          %s588 = scalar_lea.vmem [#allocation2], %s587
          %590 = vsyncadd %s585, 0
          %s591 = smul.addr %s31, 4
          %s592 = smul.addr %s591, 8
          %s593 = scalar_lea.hbm %s0, %s592
          %s594 = sshll.u32 %s593, 4
          %s595 = int_to_ptr.hbm [resolvable:$true] %s594
          %s596 = sshll.u32 %s588, 4
          %s597 = int_to_ptr.vmem [resolvable:$true] %s596
          %602 = dma.hbm_to_vmem [thread:$0]  %s595, 512, %s597, %s585, 128, 128, 8
        $region80: #{discriminator_forward.1} parent=75 // pred_fallthru
          _
      $region76: #{discriminator_forward.1} parent=5 // pred_fallthru
        _
      %p603 = scmp.le.s32.totalorder 1, %s31
      %p604 = scmp.lt.s32.totalorder %s31, 3
      %p605 = pnand %p603, %p604
      %p606 = pneg %p605
      // Predicated region
      $region81: #{discriminator_forward.1} parent=5 // pred_check
        _
      $region82: #{discriminator_forward.1} parent=5 // pred_check_branch
        %608 = sbr.rel (%p605) target = $region84
      $region83: #{discriminator_forward.1} parent=5 // pred_region
        %s609 = ssub.s32 %s31, 1
        %s610 = sand.u32 %s44, 1
        %s611 = scalar_lea.sflag [#allocation3], %s610
        %s612 = sand.u32 %s44, 1
        %s613 = smul.addr %s612, 32
        %s614 = scalar_lea.vmem [#allocation2], %s613
        // Predicated region
        $region85: #{discriminator_forward.1} parent=83 // pred_check
          %p615 = pneg %p57
        $region86: #{discriminator_forward.1} parent=83 // pred_check_branch
          %617 = sbr.rel (%p615) target = $region88
        $region87: #{discriminator_forward.1} parent=83 // pred_region
          %619 = dma.done %s611, 512
        $region88: #{discriminator_forward.1} parent=83 // pred_fallthru
          _
        // Predicated region
        $region89: #{discriminator_forward.1} parent=83 // pred_check
          %p620 = pneg %p78
        $region90: #{discriminator_forward.1} parent=83 // pred_check_branch
          %622 = sbr.rel (%p620) target = $region92
        $region91: #{discriminator_forward.1} parent=83 // pred_region
          %624 = dma.done [#allocation5], 384
        $region92: #{discriminator_forward.1} parent=83 // pred_fallthru
          _
        // Predicated region
        $region93: #{discriminator_forward.1} parent=83 // pred_check
          %p625 = pneg %p99
        $region94: #{discriminator_forward.1} parent=83 // pred_check_branch
          %627 = sbr.rel (%p625) target = $region96
        $region95: #{discriminator_forward.1} parent=83 // pred_region
          %629 = dma.done [#allocation5], 1536
        $region96: #{discriminator_forward.1} parent=83 // pred_fallthru
          _
        // Predicated region
        $region97: #{discriminator_forward.1} parent=83 // pred_check
          %p630 = pneg %p120
        $region98: #{discriminator_forward.1} parent=83 // pred_check_branch
          %632 = sbr.rel (%p630) target = $region100
        $region99: #{discriminator_forward.1} parent=83 // pred_region
          %634 = dma.done [#allocation8], 96
        $region100: #{discriminator_forward.1} parent=83 // pred_fallthru
          _
        // Predicated region
        $region101: #{discriminator_forward.1} parent=83 // pred_check
          %p635 = pneg %p141
        $region102: #{discriminator_forward.1} parent=83 // pred_check_branch
          %637 = sbr.rel (%p635) target = $region104
        $region103: #{discriminator_forward.1} parent=83 // pred_region
          %639 = dma.done [#allocation8], 192
        $region104: #{discriminator_forward.1} parent=83 // pred_fallthru
          _
        // Predicated region
        $region105: #{discriminator_forward.1} parent=83 // pred_check
          %p640 = pneg %p162
        $region106: #{discriminator_forward.1} parent=83 // pred_check_branch
          %642 = sbr.rel (%p640) target = $region108
        $region107: #{discriminator_forward.1} parent=83 // pred_region
          %644 = dma.done [#allocation11], 12288
        $region108: #{discriminator_forward.1} parent=83 // pred_fallthru
          _
        // Predicated region
        $region109: #{discriminator_forward.1} parent=83 // pred_check
          %p645 = pneg %p204
        $region110: #{discriminator_forward.1} parent=83 // pred_check_branch
          %647 = sbr.rel (%p645) target = $region112
        $region111: #{discriminator_forward.1} parent=83 // pred_region
          %649 = dma.done [#allocation11], 96
        $region112: #{discriminator_forward.1} parent=83 // pred_fallthru
          _
        // Predicated region
        $region113: #{discriminator_forward.1} parent=83 // pred_check
          %p650 = pneg %p225
        $region114: #{discriminator_forward.1} parent=83 // pred_check_branch
          %652 = sbr.rel (%p650) target = $region116
        $region115: #{discriminator_forward.1} parent=83 // pred_region
          %654 = dma.done [#allocation14], 12288
        $region116: #{discriminator_forward.1} parent=83 // pred_fallthru
          _
        // Predicated region
        $region117: #{discriminator_forward.1} parent=83 // pred_check
          %p655 = pneg %p246
        $region118: #{discriminator_forward.1} parent=83 // pred_check_branch
          %657 = sbr.rel (%p655) target = $region120
        $region119: #{discriminator_forward.1} parent=83 // pred_region
          %659 = dma.done [#allocation14], 96
        $region120: #{discriminator_forward.1} parent=83 // pred_fallthru
          _
        // Predicated region
        $region121: #{discriminator_forward.1} parent=83 // pred_check
          %p660 = pneg %p288
        $region122: #{discriminator_forward.1} parent=83 // pred_check_branch
          %662 = sbr.rel (%p660) target = $region124
        $region123: #{discriminator_forward.1} parent=83 // pred_region
          %664 = dma.done [#allocation17], 12288
        $region124: #{discriminator_forward.1} parent=83 // pred_fallthru
          _
        // Predicated region
        $region125: #{discriminator_forward.1} parent=83 // pred_check
          %p665 = pneg %p351
        $region126: #{discriminator_forward.1} parent=83 // pred_check_branch
          %667 = sbr.rel (%p665) target = $region128
        $region127: #{discriminator_forward.1} parent=83 // pred_region
          %669 = dma.done [#allocation17], 4096
        $region128: #{discriminator_forward.1} parent=83 // pred_fallthru
          _
        // Predicated region
        $region129: #{discriminator_forward.1} parent=83 // pred_check
          %p670 = pneg %p372
        $region130: #{discriminator_forward.1} parent=83 // pred_check_branch
          %672 = sbr.rel (%p670) target = $region132
        $region131: #{discriminator_forward.1} parent=83 // pred_region
          %674 = dma.done [#allocation20], 16
        $region132: #{discriminator_forward.1} parent=83 // pred_fallthru
          _
        %s675 = sand.u32 %s44, 1
        %s676 = scalar_lea.sflag [#allocation3], %s675
        %s677 = sand.u32 %s44, 1
        %s678 = smul.addr %s677, 32
        %s679 = scalar_lea.vmem [#allocation2], %s678
        %p680 = pneg %p57
        %p681 = pneg %p54
        %p682 = pneg %p78
        %p683 = pneg %p75
        %p684 = pneg %p99
        %p685 = pneg %p96
        %p686 = pneg %p120
        %p687 = pneg %p117
        %p688 = pneg %p141
        %p689 = pneg %p138
        %p690 = pneg %p162
        %p691 = pneg %p159
        %p692 = pneg %p183
        %p693 = pneg %p180
        %p694 = pneg %p204
        %p695 = pneg %p201
        %p696 = pneg %p225
        %p697 = pneg %p222
        %p698 = pneg %p246
        %p699 = pneg %p243
        %p700 = pneg %p267
        %p701 = pneg %p264
        %p702 = pneg %p288
        %p703 = pneg %p285
        %p704 = pneg %p309
        %p705 = pneg %p306
        %p706 = pneg %p330
        %p707 = pneg %p327
        %p708 = pneg %p351
        %p709 = pneg %p348
        %p710 = pneg %p372
        %p711 = pneg %p369
        %p712 = pneg %p398
        %p713 = pneg %p395
        %p714 = scmp.lt.s32.totalorder %s36, 1
        %s715 = scalar_select %p714, %s36, 1
        %s716 = scalar_lea.vmem %s16, %s715
        %p717 = scmp.lt.s32.totalorder %s36, 1
        %s718 = scalar_select %p717, %s36, 1
        %s719 = scalar_lea.vmem %s16, %s718
        %v721 = vld [vmem:[%s614] sm:$0xff]
        %v722 = vld [vmem:[%s614 + $0x8] sm:$0xff]
        %v723 = vld [vmem:[%s614 + $0x10] sm:$0xff]
        %v724 = vld [vmem:[%s614 + $0x18] sm:$0xff]
        %v725 = vpack.c.bf16 %v722, %v721
        %v726 = vpack.c.bf16 %v724, %v723
        %v727 = vld [vmem:[#allocation4] sm:$0xf]
        %v728 = vld [vmem:[#allocation4 + $0x4] sm:$0xf]
        %v731 = vunpack.c.l.b16 %v727
        %v732 = vunpack.c.l.b16 %v728
        %v733 = vpack.c.b16 %v732, %v731
        %vm734 = vcmask 261120
        %v736 = vsel %vm734, %v733, 0
        %738 = vmatpush.bf16.msra.mxu0 0
        %739 = vmatpush.bf16.msra.mxu0 0
        %740 = vmatpush.bf16.msra.mxu0 0
        %741 = vmatpush.bf16.msra.mxu0 0
        %742 = vmatpush.bf16.msra.mxu0 0
        %743 = vmatpush.bf16.msra.mxu0 0
        %744 = vmatpush.bf16.msra.mxu0 %v726
        %745 = vmatpush.bf16.msra.mxu0 %v725
        %746 = vmatmul.bf16.gmra.mxu0 %v736
        %v747 = vpop.f32.mrf.mxu0
        %v748 = vadd.f32 0.0, %v747
        %v749 = vpop.f32.mrf.mxu0
        %v750 = vadd.f32 0.0, %v749
        %751 = vdwg.mxu0
        %v752 = vpack.c.bf16 %v750, %v748
        %v753 = vld [vmem:[#allocation6] sm:$0xff]
        %v754 = vld [vmem:[#allocation6 + $0x8] sm:$0xff]
        %v755 = vld [vmem:[#allocation6 + $0x10] sm:$0xff]
        %v756 = vld [vmem:[#allocation6 + $0x18] sm:$0xff]
        %s757 = scalar_lea.vmem [#allocation4], 8
        %v758 = vld [vmem:[%s757] sm:$0xf]
        %v759 = vld [vmem:[%s757 + $0x4] sm:$0xf]
        %v762 = vunpack.c.l.b16 %v758
        %v763 = vunpack.c.l.b16 %v759
        %v764 = vpack.c.b16 %v763, %v762
        %v766 = vsel %vm734, %v764, 0
        %768 = vmatpush.bf16.msra.mxu0 0
        %769 = vmatpush.bf16.msra.mxu0 0
        %770 = vmatpush.bf16.msra.mxu0 0
        %771 = vmatpush.bf16.msra.mxu0 0
        %772 = vmatpush.bf16.msra.mxu0 0
        %773 = vmatpush.bf16.msra.mxu0 0
        %774 = vmatpush.bf16.msra.mxu0 %v726
        %775 = vmatpush.bf16.msra.mxu0 %v725
        %776 = vmatmul.bf16.gmra.mxu0 %v766
        %v777 = vpop.f32.mrf.mxu0
        %v778 = vadd.f32 0.0, %v777
        %v779 = vpop.f32.mrf.mxu0
        %v780 = vadd.f32 0.0, %v779
        %781 = vdwg.mxu0
        %v782 = vpack.c.bf16 %v780, %v778
        %s783 = scalar_lea.vmem [#allocation6], 32
        %v784 = vld [vmem:[%s783] sm:$0xff]
        %v785 = vld [vmem:[%s783 + $0x8] sm:$0xff]
        %v786 = vld [vmem:[%s783 + $0x10] sm:$0xff]
        %v787 = vld [vmem:[%s783 + $0x18] sm:$0xff]
        %v792 = vunpack.c.l.b16 %v784
        %v793 = vunpack.c.h.b16 %v784
        %v794 = vunpack.c.l.b16 %v785
        %v795 = vunpack.c.h.b16 %v785
        %v796 = vunpack.c.l.b16 %v786
        %v797 = vunpack.c.h.b16 %v786
        %v798 = vunpack.c.l.b16 %v787
        %v799 = vunpack.c.h.b16 %v787
        %v800 = vpack.c.b16 %v794, %v792
        %v801 = vpack.c.b16 %v795, %v793
        %v802 = vpack.c.b16 %v798, %v796
        %v803 = vpack.c.b16 %v799, %v797
        %v809 = vsel %vm734, %v782, 0
        %811 = vmatpush.bf16.msra.mxu0 0
        %812 = vmatpush.bf16.msra.mxu0 0
        %813 = vmatpush.bf16.msra.mxu0 0
        %814 = vmatpush.bf16.msra.mxu0 0
        %815 = vmatpush.bf16.msra.mxu0 0
        %816 = vmatpush.bf16.msra.mxu0 0
        %817 = vmatpush.bf16.msra.mxu0 %v802
        %818 = vmatpush.bf16.msra.mxu0 %v800
        %819 = vmatmul.bf16.gmra.mxu0 %v809
        %v820 = vpop.f32.mrf.mxu0
        %v821 = vadd.f32 0.0, %v820
        %v822 = vpop.f32.mrf.mxu0
        %v823 = vadd.f32 0.0, %v822
        %824 = vdwg.mxu0
        %825 = vmatpush.bf16.msra.mxu0 0
        %826 = vmatpush.bf16.msra.mxu0 0
        %827 = vmatpush.bf16.msra.mxu0 0
        %828 = vmatpush.bf16.msra.mxu0 0
        %829 = vmatpush.bf16.msra.mxu0 0
        %830 = vmatpush.bf16.msra.mxu0 0
        %831 = vmatpush.bf16.msra.mxu0 %v803
        %832 = vmatpush.bf16.msra.mxu0 %v801
        %833 = vmatmul.bf16.gmra.mxu0 %v809
        %v834 = vpop.f32.mrf.mxu0
        %v835 = vadd.f32 0.0, %v834
        %v836 = vpop.f32.mrf.mxu0
        %v837 = vadd.f32 0.0, %v836
        %838 = vdwg.mxu0
        %v843 = vunpack.c.l.b16 %v753
        %v844 = vunpack.c.h.b16 %v753
        %v845 = vunpack.c.l.b16 %v754
        %v846 = vunpack.c.h.b16 %v754
        %v847 = vunpack.c.l.b16 %v755
        %v848 = vunpack.c.h.b16 %v755
        %v849 = vunpack.c.l.b16 %v756
        %v850 = vunpack.c.h.b16 %v756
        %v851 = vpack.c.b16 %v845, %v843
        %v852 = vpack.c.b16 %v846, %v844
        %v853 = vpack.c.b16 %v849, %v847
        %v854 = vpack.c.b16 %v850, %v848
        %v860 = vsel %vm734, %v752, 0
        %862 = vmatpush.bf16.msra.mxu0 0
        %863 = vmatpush.bf16.msra.mxu0 0
        %864 = vmatpush.bf16.msra.mxu0 0
        %865 = vmatpush.bf16.msra.mxu0 0
        %866 = vmatpush.bf16.msra.mxu0 0
        %867 = vmatpush.bf16.msra.mxu0 0
        %868 = vmatpush.bf16.msra.mxu0 %v853
        %869 = vmatpush.bf16.msra.mxu0 %v851
        %870 = vmatmul.bf16.gmra.mxu0 %v860
        %v871 = vpop.f32.mrf.mxu0
        %v872 = vadd.f32 %v821, %v871
        %v873 = vpop.f32.mrf.mxu0
        %v874 = vadd.f32 %v823, %v873
        %875 = vdwg.mxu0
        %876 = vmatpush.bf16.msra.mxu0 0
        %877 = vmatpush.bf16.msra.mxu0 0
        %878 = vmatpush.bf16.msra.mxu0 0
        %879 = vmatpush.bf16.msra.mxu0 0
        %880 = vmatpush.bf16.msra.mxu0 0
        %881 = vmatpush.bf16.msra.mxu0 0
        %882 = vmatpush.bf16.msra.mxu0 %v854
        %883 = vmatpush.bf16.msra.mxu0 %v852
        %884 = vmatmul.bf16.gmra.mxu0 %v860
        %v885 = vpop.f32.mrf.mxu0
        %v886 = vadd.f32 %v835, %v885
        %v887 = vpop.f32.mrf.mxu0
        %v888 = vadd.f32 %v837, %v887
        %889 = vdwg.mxu0
        %s890 = scalar_lea.vmem [#allocation4], 16
        %v891 = vld [vmem:[%s890] sm:$0xf]
        %v892 = vld [vmem:[%s890 + $0x4] sm:$0xf]
        %v895 = vunpack.c.l.b16 %v891
        %v896 = vunpack.c.l.b16 %v892
        %v897 = vpack.c.b16 %v896, %v895
        %v899 = vsel %vm734, %v897, 0
        %901 = vmatpush.bf16.msra.mxu0 0
        %902 = vmatpush.bf16.msra.mxu0 0
        %903 = vmatpush.bf16.msra.mxu0 0
        %904 = vmatpush.bf16.msra.mxu0 0
        %905 = vmatpush.bf16.msra.mxu0 0
        %906 = vmatpush.bf16.msra.mxu0 0
        %907 = vmatpush.bf16.msra.mxu0 %v726
        %908 = vmatpush.bf16.msra.mxu0 %v725
        %909 = vmatmul.bf16.gmra.mxu0 %v899
        %v910 = vpop.f32.mrf.mxu0
        %v911 = vadd.f32 0.0, %v910
        %v912 = vpop.f32.mrf.mxu0
        %v913 = vadd.f32 0.0, %v912
        %914 = vdwg.mxu0
        %v915 = vpack.c.bf16 %v913, %v911
        %s916 = scalar_lea.vmem [#allocation6], 64
        %v917 = vld [vmem:[%s916] sm:$0xff]
        %v918 = vld [vmem:[%s916 + $0x8] sm:$0xff]
        %v919 = vld [vmem:[%s916 + $0x10] sm:$0xff]
        %v920 = vld [vmem:[%s916 + $0x18] sm:$0xff]
        %v925 = vunpack.c.l.b16 %v917
        %v926 = vunpack.c.h.b16 %v917
        %v927 = vunpack.c.l.b16 %v918
        %v928 = vunpack.c.h.b16 %v918
        %v929 = vunpack.c.l.b16 %v919
        %v930 = vunpack.c.h.b16 %v919
        %v931 = vunpack.c.l.b16 %v920
        %v932 = vunpack.c.h.b16 %v920
        %v933 = vpack.c.b16 %v927, %v925
        %v934 = vpack.c.b16 %v928, %v926
        %v935 = vpack.c.b16 %v931, %v929
        %v936 = vpack.c.b16 %v932, %v930
        %v942 = vsel %vm734, %v915, 0
        %944 = vmatpush.bf16.msra.mxu0 0
        %945 = vmatpush.bf16.msra.mxu0 0
        %946 = vmatpush.bf16.msra.mxu0 0
        %947 = vmatpush.bf16.msra.mxu0 0
        %948 = vmatpush.bf16.msra.mxu0 0
        %949 = vmatpush.bf16.msra.mxu0 0
        %950 = vmatpush.bf16.msra.mxu0 %v935
        %951 = vmatpush.bf16.msra.mxu0 %v933
        %952 = vmatmul.bf16.gmra.mxu0 %v942
        %v953 = vpop.f32.mrf.mxu0
        %v954 = vadd.f32 0.0, %v953
        %v955 = vpop.f32.mrf.mxu0
        %v956 = vadd.f32 0.0, %v955
        %957 = vdwg.mxu0
        %958 = vmatpush.bf16.msra.mxu0 0
        %959 = vmatpush.bf16.msra.mxu0 0
        %960 = vmatpush.bf16.msra.mxu0 0
        %961 = vmatpush.bf16.msra.mxu0 0
        %962 = vmatpush.bf16.msra.mxu0 0
        %963 = vmatpush.bf16.msra.mxu0 0
        %964 = vmatpush.bf16.msra.mxu0 %v936
        %965 = vmatpush.bf16.msra.mxu0 %v934
        %966 = vmatmul.bf16.gmra.mxu0 %v942
        %v967 = vpop.f32.mrf.mxu0
        %v968 = vadd.f32 0.0, %v967
        %v969 = vpop.f32.mrf.mxu0
        %v970 = vadd.f32 0.0, %v969
        %971 = vdwg.mxu0
        %v972 = vadd.f32 %v872, %v954
        %v973 = vadd.f32 %v886, %v968
        %v974 = vadd.f32 %v874, %v956
        %v975 = vadd.f32 %v888, %v970
        %v976 = vld [vmem:[#allocation7] sm:$0x3]
        %v978 = vperm.slane %v976, 0
        %v979 = vperm.slane %v976, 1
        %v982 = vadd.f32 %v972, %v978
        %v983 = vadd.f32 %v973, %v979
        %v984 = vadd.f32 %v974, %v978
        %v985 = vadd.f32 %v975, %v979
        %vm986 = vcmp.gt.f32.partialorder %v982, 0.0
        %vm987 = vcmp.gt.f32.partialorder %v983, 0.0
        %vm988 = vcmp.gt.f32.partialorder %v984, 0.0
        %vm989 = vcmp.gt.f32.partialorder %v985, 0.0
        %v990 = vmul.f32 %v982, 0.2
        %v991 = vmul.f32 %v983, 0.2
        %v992 = vmul.f32 %v984, 0.2
        %v993 = vmul.f32 %v985, 0.2
        %v994 = vsel %vm986, %v982, %v990
        %v995 = vsel %vm987, %v983, %v991
        %v996 = vsel %vm988, %v984, %v992
        %v997 = vsel %vm989, %v985, %v993
        %s998 = scalar_lea.vmem [#allocation7], 2
        %v999 = vld [vmem:[%s998] sm:$0x3]
        %v1001 = vperm.slane %v999, 0
        %v1002 = vperm.slane %v999, 1
        %v1005 = vmul.f32 %v994, %v1001
        %v1006 = vmul.f32 %v995, %v1002
        %v1007 = vmul.f32 %v996, %v1001
        %v1008 = vmul.f32 %v997, %v1002
        %s1009 = scalar_lea.vmem [#allocation7], 4
        %v1010 = vld [vmem:[%s1009] sm:$0x3]
        %v1012 = vperm.slane %v1010, 0
        %v1013 = vperm.slane %v1010, 1
        %v1016 = vadd.f32 %v1005, %v1012
        %v1017 = vadd.f32 %v1006, %v1013
        %v1018 = vadd.f32 %v1007, %v1012
        %v1019 = vadd.f32 %v1008, %v1013
        %v1020 = vpack.c.bf16 %v1018, %v1016
        %v1021 = vpack.c.bf16 %v1019, %v1017
        %v1022 = vld [vmem:[#allocation9] sm:$0xf]
        %vm1023 = vcmask 130048
        %v1025 = vsel %vm1023, %v1022, 0
        %1027 = vmatpush.bf16.msra.mxu0 0
        %1028 = vmatpush.bf16.msra.mxu0 0
        %1029 = vmatpush.bf16.msra.mxu0 0
        %1030 = vmatpush.bf16.msra.mxu0 0
        %1031 = vmatpush.bf16.msra.mxu0 0
        %1032 = vmatpush.bf16.msra.mxu0 0
        %1033 = vmatpush.bf16.msra.mxu0 0
        %1034 = vmatpush.bf16.msra.mxu0 %v1020
        %1035 = vmatmul.bf16.gmra.mxu0 %v1025
        %v1036 = vpop.f32.mrf.mxu0
        %v1037 = vadd.f32 0.0, %v1036
        %v1038 = vpop.f32.mrf.mxu0
        %1039 = vdwg.mxu0
        %1040 = vmatpush.bf16.msra.mxu0 0
        %1041 = vmatpush.bf16.msra.mxu0 0
        %1042 = vmatpush.bf16.msra.mxu0 0
        %1043 = vmatpush.bf16.msra.mxu0 0
        %1044 = vmatpush.bf16.msra.mxu0 0
        %1045 = vmatpush.bf16.msra.mxu0 0
        %1046 = vmatpush.bf16.msra.mxu0 0
        %1047 = vmatpush.bf16.msra.mxu0 %v1021
        %1048 = vmatmul.bf16.gmra.mxu0 %v1025
        %v1049 = vpop.f32.mrf.mxu0
        %v1050 = vadd.f32 0.0, %v1049
        %v1051 = vpop.f32.mrf.mxu0
        %1052 = vdwg.mxu0
        %v1053 = vpack.c.bf16 %v1037, %v1037
        %v1054 = vpack.c.bf16 %v1050, %v1050
        %v1055 = vld [vmem:[#allocation10] sm:$0xff]
        %v1056 = vld [vmem:[#allocation10 + $0x8] sm:$0xff]
        %v1057 = vld [vmem:[#allocation10 + $0x10] sm:$0xff]
        %v1058 = vld [vmem:[#allocation10 + $0x18] sm:$0xff]
        %v1059 = vld [vmem:[#allocation10 + $0x20] sm:$0xff]
        %v1060 = vld [vmem:[#allocation10 + $0x28] sm:$0xff]
        %v1061 = vld [vmem:[#allocation10 + $0x30] sm:$0xff]
        %v1062 = vld [vmem:[#allocation10 + $0x38] sm:$0xff]
        %v1063 = vld [vmem:[#allocation10 + $0x40] sm:$0xff]
        %v1064 = vld [vmem:[#allocation10 + $0x48] sm:$0xff]
        %v1065 = vld [vmem:[#allocation10 + $0x50] sm:$0xff]
        %v1066 = vld [vmem:[#allocation10 + $0x58] sm:$0xff]
        %v1067 = vld [vmem:[#allocation10 + $0x60] sm:$0xff]
        %v1068 = vld [vmem:[#allocation10 + $0x68] sm:$0xff]
        %v1069 = vld [vmem:[#allocation10 + $0x70] sm:$0xff]
        %v1070 = vld [vmem:[#allocation10 + $0x78] sm:$0xff]
        %v1071 = vld [vmem:[#allocation10 + $0x80] sm:$0xff]
        %v1072 = vld [vmem:[#allocation10 + $0x88] sm:$0xff]
        %v1073 = vld [vmem:[#allocation10 + $0x90] sm:$0xff]
        %v1074 = vld [vmem:[#allocation10 + $0x98] sm:$0xff]
        %v1075 = vld [vmem:[#allocation10 + $0xa0] sm:$0xff]
        %v1076 = vld [vmem:[#allocation10 + $0xa8] sm:$0xff]
        %v1077 = vld [vmem:[#allocation10 + $0xb0] sm:$0xff]
        %v1078 = vld [vmem:[#allocation10 + $0xb8] sm:$0xff]
        %v1079 = vld [vmem:[#allocation10 + $0xc0] sm:$0xff]
        %v1080 = vld [vmem:[#allocation10 + $0xc8] sm:$0xff]
        %v1081 = vld [vmem:[#allocation10 + $0xd0] sm:$0xff]
        %v1082 = vld [vmem:[#allocation10 + $0xd8] sm:$0xff]
        %v1083 = vld [vmem:[#allocation10 + $0xe0] sm:$0xff]
        %v1084 = vld [vmem:[#allocation10 + $0xe8] sm:$0xff]
        %v1085 = vld [vmem:[#allocation10 + $0xf0] sm:$0xff]
        %v1086 = vld [vmem:[#allocation10 + $0xf8] sm:$0xff]
        %s1087 = scalar_lea.vmem [#allocation9], 4
        %v1088 = vld [vmem:[%s1087] sm:$0xf]
        %v1090 = vsel %vm1023, %v1088, 0
        %1092 = vmatpush.bf16.msra.mxu0 0
        %1093 = vmatpush.bf16.msra.mxu0 0
        %1094 = vmatpush.bf16.msra.mxu0 0
        %1095 = vmatpush.bf16.msra.mxu0 0
        %1096 = vmatpush.bf16.msra.mxu0 0
        %1097 = vmatpush.bf16.msra.mxu0 0
        %1098 = vmatpush.bf16.msra.mxu0 0
        %1099 = vmatpush.bf16.msra.mxu0 %v1020
        %1100 = vmatmul.bf16.gmra.mxu0 %v1090
        %v1101 = vpop.f32.mrf.mxu0
        %v1102 = vadd.f32 0.0, %v1101
        %v1103 = vpop.f32.mrf.mxu0
        %1104 = vdwg.mxu0
        %1105 = vmatpush.bf16.msra.mxu0 0
        %1106 = vmatpush.bf16.msra.mxu0 0
        %1107 = vmatpush.bf16.msra.mxu0 0
        %1108 = vmatpush.bf16.msra.mxu0 0
        %1109 = vmatpush.bf16.msra.mxu0 0
        %1110 = vmatpush.bf16.msra.mxu0 0
        %1111 = vmatpush.bf16.msra.mxu0 0
        %1112 = vmatpush.bf16.msra.mxu0 %v1021
        %1113 = vmatmul.bf16.gmra.mxu0 %v1090
        %v1114 = vpop.f32.mrf.mxu0
        %v1115 = vadd.f32 0.0, %v1114
        %v1116 = vpop.f32.mrf.mxu0
        %1117 = vdwg.mxu0
        %v1118 = vpack.c.bf16 %v1102, %v1102
        %v1119 = vpack.c.bf16 %v1115, %v1115
        %s1120 = scalar_lea.vmem [#allocation10], 256
        %v1121 = vld [vmem:[%s1120] sm:$0xff]
        %v1122 = vld [vmem:[%s1120 + $0x8] sm:$0xff]
        %v1123 = vld [vmem:[%s1120 + $0x10] sm:$0xff]
        %v1124 = vld [vmem:[%s1120 + $0x18] sm:$0xff]
        %v1125 = vld [vmem:[%s1120 + $0x20] sm:$0xff]
        %v1126 = vld [vmem:[%s1120 + $0x28] sm:$0xff]
        %v1127 = vld [vmem:[%s1120 + $0x30] sm:$0xff]
        %v1128 = vld [vmem:[%s1120 + $0x38] sm:$0xff]
        %v1129 = vld [vmem:[%s1120 + $0x40] sm:$0xff]
        %v1130 = vld [vmem:[%s1120 + $0x48] sm:$0xff]
        %v1131 = vld [vmem:[%s1120 + $0x50] sm:$0xff]
        %v1132 = vld [vmem:[%s1120 + $0x58] sm:$0xff]
        %v1133 = vld [vmem:[%s1120 + $0x60] sm:$0xff]
        %v1134 = vld [vmem:[%s1120 + $0x68] sm:$0xff]
        %v1135 = vld [vmem:[%s1120 + $0x70] sm:$0xff]
        %v1136 = vld [vmem:[%s1120 + $0x78] sm:$0xff]
        %v1137 = vld [vmem:[%s1120 + $0x80] sm:$0xff]
        %v1138 = vld [vmem:[%s1120 + $0x88] sm:$0xff]
        %v1139 = vld [vmem:[%s1120 + $0x90] sm:$0xff]
        %v1140 = vld [vmem:[%s1120 + $0x98] sm:$0xff]
        %v1141 = vld [vmem:[%s1120 + $0xa0] sm:$0xff]
        %v1142 = vld [vmem:[%s1120 + $0xa8] sm:$0xff]
        %v1143 = vld [vmem:[%s1120 + $0xb0] sm:$0xff]
        %v1144 = vld [vmem:[%s1120 + $0xb8] sm:$0xff]
        %v1145 = vld [vmem:[%s1120 + $0xc0] sm:$0xff]
        %v1146 = vld [vmem:[%s1120 + $0xc8] sm:$0xff]
        %v1147 = vld [vmem:[%s1120 + $0xd0] sm:$0xff]
        %v1148 = vld [vmem:[%s1120 + $0xd8] sm:$0xff]
        %v1149 = vld [vmem:[%s1120 + $0xe0] sm:$0xff]
        %v1150 = vld [vmem:[%s1120 + $0xe8] sm:$0xff]
        %v1151 = vld [vmem:[%s1120 + $0xf0] sm:$0xff]
        %v1152 = vld [vmem:[%s1120 + $0xf8] sm:$0xff]
        %v1185 = vunpack.c.l.b16 %v1121
        %v1186 = vunpack.c.h.b16 %v1121
        %v1187 = vunpack.c.l.b16 %v1122
        %v1188 = vunpack.c.h.b16 %v1122
        %v1189 = vunpack.c.l.b16 %v1123
        %v1190 = vunpack.c.h.b16 %v1123
        %v1191 = vunpack.c.l.b16 %v1124
        %v1192 = vunpack.c.h.b16 %v1124
        %v1193 = vunpack.c.l.b16 %v1125
        %v1194 = vunpack.c.h.b16 %v1125
        %v1195 = vunpack.c.l.b16 %v1126
        %v1196 = vunpack.c.h.b16 %v1126
        %v1197 = vunpack.c.l.b16 %v1127
        %v1198 = vunpack.c.h.b16 %v1127
        %v1199 = vunpack.c.l.b16 %v1128
        %v1200 = vunpack.c.h.b16 %v1128
        %v1201 = vunpack.c.l.b16 %v1129
        %v1202 = vunpack.c.h.b16 %v1129
        %v1203 = vunpack.c.l.b16 %v1130
        %v1204 = vunpack.c.h.b16 %v1130
        %v1205 = vunpack.c.l.b16 %v1131
        %v1206 = vunpack.c.h.b16 %v1131
        %v1207 = vunpack.c.l.b16 %v1132
        %v1208 = vunpack.c.h.b16 %v1132
        %v1209 = vunpack.c.l.b16 %v1133
        %v1210 = vunpack.c.h.b16 %v1133
        %v1211 = vunpack.c.l.b16 %v1134
        %v1212 = vunpack.c.h.b16 %v1134
        %v1213 = vunpack.c.l.b16 %v1135
        %v1214 = vunpack.c.h.b16 %v1135
        %v1215 = vunpack.c.l.b16 %v1136
        %v1216 = vunpack.c.h.b16 %v1136
        %v1217 = vunpack.c.l.b16 %v1137
        %v1218 = vunpack.c.h.b16 %v1137
        %v1219 = vunpack.c.l.b16 %v1138
        %v1220 = vunpack.c.h.b16 %v1138
        %v1221 = vunpack.c.l.b16 %v1139
        %v1222 = vunpack.c.h.b16 %v1139
        %v1223 = vunpack.c.l.b16 %v1140
        %v1224 = vunpack.c.h.b16 %v1140
        %v1225 = vunpack.c.l.b16 %v1141
        %v1226 = vunpack.c.h.b16 %v1141
        %v1227 = vunpack.c.l.b16 %v1142
        %v1228 = vunpack.c.h.b16 %v1142
        %v1229 = vunpack.c.l.b16 %v1143
        %v1230 = vunpack.c.h.b16 %v1143
        %v1231 = vunpack.c.l.b16 %v1144
        %v1232 = vunpack.c.h.b16 %v1144
        %v1233 = vunpack.c.l.b16 %v1145
        %v1234 = vunpack.c.h.b16 %v1145
        %v1235 = vunpack.c.l.b16 %v1146
        %v1236 = vunpack.c.h.b16 %v1146
        %v1237 = vunpack.c.l.b16 %v1147
        %v1238 = vunpack.c.h.b16 %v1147
        %v1239 = vunpack.c.l.b16 %v1148
        %v1240 = vunpack.c.h.b16 %v1148
        %v1241 = vunpack.c.l.b16 %v1149
        %v1242 = vunpack.c.h.b16 %v1149
        %v1243 = vunpack.c.l.b16 %v1150
        %v1244 = vunpack.c.h.b16 %v1150
        %v1245 = vunpack.c.l.b16 %v1151
        %v1246 = vunpack.c.h.b16 %v1151
        %v1247 = vunpack.c.l.b16 %v1152
        %v1248 = vunpack.c.h.b16 %v1152
        %v1249 = vpack.c.b16 %v1187, %v1185
        %v1250 = vpack.c.b16 %v1188, %v1186
        %v1251 = vpack.c.b16 %v1191, %v1189
        %v1252 = vpack.c.b16 %v1192, %v1190
        %v1253 = vpack.c.b16 %v1195, %v1193
        %v1254 = vpack.c.b16 %v1196, %v1194
        %v1255 = vpack.c.b16 %v1199, %v1197
        %v1256 = vpack.c.b16 %v1200, %v1198
        %v1257 = vpack.c.b16 %v1203, %v1201
        %v1258 = vpack.c.b16 %v1204, %v1202
        %v1259 = vpack.c.b16 %v1207, %v1205
        %v1260 = vpack.c.b16 %v1208, %v1206
        %v1261 = vpack.c.b16 %v1211, %v1209
        %v1262 = vpack.c.b16 %v1212, %v1210
        %v1263 = vpack.c.b16 %v1215, %v1213
        %v1264 = vpack.c.b16 %v1216, %v1214
        %v1265 = vpack.c.b16 %v1219, %v1217
        %v1266 = vpack.c.b16 %v1220, %v1218
        %v1267 = vpack.c.b16 %v1223, %v1221
        %v1268 = vpack.c.b16 %v1224, %v1222
        %v1269 = vpack.c.b16 %v1227, %v1225
        %v1270 = vpack.c.b16 %v1228, %v1226
        %v1271 = vpack.c.b16 %v1231, %v1229
        %v1272 = vpack.c.b16 %v1232, %v1230
        %v1273 = vpack.c.b16 %v1235, %v1233
        %v1274 = vpack.c.b16 %v1236, %v1234
        %v1275 = vpack.c.b16 %v1239, %v1237
        %v1276 = vpack.c.b16 %v1240, %v1238
        %v1277 = vpack.c.b16 %v1243, %v1241
        %v1278 = vpack.c.b16 %v1244, %v1242
        %v1279 = vpack.c.b16 %v1247, %v1245
        %v1280 = vpack.c.b16 %v1248, %v1246
        %1313 = vmatpush.bf16.msra.mxu0 %v1263
        %1314 = vmatpush.bf16.msra.mxu0 %v1261
        %1315 = vmatpush.bf16.msra.mxu0 %v1259
        %1316 = vmatpush.bf16.msra.mxu0 %v1257
        %1317 = vmatpush.bf16.msra.mxu0 %v1255
        %1318 = vmatpush.bf16.msra.mxu0 %v1253
        %1319 = vmatpush.bf16.msra.mxu0 %v1251
        %1320 = vmatpush.bf16.msra.mxu0 %v1249
        %1321 = vmatmul.bf16.gmra.mxu0 %v1118
        %v1322 = vpop.f32.mrf.mxu0
        %v1323 = vadd.f32 0.0, %v1322
        %v1324 = vpop.f32.mrf.mxu0
        %1325 = vdwg.mxu0
        %1326 = vmatpush.bf16.msra.mxu0 %v1279
        %1327 = vmatpush.bf16.msra.mxu0 %v1277
        %1328 = vmatpush.bf16.msra.mxu0 %v1275
        %1329 = vmatpush.bf16.msra.mxu0 %v1273
        %1330 = vmatpush.bf16.msra.mxu0 %v1271
        %1331 = vmatpush.bf16.msra.mxu0 %v1269
        %1332 = vmatpush.bf16.msra.mxu0 %v1267
        %1333 = vmatpush.bf16.msra.mxu0 %v1265
        %1334 = vmatmul.bf16.gmra.mxu0 %v1119
        %v1335 = vpop.f32.mrf.mxu0
        %v1336 = vadd.f32 %v1323, %v1335
        %v1337 = vpop.f32.mrf.mxu0
        %1338 = vdwg.mxu0
        %1339 = vmatpush.bf16.msra.mxu0 %v1264
        %1340 = vmatpush.bf16.msra.mxu0 %v1262
        %1341 = vmatpush.bf16.msra.mxu0 %v1260
        %1342 = vmatpush.bf16.msra.mxu0 %v1258
        %1343 = vmatpush.bf16.msra.mxu0 %v1256
        %1344 = vmatpush.bf16.msra.mxu0 %v1254
        %1345 = vmatpush.bf16.msra.mxu0 %v1252
        %1346 = vmatpush.bf16.msra.mxu0 %v1250
        %1347 = vmatmul.bf16.gmra.mxu0 %v1118
        %v1348 = vpop.f32.mrf.mxu0
        %v1349 = vadd.f32 0.0, %v1348
        %v1350 = vpop.f32.mrf.mxu0
        %1351 = vdwg.mxu0
        %1352 = vmatpush.bf16.msra.mxu0 %v1280
        %1353 = vmatpush.bf16.msra.mxu0 %v1278
        %1354 = vmatpush.bf16.msra.mxu0 %v1276
        %1355 = vmatpush.bf16.msra.mxu0 %v1274
        %1356 = vmatpush.bf16.msra.mxu0 %v1272
        %1357 = vmatpush.bf16.msra.mxu0 %v1270
        %1358 = vmatpush.bf16.msra.mxu0 %v1268
        %1359 = vmatpush.bf16.msra.mxu0 %v1266
        %1360 = vmatmul.bf16.gmra.mxu0 %v1119
        %v1361 = vpop.f32.mrf.mxu0
        %v1362 = vadd.f32 %v1349, %v1361
        %v1363 = vpop.f32.mrf.mxu0
        %1364 = vdwg.mxu0
        %v1397 = vunpack.c.l.b16 %v1055
        %v1398 = vunpack.c.h.b16 %v1055
        %v1399 = vunpack.c.l.b16 %v1056
        %v1400 = vunpack.c.h.b16 %v1056
        %v1401 = vunpack.c.l.b16 %v1057
        %v1402 = vunpack.c.h.b16 %v1057
        %v1403 = vunpack.c.l.b16 %v1058
        %v1404 = vunpack.c.h.b16 %v1058
        %v1405 = vunpack.c.l.b16 %v1059
        %v1406 = vunpack.c.h.b16 %v1059
        %v1407 = vunpack.c.l.b16 %v1060
        %v1408 = vunpack.c.h.b16 %v1060
        %v1409 = vunpack.c.l.b16 %v1061
        %v1410 = vunpack.c.h.b16 %v1061
        %v1411 = vunpack.c.l.b16 %v1062
        %v1412 = vunpack.c.h.b16 %v1062
        %v1413 = vunpack.c.l.b16 %v1063
        %v1414 = vunpack.c.h.b16 %v1063
        %v1415 = vunpack.c.l.b16 %v1064
        %v1416 = vunpack.c.h.b16 %v1064
        %v1417 = vunpack.c.l.b16 %v1065
        %v1418 = vunpack.c.h.b16 %v1065
        %v1419 = vunpack.c.l.b16 %v1066
        %v1420 = vunpack.c.h.b16 %v1066
        %v1421 = vunpack.c.l.b16 %v1067
        %v1422 = vunpack.c.h.b16 %v1067
        %v1423 = vunpack.c.l.b16 %v1068
        %v1424 = vunpack.c.h.b16 %v1068
        %v1425 = vunpack.c.l.b16 %v1069
        %v1426 = vunpack.c.h.b16 %v1069
        %v1427 = vunpack.c.l.b16 %v1070
        %v1428 = vunpack.c.h.b16 %v1070
        %v1429 = vunpack.c.l.b16 %v1071
        %v1430 = vunpack.c.h.b16 %v1071
        %v1431 = vunpack.c.l.b16 %v1072
        %v1432 = vunpack.c.h.b16 %v1072
        %v1433 = vunpack.c.l.b16 %v1073
        %v1434 = vunpack.c.h.b16 %v1073
        %v1435 = vunpack.c.l.b16 %v1074
        %v1436 = vunpack.c.h.b16 %v1074
        %v1437 = vunpack.c.l.b16 %v1075
        %v1438 = vunpack.c.h.b16 %v1075
        %v1439 = vunpack.c.l.b16 %v1076
        %v1440 = vunpack.c.h.b16 %v1076
        %v1441 = vunpack.c.l.b16 %v1077
        %v1442 = vunpack.c.h.b16 %v1077
        %v1443 = vunpack.c.l.b16 %v1078
        %v1444 = vunpack.c.h.b16 %v1078
        %v1445 = vunpack.c.l.b16 %v1079
        %v1446 = vunpack.c.h.b16 %v1079
        %v1447 = vunpack.c.l.b16 %v1080
        %v1448 = vunpack.c.h.b16 %v1080
        %v1449 = vunpack.c.l.b16 %v1081
        %v1450 = vunpack.c.h.b16 %v1081
        %v1451 = vunpack.c.l.b16 %v1082
        %v1452 = vunpack.c.h.b16 %v1082
        %v1453 = vunpack.c.l.b16 %v1083
        %v1454 = vunpack.c.h.b16 %v1083
        %v1455 = vunpack.c.l.b16 %v1084
        %v1456 = vunpack.c.h.b16 %v1084
        %v1457 = vunpack.c.l.b16 %v1085
        %v1458 = vunpack.c.h.b16 %v1085
        %v1459 = vunpack.c.l.b16 %v1086
        %v1460 = vunpack.c.h.b16 %v1086
        %v1461 = vpack.c.b16 %v1399, %v1397
        %v1462 = vpack.c.b16 %v1400, %v1398
        %v1463 = vpack.c.b16 %v1403, %v1401
        %v1464 = vpack.c.b16 %v1404, %v1402
        %v1465 = vpack.c.b16 %v1407, %v1405
        %v1466 = vpack.c.b16 %v1408, %v1406
        %v1467 = vpack.c.b16 %v1411, %v1409
        %v1468 = vpack.c.b16 %v1412, %v1410
        %v1469 = vpack.c.b16 %v1415, %v1413
        %v1470 = vpack.c.b16 %v1416, %v1414
        %v1471 = vpack.c.b16 %v1419, %v1417
        %v1472 = vpack.c.b16 %v1420, %v1418
        %v1473 = vpack.c.b16 %v1423, %v1421
        %v1474 = vpack.c.b16 %v1424, %v1422
        %v1475 = vpack.c.b16 %v1427, %v1425
        %v1476 = vpack.c.b16 %v1428, %v1426
        %v1477 = vpack.c.b16 %v1431, %v1429
        %v1478 = vpack.c.b16 %v1432, %v1430
        %v1479 = vpack.c.b16 %v1435, %v1433
        %v1480 = vpack.c.b16 %v1436, %v1434
        %v1481 = vpack.c.b16 %v1439, %v1437
        %v1482 = vpack.c.b16 %v1440, %v1438
        %v1483 = vpack.c.b16 %v1443, %v1441
        %v1484 = vpack.c.b16 %v1444, %v1442
        %v1485 = vpack.c.b16 %v1447, %v1445
        %v1486 = vpack.c.b16 %v1448, %v1446
        %v1487 = vpack.c.b16 %v1451, %v1449
        %v1488 = vpack.c.b16 %v1452, %v1450
        %v1489 = vpack.c.b16 %v1455, %v1453
        %v1490 = vpack.c.b16 %v1456, %v1454
        %v1491 = vpack.c.b16 %v1459, %v1457
        %v1492 = vpack.c.b16 %v1460, %v1458
        %1525 = vmatpush.bf16.msra.mxu0 %v1475
        %1526 = vmatpush.bf16.msra.mxu0 %v1473
        %1527 = vmatpush.bf16.msra.mxu0 %v1471
        %1528 = vmatpush.bf16.msra.mxu0 %v1469
        %1529 = vmatpush.bf16.msra.mxu0 %v1467
        %1530 = vmatpush.bf16.msra.mxu0 %v1465
        %1531 = vmatpush.bf16.msra.mxu0 %v1463
        %1532 = vmatpush.bf16.msra.mxu0 %v1461
        %1533 = vmatmul.bf16.gmra.mxu0 %v1053
        %v1534 = vpop.f32.mrf.mxu0
        %v1535 = vadd.f32 %v1336, %v1534
        %v1536 = vpop.f32.mrf.mxu0
        %1537 = vdwg.mxu0
        %1538 = vmatpush.bf16.msra.mxu0 %v1491
        %1539 = vmatpush.bf16.msra.mxu0 %v1489
        %1540 = vmatpush.bf16.msra.mxu0 %v1487
        %1541 = vmatpush.bf16.msra.mxu0 %v1485
        %1542 = vmatpush.bf16.msra.mxu0 %v1483
        %1543 = vmatpush.bf16.msra.mxu0 %v1481
        %1544 = vmatpush.bf16.msra.mxu0 %v1479
        %1545 = vmatpush.bf16.msra.mxu0 %v1477
        %1546 = vmatmul.bf16.gmra.mxu0 %v1054
        %v1547 = vpop.f32.mrf.mxu0
        %v1548 = vadd.f32 %v1535, %v1547
        %v1549 = vpop.f32.mrf.mxu0
        %1550 = vdwg.mxu0
        %1551 = vmatpush.bf16.msra.mxu0 %v1476
        %1552 = vmatpush.bf16.msra.mxu0 %v1474
        %1553 = vmatpush.bf16.msra.mxu0 %v1472
        %1554 = vmatpush.bf16.msra.mxu0 %v1470
        %1555 = vmatpush.bf16.msra.mxu0 %v1468
        %1556 = vmatpush.bf16.msra.mxu0 %v1466
        %1557 = vmatpush.bf16.msra.mxu0 %v1464
        %1558 = vmatpush.bf16.msra.mxu0 %v1462
        %1559 = vmatmul.bf16.gmra.mxu0 %v1053
        %v1560 = vpop.f32.mrf.mxu0
        %v1561 = vadd.f32 %v1362, %v1560
        %v1562 = vpop.f32.mrf.mxu0
        %1563 = vdwg.mxu0
        %1564 = vmatpush.bf16.msra.mxu0 %v1492
        %1565 = vmatpush.bf16.msra.mxu0 %v1490
        %1566 = vmatpush.bf16.msra.mxu0 %v1488
        %1567 = vmatpush.bf16.msra.mxu0 %v1486
        %1568 = vmatpush.bf16.msra.mxu0 %v1484
        %1569 = vmatpush.bf16.msra.mxu0 %v1482
        %1570 = vmatpush.bf16.msra.mxu0 %v1480
        %1571 = vmatpush.bf16.msra.mxu0 %v1478
        %1572 = vmatmul.bf16.gmra.mxu0 %v1054
        %v1573 = vpop.f32.mrf.mxu0
        %v1574 = vadd.f32 %v1561, %v1573
        %v1575 = vpop.f32.mrf.mxu0
        %1576 = vdwg.mxu0
        %s1577 = scalar_lea.vmem [#allocation9], 8
        %v1578 = vld [vmem:[%s1577] sm:$0xf]
        %v1580 = vsel %vm1023, %v1578, 0
        %1582 = vmatpush.bf16.msra.mxu0 0
        %1583 = vmatpush.bf16.msra.mxu0 0
        %1584 = vmatpush.bf16.msra.mxu0 0
        %1585 = vmatpush.bf16.msra.mxu0 0
        %1586 = vmatpush.bf16.msra.mxu0 0
        %1587 = vmatpush.bf16.msra.mxu0 0
        %1588 = vmatpush.bf16.msra.mxu0 0
        %1589 = vmatpush.bf16.msra.mxu0 %v1020
        %1590 = vmatmul.bf16.gmra.mxu0 %v1580
        %v1591 = vpop.f32.mrf.mxu0
        %v1592 = vadd.f32 0.0, %v1591
        %v1593 = vpop.f32.mrf.mxu0
        %1594 = vdwg.mxu0
        %1595 = vmatpush.bf16.msra.mxu0 0
        %1596 = vmatpush.bf16.msra.mxu0 0
        %1597 = vmatpush.bf16.msra.mxu0 0
        %1598 = vmatpush.bf16.msra.mxu0 0
        %1599 = vmatpush.bf16.msra.mxu0 0
        %1600 = vmatpush.bf16.msra.mxu0 0
        %1601 = vmatpush.bf16.msra.mxu0 0
        %1602 = vmatpush.bf16.msra.mxu0 %v1021
        %1603 = vmatmul.bf16.gmra.mxu0 %v1580
        %v1604 = vpop.f32.mrf.mxu0
        %v1605 = vadd.f32 0.0, %v1604
        %v1606 = vpop.f32.mrf.mxu0
        %1607 = vdwg.mxu0
        %v1608 = vpack.c.bf16 %v1592, %v1592
        %v1609 = vpack.c.bf16 %v1605, %v1605
        %s1610 = scalar_lea.vmem [#allocation10], 512
        %v1611 = vld [vmem:[%s1610] sm:$0xff]
        %v1612 = vld [vmem:[%s1610 + $0x8] sm:$0xff]
        %v1613 = vld [vmem:[%s1610 + $0x10] sm:$0xff]
        %v1614 = vld [vmem:[%s1610 + $0x18] sm:$0xff]
        %v1615 = vld [vmem:[%s1610 + $0x20] sm:$0xff]
        %v1616 = vld [vmem:[%s1610 + $0x28] sm:$0xff]
        %v1617 = vld [vmem:[%s1610 + $0x30] sm:$0xff]
        %v1618 = vld [vmem:[%s1610 + $0x38] sm:$0xff]
        %v1619 = vld [vmem:[%s1610 + $0x40] sm:$0xff]
        %v1620 = vld [vmem:[%s1610 + $0x48] sm:$0xff]
        %v1621 = vld [vmem:[%s1610 + $0x50] sm:$0xff]
        %v1622 = vld [vmem:[%s1610 + $0x58] sm:$0xff]
        %v1623 = vld [vmem:[%s1610 + $0x60] sm:$0xff]
        %v1624 = vld [vmem:[%s1610 + $0x68] sm:$0xff]
        %v1625 = vld [vmem:[%s1610 + $0x70] sm:$0xff]
        %v1626 = vld [vmem:[%s1610 + $0x78] sm:$0xff]
        %v1627 = vld [vmem:[%s1610 + $0x80] sm:$0xff]
        %v1628 = vld [vmem:[%s1610 + $0x88] sm:$0xff]
        %v1629 = vld [vmem:[%s1610 + $0x90] sm:$0xff]
        %v1630 = vld [vmem:[%s1610 + $0x98] sm:$0xff]
        %v1631 = vld [vmem:[%s1610 + $0xa0] sm:$0xff]
        %v1632 = vld [vmem:[%s1610 + $0xa8] sm:$0xff]
        %v1633 = vld [vmem:[%s1610 + $0xb0] sm:$0xff]
        %v1634 = vld [vmem:[%s1610 + $0xb8] sm:$0xff]
        %v1635 = vld [vmem:[%s1610 + $0xc0] sm:$0xff]
        %v1636 = vld [vmem:[%s1610 + $0xc8] sm:$0xff]
        %v1637 = vld [vmem:[%s1610 + $0xd0] sm:$0xff]
        %v1638 = vld [vmem:[%s1610 + $0xd8] sm:$0xff]
        %v1639 = vld [vmem:[%s1610 + $0xe0] sm:$0xff]
        %v1640 = vld [vmem:[%s1610 + $0xe8] sm:$0xff]
        %v1641 = vld [vmem:[%s1610 + $0xf0] sm:$0xff]
        %v1642 = vld [vmem:[%s1610 + $0xf8] sm:$0xff]
        %v1675 = vunpack.c.l.b16 %v1611
        %v1676 = vunpack.c.h.b16 %v1611
        %v1677 = vunpack.c.l.b16 %v1612
        %v1678 = vunpack.c.h.b16 %v1612
        %v1679 = vunpack.c.l.b16 %v1613
        %v1680 = vunpack.c.h.b16 %v1613
        %v1681 = vunpack.c.l.b16 %v1614
        %v1682 = vunpack.c.h.b16 %v1614
        %v1683 = vunpack.c.l.b16 %v1615
        %v1684 = vunpack.c.h.b16 %v1615
        %v1685 = vunpack.c.l.b16 %v1616
        %v1686 = vunpack.c.h.b16 %v1616
        %v1687 = vunpack.c.l.b16 %v1617
        %v1688 = vunpack.c.h.b16 %v1617
        %v1689 = vunpack.c.l.b16 %v1618
        %v1690 = vunpack.c.h.b16 %v1618
        %v1691 = vunpack.c.l.b16 %v1619
        %v1692 = vunpack.c.h.b16 %v1619
        %v1693 = vunpack.c.l.b16 %v1620
        %v1694 = vunpack.c.h.b16 %v1620
        %v1695 = vunpack.c.l.b16 %v1621
        %v1696 = vunpack.c.h.b16 %v1621
        %v1697 = vunpack.c.l.b16 %v1622
        %v1698 = vunpack.c.h.b16 %v1622
        %v1699 = vunpack.c.l.b16 %v1623
        %v1700 = vunpack.c.h.b16 %v1623
        %v1701 = vunpack.c.l.b16 %v1624
        %v1702 = vunpack.c.h.b16 %v1624
        %v1703 = vunpack.c.l.b16 %v1625
        %v1704 = vunpack.c.h.b16 %v1625
        %v1705 = vunpack.c.l.b16 %v1626
        %v1706 = vunpack.c.h.b16 %v1626
        %v1707 = vunpack.c.l.b16 %v1627
        %v1708 = vunpack.c.h.b16 %v1627
        %v1709 = vunpack.c.l.b16 %v1628
        %v1710 = vunpack.c.h.b16 %v1628
        %v1711 = vunpack.c.l.b16 %v1629
        %v1712 = vunpack.c.h.b16 %v1629
        %v1713 = vunpack.c.l.b16 %v1630
        %v1714 = vunpack.c.h.b16 %v1630
        %v1715 = vunpack.c.l.b16 %v1631
        %v1716 = vunpack.c.h.b16 %v1631
        %v1717 = vunpack.c.l.b16 %v1632
        %v1718 = vunpack.c.h.b16 %v1632
        %v1719 = vunpack.c.l.b16 %v1633
        %v1720 = vunpack.c.h.b16 %v1633
        %v1721 = vunpack.c.l.b16 %v1634
        %v1722 = vunpack.c.h.b16 %v1634
        %v1723 = vunpack.c.l.b16 %v1635
        %v1724 = vunpack.c.h.b16 %v1635
        %v1725 = vunpack.c.l.b16 %v1636
        %v1726 = vunpack.c.h.b16 %v1636
        %v1727 = vunpack.c.l.b16 %v1637
        %v1728 = vunpack.c.h.b16 %v1637
        %v1729 = vunpack.c.l.b16 %v1638
        %v1730 = vunpack.c.h.b16 %v1638
        %v1731 = vunpack.c.l.b16 %v1639
        %v1732 = vunpack.c.h.b16 %v1639
        %v1733 = vunpack.c.l.b16 %v1640
        %v1734 = vunpack.c.h.b16 %v1640
        %v1735 = vunpack.c.l.b16 %v1641
        %v1736 = vunpack.c.h.b16 %v1641
        %v1737 = vunpack.c.l.b16 %v1642
        %v1738 = vunpack.c.h.b16 %v1642
        %v1739 = vpack.c.b16 %v1677, %v1675
        %v1740 = vpack.c.b16 %v1678, %v1676
        %v1741 = vpack.c.b16 %v1681, %v1679
        %v1742 = vpack.c.b16 %v1682, %v1680
        %v1743 = vpack.c.b16 %v1685, %v1683
        %v1744 = vpack.c.b16 %v1686, %v1684
        %v1745 = vpack.c.b16 %v1689, %v1687
        %v1746 = vpack.c.b16 %v1690, %v1688
        %v1747 = vpack.c.b16 %v1693, %v1691
        %v1748 = vpack.c.b16 %v1694, %v1692
        %v1749 = vpack.c.b16 %v1697, %v1695
        %v1750 = vpack.c.b16 %v1698, %v1696
        %v1751 = vpack.c.b16 %v1701, %v1699
        %v1752 = vpack.c.b16 %v1702, %v1700
        %v1753 = vpack.c.b16 %v1705, %v1703
        %v1754 = vpack.c.b16 %v1706, %v1704
        %v1755 = vpack.c.b16 %v1709, %v1707
        %v1756 = vpack.c.b16 %v1710, %v1708
        %v1757 = vpack.c.b16 %v1713, %v1711
        %v1758 = vpack.c.b16 %v1714, %v1712
        %v1759 = vpack.c.b16 %v1717, %v1715
        %v1760 = vpack.c.b16 %v1718, %v1716
        %v1761 = vpack.c.b16 %v1721, %v1719
        %v1762 = vpack.c.b16 %v1722, %v1720
        %v1763 = vpack.c.b16 %v1725, %v1723
        %v1764 = vpack.c.b16 %v1726, %v1724
        %v1765 = vpack.c.b16 %v1729, %v1727
        %v1766 = vpack.c.b16 %v1730, %v1728
        %v1767 = vpack.c.b16 %v1733, %v1731
        %v1768 = vpack.c.b16 %v1734, %v1732
        %v1769 = vpack.c.b16 %v1737, %v1735
        %v1770 = vpack.c.b16 %v1738, %v1736
        %1803 = vmatpush.bf16.msra.mxu0 %v1753
        %1804 = vmatpush.bf16.msra.mxu0 %v1751
        %1805 = vmatpush.bf16.msra.mxu0 %v1749
        %1806 = vmatpush.bf16.msra.mxu0 %v1747
        %1807 = vmatpush.bf16.msra.mxu0 %v1745
        %1808 = vmatpush.bf16.msra.mxu0 %v1743
        %1809 = vmatpush.bf16.msra.mxu0 %v1741
        %1810 = vmatpush.bf16.msra.mxu0 %v1739
        %1811 = vmatmul.bf16.gmra.mxu0 %v1608
        %v1812 = vpop.f32.mrf.mxu0
        %v1813 = vadd.f32 0.0, %v1812
        %v1814 = vpop.f32.mrf.mxu0
        %1815 = vdwg.mxu0
        %1816 = vmatpush.bf16.msra.mxu0 %v1769
        %1817 = vmatpush.bf16.msra.mxu0 %v1767
        %1818 = vmatpush.bf16.msra.mxu0 %v1765
        %1819 = vmatpush.bf16.msra.mxu0 %v1763
        %1820 = vmatpush.bf16.msra.mxu0 %v1761
        %1821 = vmatpush.bf16.msra.mxu0 %v1759
        %1822 = vmatpush.bf16.msra.mxu0 %v1757
        %1823 = vmatpush.bf16.msra.mxu0 %v1755
        %1824 = vmatmul.bf16.gmra.mxu0 %v1609
        %v1825 = vpop.f32.mrf.mxu0
        %v1826 = vadd.f32 %v1813, %v1825
        %v1827 = vpop.f32.mrf.mxu0
        %1828 = vdwg.mxu0
        %1829 = vmatpush.bf16.msra.mxu0 %v1754
        %1830 = vmatpush.bf16.msra.mxu0 %v1752
        %1831 = vmatpush.bf16.msra.mxu0 %v1750
        %1832 = vmatpush.bf16.msra.mxu0 %v1748
        %1833 = vmatpush.bf16.msra.mxu0 %v1746
        %1834 = vmatpush.bf16.msra.mxu0 %v1744
        %1835 = vmatpush.bf16.msra.mxu0 %v1742
        %1836 = vmatpush.bf16.msra.mxu0 %v1740
        %1837 = vmatmul.bf16.gmra.mxu0 %v1608
        %v1838 = vpop.f32.mrf.mxu0
        %v1839 = vadd.f32 0.0, %v1838
        %v1840 = vpop.f32.mrf.mxu0
        %1841 = vdwg.mxu0
        %1842 = vmatpush.bf16.msra.mxu0 %v1770
        %1843 = vmatpush.bf16.msra.mxu0 %v1768
        %1844 = vmatpush.bf16.msra.mxu0 %v1766
        %1845 = vmatpush.bf16.msra.mxu0 %v1764
        %1846 = vmatpush.bf16.msra.mxu0 %v1762
        %1847 = vmatpush.bf16.msra.mxu0 %v1760
        %1848 = vmatpush.bf16.msra.mxu0 %v1758
        %1849 = vmatpush.bf16.msra.mxu0 %v1756
        %1850 = vmatmul.bf16.gmra.mxu0 %v1609
        %v1851 = vpop.f32.mrf.mxu0
        %v1852 = vadd.f32 %v1839, %v1851
        %v1853 = vpop.f32.mrf.mxu0
        %1854 = vdwg.mxu0
        %v1855 = vadd.f32 %v1548, %v1826
        %v1856 = vadd.f32 %v1574, %v1852
        %v1857 = vld [vmem:[%s6] sm:$0x3]
        %v1859 = vperm.slane %v1857, 0
        %v1860 = vperm.slane %v1857, 1
        %v1863 = vadd.f32 %v1855, %v1859
        %v1864 = vadd.f32 %v1856, %v1860
        %vm1865 = vcmp.gt.f32.partialorder %v1863, 0.0
        %vm1866 = vcmp.gt.f32.partialorder %v1864, 0.0
        %v1867 = vmul.f32 %v1863, 0.2
        %v1868 = vmul.f32 %v1864, 0.2
        %v1869 = vsel %vm1865, %v1863, %v1867
        %v1870 = vsel %vm1866, %v1864, %v1868
        %s1871 = scalar_lea.vmem %s6, 2
        %v1872 = vld [vmem:[%s1871] sm:$0x3]
        %v1874 = vperm.slane %v1872, 0
        %v1875 = vperm.slane %v1872, 1
        %v1878 = vmul.f32 %v1869, %v1874
        %v1879 = vmul.f32 %v1870, %v1875
        %s1880 = scalar_lea.vmem %s6, 4
        %v1881 = vld [vmem:[%s1880] sm:$0x3]
        %v1883 = vperm.slane %v1881, 0
        %v1884 = vperm.slane %v1881, 1
        %v1887 = vadd.f32 %v1878, %v1883
        %v1888 = vadd.f32 %v1879, %v1884
        %v1889 = vpack.c.bf16 %v1887, %v1887
        %v1890 = vpack.c.bf16 %v1888, %v1888
        %v1891 = vld [vmem:[#allocation12] sm:$0x3]
        %vm1892 = vcmask 64512
        %v1894 = vsel %vm1892, %v1891, 0
        %vm1896 = vcmask 1043456
        %v1898 = vsel %vm1896, %v1889, 0
        %v1901 = vsel %vm1896, %v1890, 0
        %1903 = vmatpush.bf16.msra.mxu0 0
        %1904 = vmatpush.bf16.msra.mxu0 0
        %1905 = vmatpush.bf16.msra.mxu0 0
        %1906 = vmatpush.bf16.msra.mxu0 0
        %1907 = vmatpush.bf16.msra.mxu0 0
        %1908 = vmatpush.bf16.msra.mxu0 0
        %1909 = vmatpush.bf16.msra.mxu0 0
        %1910 = vmatpush.bf16.msra.mxu0 %v1898
        %1911 = vmatmul.bf16.gmra.mxu0 %v1894
        %v1912 = vpop.f32.mrf.mxu0
        %v1913 = vadd.f32 0.0, %v1912
        %v1914 = vpop.f32.mrf.mxu0
        %1915 = vdwg.mxu0
        %1916 = vmatpush.bf16.msra.mxu0 0
        %1917 = vmatpush.bf16.msra.mxu0 0
        %1918 = vmatpush.bf16.msra.mxu0 0
        %1919 = vmatpush.bf16.msra.mxu0 0
        %1920 = vmatpush.bf16.msra.mxu0 0
        %1921 = vmatpush.bf16.msra.mxu0 0
        %1922 = vmatpush.bf16.msra.mxu0 0
        %1923 = vmatpush.bf16.msra.mxu0 %v1901
        %1924 = vmatmul.bf16.gmra.mxu0 %v1894
        %v1925 = vpop.f32.mrf.mxu0
        %v1926 = vadd.f32 0.0, %v1925
        %v1927 = vpop.f32.mrf.mxu0
        %1928 = vdwg.mxu0
        %v1929 = vpack.c.bf16 %v1913, %v1913
        %v1930 = vpack.c.bf16 %v1926, %v1926
        %v1931 = vld [vmem:[#allocation13] sm:$0xff]
        %v1932 = vld [vmem:[#allocation13 + $0x8] sm:$0xff]
        %v1933 = vld [vmem:[#allocation13 + $0x10] sm:$0xff]
        %v1934 = vld [vmem:[#allocation13 + $0x18] sm:$0xff]
        %v1935 = vld [vmem:[#allocation13 + $0x20] sm:$0xff]
        %v1936 = vld [vmem:[#allocation13 + $0x28] sm:$0xff]
        %v1937 = vld [vmem:[#allocation13 + $0x30] sm:$0xff]
        %v1938 = vld [vmem:[#allocation13 + $0x38] sm:$0xff]
        %v1939 = vld [vmem:[#allocation13 + $0x40] sm:$0xff]
        %v1940 = vld [vmem:[#allocation13 + $0x48] sm:$0xff]
        %v1941 = vld [vmem:[#allocation13 + $0x50] sm:$0xff]
        %v1942 = vld [vmem:[#allocation13 + $0x58] sm:$0xff]
        %v1943 = vld [vmem:[#allocation13 + $0x60] sm:$0xff]
        %v1944 = vld [vmem:[#allocation13 + $0x68] sm:$0xff]
        %v1945 = vld [vmem:[#allocation13 + $0x70] sm:$0xff]
        %v1946 = vld [vmem:[#allocation13 + $0x78] sm:$0xff]
        %v1947 = vld [vmem:[#allocation13 + $0x80] sm:$0xff]
        %v1948 = vld [vmem:[#allocation13 + $0x88] sm:$0xff]
        %v1949 = vld [vmem:[#allocation13 + $0x90] sm:$0xff]
        %v1950 = vld [vmem:[#allocation13 + $0x98] sm:$0xff]
        %v1951 = vld [vmem:[#allocation13 + $0xa0] sm:$0xff]
        %v1952 = vld [vmem:[#allocation13 + $0xa8] sm:$0xff]
        %v1953 = vld [vmem:[#allocation13 + $0xb0] sm:$0xff]
        %v1954 = vld [vmem:[#allocation13 + $0xb8] sm:$0xff]
        %v1955 = vld [vmem:[#allocation13 + $0xc0] sm:$0xff]
        %v1956 = vld [vmem:[#allocation13 + $0xc8] sm:$0xff]
        %v1957 = vld [vmem:[#allocation13 + $0xd0] sm:$0xff]
        %v1958 = vld [vmem:[#allocation13 + $0xd8] sm:$0xff]
        %v1959 = vld [vmem:[#allocation13 + $0xe0] sm:$0xff]
        %v1960 = vld [vmem:[#allocation13 + $0xe8] sm:$0xff]
        %v1961 = vld [vmem:[#allocation13 + $0xf0] sm:$0xff]
        %v1962 = vld [vmem:[#allocation13 + $0xf8] sm:$0xff]
        %s1963 = scalar_lea.vmem [#allocation12], 2
        %v1964 = vld [vmem:[%s1963] sm:$0x3]
        %v1966 = vsel %vm1892, %v1964, 0
        %1968 = vmatpush.bf16.msra.mxu0 0
        %1969 = vmatpush.bf16.msra.mxu0 0
        %1970 = vmatpush.bf16.msra.mxu0 0
        %1971 = vmatpush.bf16.msra.mxu0 0
        %1972 = vmatpush.bf16.msra.mxu0 0
        %1973 = vmatpush.bf16.msra.mxu0 0
        %1974 = vmatpush.bf16.msra.mxu0 0
        %1975 = vmatpush.bf16.msra.mxu0 %v1898
        %1976 = vmatmul.bf16.gmra.mxu0 %v1966
        %v1977 = vpop.f32.mrf.mxu0
        %v1978 = vadd.f32 0.0, %v1977
        %v1979 = vpop.f32.mrf.mxu0
        %1980 = vdwg.mxu0
        %1981 = vmatpush.bf16.msra.mxu0 0
        %1982 = vmatpush.bf16.msra.mxu0 0
        %1983 = vmatpush.bf16.msra.mxu0 0
        %1984 = vmatpush.bf16.msra.mxu0 0
        %1985 = vmatpush.bf16.msra.mxu0 0
        %1986 = vmatpush.bf16.msra.mxu0 0
        %1987 = vmatpush.bf16.msra.mxu0 0
        %1988 = vmatpush.bf16.msra.mxu0 %v1901
        %1989 = vmatmul.bf16.gmra.mxu0 %v1966
        %v1990 = vpop.f32.mrf.mxu0
        %v1991 = vadd.f32 0.0, %v1990
        %v1992 = vpop.f32.mrf.mxu0
        %1993 = vdwg.mxu0
        %v1994 = vpack.c.bf16 %v1978, %v1978
        %v1995 = vpack.c.bf16 %v1991, %v1991
        %s1996 = scalar_lea.vmem [#allocation13], 256
        %v1997 = vld [vmem:[%s1996] sm:$0xff]
        %v1998 = vld [vmem:[%s1996 + $0x8] sm:$0xff]
        %v1999 = vld [vmem:[%s1996 + $0x10] sm:$0xff]
        %v2000 = vld [vmem:[%s1996 + $0x18] sm:$0xff]
        %v2001 = vld [vmem:[%s1996 + $0x20] sm:$0xff]
        %v2002 = vld [vmem:[%s1996 + $0x28] sm:$0xff]
        %v2003 = vld [vmem:[%s1996 + $0x30] sm:$0xff]
        %v2004 = vld [vmem:[%s1996 + $0x38] sm:$0xff]
        %v2005 = vld [vmem:[%s1996 + $0x40] sm:$0xff]
        %v2006 = vld [vmem:[%s1996 + $0x48] sm:$0xff]
        %v2007 = vld [vmem:[%s1996 + $0x50] sm:$0xff]
        %v2008 = vld [vmem:[%s1996 + $0x58] sm:$0xff]
        %v2009 = vld [vmem:[%s1996 + $0x60] sm:$0xff]
        %v2010 = vld [vmem:[%s1996 + $0x68] sm:$0xff]
        %v2011 = vld [vmem:[%s1996 + $0x70] sm:$0xff]
        %v2012 = vld [vmem:[%s1996 + $0x78] sm:$0xff]
        %v2013 = vld [vmem:[%s1996 + $0x80] sm:$0xff]
        %v2014 = vld [vmem:[%s1996 + $0x88] sm:$0xff]
        %v2015 = vld [vmem:[%s1996 + $0x90] sm:$0xff]
        %v2016 = vld [vmem:[%s1996 + $0x98] sm:$0xff]
        %v2017 = vld [vmem:[%s1996 + $0xa0] sm:$0xff]
        %v2018 = vld [vmem:[%s1996 + $0xa8] sm:$0xff]
        %v2019 = vld [vmem:[%s1996 + $0xb0] sm:$0xff]
        %v2020 = vld [vmem:[%s1996 + $0xb8] sm:$0xff]
        %v2021 = vld [vmem:[%s1996 + $0xc0] sm:$0xff]
        %v2022 = vld [vmem:[%s1996 + $0xc8] sm:$0xff]
        %v2023 = vld [vmem:[%s1996 + $0xd0] sm:$0xff]
        %v2024 = vld [vmem:[%s1996 + $0xd8] sm:$0xff]
        %v2025 = vld [vmem:[%s1996 + $0xe0] sm:$0xff]
        %v2026 = vld [vmem:[%s1996 + $0xe8] sm:$0xff]
        %v2027 = vld [vmem:[%s1996 + $0xf0] sm:$0xff]
        %v2028 = vld [vmem:[%s1996 + $0xf8] sm:$0xff]
        %v2061 = vunpack.c.l.b16 %v1997
        %v2062 = vunpack.c.h.b16 %v1997
        %v2063 = vunpack.c.l.b16 %v1998
        %v2064 = vunpack.c.h.b16 %v1998
        %v2065 = vunpack.c.l.b16 %v1999
        %v2066 = vunpack.c.h.b16 %v1999
        %v2067 = vunpack.c.l.b16 %v2000
        %v2068 = vunpack.c.h.b16 %v2000
        %v2069 = vunpack.c.l.b16 %v2001
        %v2070 = vunpack.c.h.b16 %v2001
        %v2071 = vunpack.c.l.b16 %v2002
        %v2072 = vunpack.c.h.b16 %v2002
        %v2073 = vunpack.c.l.b16 %v2003
        %v2074 = vunpack.c.h.b16 %v2003
        %v2075 = vunpack.c.l.b16 %v2004
        %v2076 = vunpack.c.h.b16 %v2004
        %v2077 = vunpack.c.l.b16 %v2005
        %v2078 = vunpack.c.h.b16 %v2005
        %v2079 = vunpack.c.l.b16 %v2006
        %v2080 = vunpack.c.h.b16 %v2006
        %v2081 = vunpack.c.l.b16 %v2007
        %v2082 = vunpack.c.h.b16 %v2007
        %v2083 = vunpack.c.l.b16 %v2008
        %v2084 = vunpack.c.h.b16 %v2008
        %v2085 = vunpack.c.l.b16 %v2009
        %v2086 = vunpack.c.h.b16 %v2009
        %v2087 = vunpack.c.l.b16 %v2010
        %v2088 = vunpack.c.h.b16 %v2010
        %v2089 = vunpack.c.l.b16 %v2011
        %v2090 = vunpack.c.h.b16 %v2011
        %v2091 = vunpack.c.l.b16 %v2012
        %v2092 = vunpack.c.h.b16 %v2012
        %v2093 = vunpack.c.l.b16 %v2013
        %v2094 = vunpack.c.h.b16 %v2013
        %v2095 = vunpack.c.l.b16 %v2014
        %v2096 = vunpack.c.h.b16 %v2014
        %v2097 = vunpack.c.l.b16 %v2015
        %v2098 = vunpack.c.h.b16 %v2015
        %v2099 = vunpack.c.l.b16 %v2016
        %v2100 = vunpack.c.h.b16 %v2016
        %v2101 = vunpack.c.l.b16 %v2017
        %v2102 = vunpack.c.h.b16 %v2017
        %v2103 = vunpack.c.l.b16 %v2018
        %v2104 = vunpack.c.h.b16 %v2018
        %v2105 = vunpack.c.l.b16 %v2019
        %v2106 = vunpack.c.h.b16 %v2019
        %v2107 = vunpack.c.l.b16 %v2020
        %v2108 = vunpack.c.h.b16 %v2020
        %v2109 = vunpack.c.l.b16 %v2021
        %v2110 = vunpack.c.h.b16 %v2021
        %v2111 = vunpack.c.l.b16 %v2022
        %v2112 = vunpack.c.h.b16 %v2022
        %v2113 = vunpack.c.l.b16 %v2023
        %v2114 = vunpack.c.h.b16 %v2023
        %v2115 = vunpack.c.l.b16 %v2024
        %v2116 = vunpack.c.h.b16 %v2024
        %v2117 = vunpack.c.l.b16 %v2025
        %v2118 = vunpack.c.h.b16 %v2025
        %v2119 = vunpack.c.l.b16 %v2026
        %v2120 = vunpack.c.h.b16 %v2026
        %v2121 = vunpack.c.l.b16 %v2027
        %v2122 = vunpack.c.h.b16 %v2027
        %v2123 = vunpack.c.l.b16 %v2028
        %v2124 = vunpack.c.h.b16 %v2028
        %v2125 = vpack.c.b16 %v2063, %v2061
        %v2126 = vpack.c.b16 %v2064, %v2062
        %v2127 = vpack.c.b16 %v2067, %v2065
        %v2128 = vpack.c.b16 %v2068, %v2066
        %v2129 = vpack.c.b16 %v2071, %v2069
        %v2130 = vpack.c.b16 %v2072, %v2070
        %v2131 = vpack.c.b16 %v2075, %v2073
        %v2132 = vpack.c.b16 %v2076, %v2074
        %v2133 = vpack.c.b16 %v2079, %v2077
        %v2134 = vpack.c.b16 %v2080, %v2078
        %v2135 = vpack.c.b16 %v2083, %v2081
        %v2136 = vpack.c.b16 %v2084, %v2082
        %v2137 = vpack.c.b16 %v2087, %v2085
        %v2138 = vpack.c.b16 %v2088, %v2086
        %v2139 = vpack.c.b16 %v2091, %v2089
        %v2140 = vpack.c.b16 %v2092, %v2090
        %v2141 = vpack.c.b16 %v2095, %v2093
        %v2142 = vpack.c.b16 %v2096, %v2094
        %v2143 = vpack.c.b16 %v2099, %v2097
        %v2144 = vpack.c.b16 %v2100, %v2098
        %v2145 = vpack.c.b16 %v2103, %v2101
        %v2146 = vpack.c.b16 %v2104, %v2102
        %v2147 = vpack.c.b16 %v2107, %v2105
        %v2148 = vpack.c.b16 %v2108, %v2106
        %v2149 = vpack.c.b16 %v2111, %v2109
        %v2150 = vpack.c.b16 %v2112, %v2110
        %v2151 = vpack.c.b16 %v2115, %v2113
        %v2152 = vpack.c.b16 %v2116, %v2114
        %v2153 = vpack.c.b16 %v2119, %v2117
        %v2154 = vpack.c.b16 %v2120, %v2118
        %v2155 = vpack.c.b16 %v2123, %v2121
        %v2156 = vpack.c.b16 %v2124, %v2122
        %2189 = vmatpush.bf16.msra.mxu0 %v2139
        %2190 = vmatpush.bf16.msra.mxu0 %v2137
        %2191 = vmatpush.bf16.msra.mxu0 %v2135
        %2192 = vmatpush.bf16.msra.mxu0 %v2133
        %2193 = vmatpush.bf16.msra.mxu0 %v2131
        %2194 = vmatpush.bf16.msra.mxu0 %v2129
        %2195 = vmatpush.bf16.msra.mxu0 %v2127
        %2196 = vmatpush.bf16.msra.mxu0 %v2125
        %2197 = vmatmul.bf16.gmra.mxu0 %v1994
        %v2198 = vpop.f32.mrf.mxu0
        %v2199 = vadd.f32 0.0, %v2198
        %v2200 = vpop.f32.mrf.mxu0
        %2201 = vdwg.mxu0
        %2202 = vmatpush.bf16.msra.mxu0 %v2155
        %2203 = vmatpush.bf16.msra.mxu0 %v2153
        %2204 = vmatpush.bf16.msra.mxu0 %v2151
        %2205 = vmatpush.bf16.msra.mxu0 %v2149
        %2206 = vmatpush.bf16.msra.mxu0 %v2147
        %2207 = vmatpush.bf16.msra.mxu0 %v2145
        %2208 = vmatpush.bf16.msra.mxu0 %v2143
        %2209 = vmatpush.bf16.msra.mxu0 %v2141
        %2210 = vmatmul.bf16.gmra.mxu0 %v1995
        %v2211 = vpop.f32.mrf.mxu0
        %v2212 = vadd.f32 %v2199, %v2211
        %v2213 = vpop.f32.mrf.mxu0
        %2214 = vdwg.mxu0
        %2215 = vmatpush.bf16.msra.mxu0 %v2140
        %2216 = vmatpush.bf16.msra.mxu0 %v2138
        %2217 = vmatpush.bf16.msra.mxu0 %v2136
        %2218 = vmatpush.bf16.msra.mxu0 %v2134
        %2219 = vmatpush.bf16.msra.mxu0 %v2132
        %2220 = vmatpush.bf16.msra.mxu0 %v2130
        %2221 = vmatpush.bf16.msra.mxu0 %v2128
        %2222 = vmatpush.bf16.msra.mxu0 %v2126
        %2223 = vmatmul.bf16.gmra.mxu0 %v1994
        %v2224 = vpop.f32.mrf.mxu0
        %v2225 = vadd.f32 0.0, %v2224
        %v2226 = vpop.f32.mrf.mxu0
        %2227 = vdwg.mxu0
        %2228 = vmatpush.bf16.msra.mxu0 %v2156
        %2229 = vmatpush.bf16.msra.mxu0 %v2154
        %2230 = vmatpush.bf16.msra.mxu0 %v2152
        %2231 = vmatpush.bf16.msra.mxu0 %v2150
        %2232 = vmatpush.bf16.msra.mxu0 %v2148
        %2233 = vmatpush.bf16.msra.mxu0 %v2146
        %2234 = vmatpush.bf16.msra.mxu0 %v2144
        %2235 = vmatpush.bf16.msra.mxu0 %v2142
        %2236 = vmatmul.bf16.gmra.mxu0 %v1995
        %v2237 = vpop.f32.mrf.mxu0
        %v2238 = vadd.f32 %v2225, %v2237
        %v2239 = vpop.f32.mrf.mxu0
        %2240 = vdwg.mxu0
        %v2273 = vunpack.c.l.b16 %v1931
        %v2274 = vunpack.c.h.b16 %v1931
        %v2275 = vunpack.c.l.b16 %v1932
        %v2276 = vunpack.c.h.b16 %v1932
        %v2277 = vunpack.c.l.b16 %v1933
        %v2278 = vunpack.c.h.b16 %v1933
        %v2279 = vunpack.c.l.b16 %v1934
        %v2280 = vunpack.c.h.b16 %v1934
        %v2281 = vunpack.c.l.b16 %v1935
        %v2282 = vunpack.c.h.b16 %v1935
        %v2283 = vunpack.c.l.b16 %v1936
        %v2284 = vunpack.c.h.b16 %v1936
        %v2285 = vunpack.c.l.b16 %v1937
        %v2286 = vunpack.c.h.b16 %v1937
        %v2287 = vunpack.c.l.b16 %v1938
        %v2288 = vunpack.c.h.b16 %v1938
        %v2289 = vunpack.c.l.b16 %v1939
        %v2290 = vunpack.c.h.b16 %v1939
        %v2291 = vunpack.c.l.b16 %v1940
        %v2292 = vunpack.c.h.b16 %v1940
        %v2293 = vunpack.c.l.b16 %v1941
        %v2294 = vunpack.c.h.b16 %v1941
        %v2295 = vunpack.c.l.b16 %v1942
        %v2296 = vunpack.c.h.b16 %v1942
        %v2297 = vunpack.c.l.b16 %v1943
        %v2298 = vunpack.c.h.b16 %v1943
        %v2299 = vunpack.c.l.b16 %v1944
        %v2300 = vunpack.c.h.b16 %v1944
        %v2301 = vunpack.c.l.b16 %v1945
        %v2302 = vunpack.c.h.b16 %v1945
        %v2303 = vunpack.c.l.b16 %v1946
        %v2304 = vunpack.c.h.b16 %v1946
        %v2305 = vunpack.c.l.b16 %v1947
        %v2306 = vunpack.c.h.b16 %v1947
        %v2307 = vunpack.c.l.b16 %v1948
        %v2308 = vunpack.c.h.b16 %v1948
        %v2309 = vunpack.c.l.b16 %v1949
        %v2310 = vunpack.c.h.b16 %v1949
        %v2311 = vunpack.c.l.b16 %v1950
        %v2312 = vunpack.c.h.b16 %v1950
        %v2313 = vunpack.c.l.b16 %v1951
        %v2314 = vunpack.c.h.b16 %v1951
        %v2315 = vunpack.c.l.b16 %v1952
        %v2316 = vunpack.c.h.b16 %v1952
        %v2317 = vunpack.c.l.b16 %v1953
        %v2318 = vunpack.c.h.b16 %v1953
        %v2319 = vunpack.c.l.b16 %v1954
        %v2320 = vunpack.c.h.b16 %v1954
        %v2321 = vunpack.c.l.b16 %v1955
        %v2322 = vunpack.c.h.b16 %v1955
        %v2323 = vunpack.c.l.b16 %v1956
        %v2324 = vunpack.c.h.b16 %v1956
        %v2325 = vunpack.c.l.b16 %v1957
        %v2326 = vunpack.c.h.b16 %v1957
        %v2327 = vunpack.c.l.b16 %v1958
        %v2328 = vunpack.c.h.b16 %v1958
        %v2329 = vunpack.c.l.b16 %v1959
        %v2330 = vunpack.c.h.b16 %v1959
        %v2331 = vunpack.c.l.b16 %v1960
        %v2332 = vunpack.c.h.b16 %v1960
        %v2333 = vunpack.c.l.b16 %v1961
        %v2334 = vunpack.c.h.b16 %v1961
        %v2335 = vunpack.c.l.b16 %v1962
        %v2336 = vunpack.c.h.b16 %v1962
        %v2337 = vpack.c.b16 %v2275, %v2273
        %v2338 = vpack.c.b16 %v2276, %v2274
        %v2339 = vpack.c.b16 %v2279, %v2277
        %v2340 = vpack.c.b16 %v2280, %v2278
        %v2341 = vpack.c.b16 %v2283, %v2281
        %v2342 = vpack.c.b16 %v2284, %v2282
        %v2343 = vpack.c.b16 %v2287, %v2285
        %v2344 = vpack.c.b16 %v2288, %v2286
        %v2345 = vpack.c.b16 %v2291, %v2289
        %v2346 = vpack.c.b16 %v2292, %v2290
        %v2347 = vpack.c.b16 %v2295, %v2293
        %v2348 = vpack.c.b16 %v2296, %v2294
        %v2349 = vpack.c.b16 %v2299, %v2297
        %v2350 = vpack.c.b16 %v2300, %v2298
        %v2351 = vpack.c.b16 %v2303, %v2301
        %v2352 = vpack.c.b16 %v2304, %v2302
        %v2353 = vpack.c.b16 %v2307, %v2305
        %v2354 = vpack.c.b16 %v2308, %v2306
        %v2355 = vpack.c.b16 %v2311, %v2309
        %v2356 = vpack.c.b16 %v2312, %v2310
        %v2357 = vpack.c.b16 %v2315, %v2313
        %v2358 = vpack.c.b16 %v2316, %v2314
        %v2359 = vpack.c.b16 %v2319, %v2317
        %v2360 = vpack.c.b16 %v2320, %v2318
        %v2361 = vpack.c.b16 %v2323, %v2321
        %v2362 = vpack.c.b16 %v2324, %v2322
        %v2363 = vpack.c.b16 %v2327, %v2325
        %v2364 = vpack.c.b16 %v2328, %v2326
        %v2365 = vpack.c.b16 %v2331, %v2329
        %v2366 = vpack.c.b16 %v2332, %v2330
        %v2367 = vpack.c.b16 %v2335, %v2333
        %v2368 = vpack.c.b16 %v2336, %v2334
        %2401 = vmatpush.bf16.msra.mxu0 %v2351
        %2402 = vmatpush.bf16.msra.mxu0 %v2349
        %2403 = vmatpush.bf16.msra.mxu0 %v2347
        %2404 = vmatpush.bf16.msra.mxu0 %v2345
        %2405 = vmatpush.bf16.msra.mxu0 %v2343
        %2406 = vmatpush.bf16.msra.mxu0 %v2341
        %2407 = vmatpush.bf16.msra.mxu0 %v2339
        %2408 = vmatpush.bf16.msra.mxu0 %v2337
        %2409 = vmatmul.bf16.gmra.mxu0 %v1929
        %v2410 = vpop.f32.mrf.mxu0
        %v2411 = vadd.f32 %v2212, %v2410
        %v2412 = vpop.f32.mrf.mxu0
        %2413 = vdwg.mxu0
        %2414 = vmatpush.bf16.msra.mxu0 %v2367
        %2415 = vmatpush.bf16.msra.mxu0 %v2365
        %2416 = vmatpush.bf16.msra.mxu0 %v2363
        %2417 = vmatpush.bf16.msra.mxu0 %v2361
        %2418 = vmatpush.bf16.msra.mxu0 %v2359
        %2419 = vmatpush.bf16.msra.mxu0 %v2357
        %2420 = vmatpush.bf16.msra.mxu0 %v2355
        %2421 = vmatpush.bf16.msra.mxu0 %v2353
        %2422 = vmatmul.bf16.gmra.mxu0 %v1930
        %v2423 = vpop.f32.mrf.mxu0
        %v2424 = vadd.f32 %v2411, %v2423
        %v2425 = vpop.f32.mrf.mxu0
        %2426 = vdwg.mxu0
        %2427 = vmatpush.bf16.msra.mxu0 %v2352
        %2428 = vmatpush.bf16.msra.mxu0 %v2350
        %2429 = vmatpush.bf16.msra.mxu0 %v2348
        %2430 = vmatpush.bf16.msra.mxu0 %v2346
        %2431 = vmatpush.bf16.msra.mxu0 %v2344
        %2432 = vmatpush.bf16.msra.mxu0 %v2342
        %2433 = vmatpush.bf16.msra.mxu0 %v2340
        %2434 = vmatpush.bf16.msra.mxu0 %v2338
        %2435 = vmatmul.bf16.gmra.mxu0 %v1929
        %v2436 = vpop.f32.mrf.mxu0
        %v2437 = vadd.f32 %v2238, %v2436
        %v2438 = vpop.f32.mrf.mxu0
        %2439 = vdwg.mxu0
        %2440 = vmatpush.bf16.msra.mxu0 %v2368
        %2441 = vmatpush.bf16.msra.mxu0 %v2366
        %2442 = vmatpush.bf16.msra.mxu0 %v2364
        %2443 = vmatpush.bf16.msra.mxu0 %v2362
        %2444 = vmatpush.bf16.msra.mxu0 %v2360
        %2445 = vmatpush.bf16.msra.mxu0 %v2358
        %2446 = vmatpush.bf16.msra.mxu0 %v2356
        %2447 = vmatpush.bf16.msra.mxu0 %v2354
        %2448 = vmatmul.bf16.gmra.mxu0 %v1930
        %v2449 = vpop.f32.mrf.mxu0
        %v2450 = vadd.f32 %v2437, %v2449
        %v2451 = vpop.f32.mrf.mxu0
        %2452 = vdwg.mxu0
        %s2453 = scalar_lea.vmem [#allocation12], 4
        %v2454 = vld [vmem:[%s2453] sm:$0x3]
        %v2456 = vsel %vm1892, %v2454, 0
        %2458 = vmatpush.bf16.msra.mxu0 0
        %2459 = vmatpush.bf16.msra.mxu0 0
        %2460 = vmatpush.bf16.msra.mxu0 0
        %2461 = vmatpush.bf16.msra.mxu0 0
        %2462 = vmatpush.bf16.msra.mxu0 0
        %2463 = vmatpush.bf16.msra.mxu0 0
        %2464 = vmatpush.bf16.msra.mxu0 0
        %2465 = vmatpush.bf16.msra.mxu0 %v1898
        %2466 = vmatmul.bf16.gmra.mxu0 %v2456
        %v2467 = vpop.f32.mrf.mxu0
        %v2468 = vadd.f32 0.0, %v2467
        %v2469 = vpop.f32.mrf.mxu0
        %2470 = vdwg.mxu0
        %2471 = vmatpush.bf16.msra.mxu0 0
        %2472 = vmatpush.bf16.msra.mxu0 0
        %2473 = vmatpush.bf16.msra.mxu0 0
        %2474 = vmatpush.bf16.msra.mxu0 0
        %2475 = vmatpush.bf16.msra.mxu0 0
        %2476 = vmatpush.bf16.msra.mxu0 0
        %2477 = vmatpush.bf16.msra.mxu0 0
        %2478 = vmatpush.bf16.msra.mxu0 %v1901
        %2479 = vmatmul.bf16.gmra.mxu0 %v2456
        %v2480 = vpop.f32.mrf.mxu0
        %v2481 = vadd.f32 0.0, %v2480
        %v2482 = vpop.f32.mrf.mxu0
        %2483 = vdwg.mxu0
        %v2484 = vpack.c.bf16 %v2468, %v2468
        %v2485 = vpack.c.bf16 %v2481, %v2481
        %s2486 = scalar_lea.vmem [#allocation13], 512
        %v2487 = vld [vmem:[%s2486] sm:$0xff]
        %v2488 = vld [vmem:[%s2486 + $0x8] sm:$0xff]
        %v2489 = vld [vmem:[%s2486 + $0x10] sm:$0xff]
        %v2490 = vld [vmem:[%s2486 + $0x18] sm:$0xff]
        %v2491 = vld [vmem:[%s2486 + $0x20] sm:$0xff]
        %v2492 = vld [vmem:[%s2486 + $0x28] sm:$0xff]
        %v2493 = vld [vmem:[%s2486 + $0x30] sm:$0xff]
        %v2494 = vld [vmem:[%s2486 + $0x38] sm:$0xff]
        %v2495 = vld [vmem:[%s2486 + $0x40] sm:$0xff]
        %v2496 = vld [vmem:[%s2486 + $0x48] sm:$0xff]
        %v2497 = vld [vmem:[%s2486 + $0x50] sm:$0xff]
        %v2498 = vld [vmem:[%s2486 + $0x58] sm:$0xff]
        %v2499 = vld [vmem:[%s2486 + $0x60] sm:$0xff]
        %v2500 = vld [vmem:[%s2486 + $0x68] sm:$0xff]
        %v2501 = vld [vmem:[%s2486 + $0x70] sm:$0xff]
        %v2502 = vld [vmem:[%s2486 + $0x78] sm:$0xff]
        %v2503 = vld [vmem:[%s2486 + $0x80] sm:$0xff]
        %v2504 = vld [vmem:[%s2486 + $0x88] sm:$0xff]
        %v2505 = vld [vmem:[%s2486 + $0x90] sm:$0xff]
        %v2506 = vld [vmem:[%s2486 + $0x98] sm:$0xff]
        %v2507 = vld [vmem:[%s2486 + $0xa0] sm:$0xff]
        %v2508 = vld [vmem:[%s2486 + $0xa8] sm:$0xff]
        %v2509 = vld [vmem:[%s2486 + $0xb0] sm:$0xff]
        %v2510 = vld [vmem:[%s2486 + $0xb8] sm:$0xff]
        %v2511 = vld [vmem:[%s2486 + $0xc0] sm:$0xff]
        %v2512 = vld [vmem:[%s2486 + $0xc8] sm:$0xff]
        %v2513 = vld [vmem:[%s2486 + $0xd0] sm:$0xff]
        %v2514 = vld [vmem:[%s2486 + $0xd8] sm:$0xff]
        %v2515 = vld [vmem:[%s2486 + $0xe0] sm:$0xff]
        %v2516 = vld [vmem:[%s2486 + $0xe8] sm:$0xff]
        %v2517 = vld [vmem:[%s2486 + $0xf0] sm:$0xff]
        %v2518 = vld [vmem:[%s2486 + $0xf8] sm:$0xff]
        %v2551 = vunpack.c.l.b16 %v2487
        %v2552 = vunpack.c.h.b16 %v2487
        %v2553 = vunpack.c.l.b16 %v2488
        %v2554 = vunpack.c.h.b16 %v2488
        %v2555 = vunpack.c.l.b16 %v2489
        %v2556 = vunpack.c.h.b16 %v2489
        %v2557 = vunpack.c.l.b16 %v2490
        %v2558 = vunpack.c.h.b16 %v2490
        %v2559 = vunpack.c.l.b16 %v2491
        %v2560 = vunpack.c.h.b16 %v2491
        %v2561 = vunpack.c.l.b16 %v2492
        %v2562 = vunpack.c.h.b16 %v2492
        %v2563 = vunpack.c.l.b16 %v2493
        %v2564 = vunpack.c.h.b16 %v2493
        %v2565 = vunpack.c.l.b16 %v2494
        %v2566 = vunpack.c.h.b16 %v2494
        %v2567 = vunpack.c.l.b16 %v2495
        %v2568 = vunpack.c.h.b16 %v2495
        %v2569 = vunpack.c.l.b16 %v2496
        %v2570 = vunpack.c.h.b16 %v2496
        %v2571 = vunpack.c.l.b16 %v2497
        %v2572 = vunpack.c.h.b16 %v2497
        %v2573 = vunpack.c.l.b16 %v2498
        %v2574 = vunpack.c.h.b16 %v2498
        %v2575 = vunpack.c.l.b16 %v2499
        %v2576 = vunpack.c.h.b16 %v2499
        %v2577 = vunpack.c.l.b16 %v2500
        %v2578 = vunpack.c.h.b16 %v2500
        %v2579 = vunpack.c.l.b16 %v2501
        %v2580 = vunpack.c.h.b16 %v2501
        %v2581 = vunpack.c.l.b16 %v2502
        %v2582 = vunpack.c.h.b16 %v2502
        %v2583 = vunpack.c.l.b16 %v2503
        %v2584 = vunpack.c.h.b16 %v2503
        %v2585 = vunpack.c.l.b16 %v2504
        %v2586 = vunpack.c.h.b16 %v2504
        %v2587 = vunpack.c.l.b16 %v2505
        %v2588 = vunpack.c.h.b16 %v2505
        %v2589 = vunpack.c.l.b16 %v2506
        %v2590 = vunpack.c.h.b16 %v2506
        %v2591 = vunpack.c.l.b16 %v2507
        %v2592 = vunpack.c.h.b16 %v2507
        %v2593 = vunpack.c.l.b16 %v2508
        %v2594 = vunpack.c.h.b16 %v2508
        %v2595 = vunpack.c.l.b16 %v2509
        %v2596 = vunpack.c.h.b16 %v2509
        %v2597 = vunpack.c.l.b16 %v2510
        %v2598 = vunpack.c.h.b16 %v2510
        %v2599 = vunpack.c.l.b16 %v2511
        %v2600 = vunpack.c.h.b16 %v2511
        %v2601 = vunpack.c.l.b16 %v2512
        %v2602 = vunpack.c.h.b16 %v2512
        %v2603 = vunpack.c.l.b16 %v2513
        %v2604 = vunpack.c.h.b16 %v2513
        %v2605 = vunpack.c.l.b16 %v2514
        %v2606 = vunpack.c.h.b16 %v2514
        %v2607 = vunpack.c.l.b16 %v2515
        %v2608 = vunpack.c.h.b16 %v2515
        %v2609 = vunpack.c.l.b16 %v2516
        %v2610 = vunpack.c.h.b16 %v2516
        %v2611 = vunpack.c.l.b16 %v2517
        %v2612 = vunpack.c.h.b16 %v2517
        %v2613 = vunpack.c.l.b16 %v2518
        %v2614 = vunpack.c.h.b16 %v2518
        %v2615 = vpack.c.b16 %v2553, %v2551
        %v2616 = vpack.c.b16 %v2554, %v2552
        %v2617 = vpack.c.b16 %v2557, %v2555
        %v2618 = vpack.c.b16 %v2558, %v2556
        %v2619 = vpack.c.b16 %v2561, %v2559
        %v2620 = vpack.c.b16 %v2562, %v2560
        %v2621 = vpack.c.b16 %v2565, %v2563
        %v2622 = vpack.c.b16 %v2566, %v2564
        %v2623 = vpack.c.b16 %v2569, %v2567
        %v2624 = vpack.c.b16 %v2570, %v2568
        %v2625 = vpack.c.b16 %v2573, %v2571
        %v2626 = vpack.c.b16 %v2574, %v2572
        %v2627 = vpack.c.b16 %v2577, %v2575
        %v2628 = vpack.c.b16 %v2578, %v2576
        %v2629 = vpack.c.b16 %v2581, %v2579
        %v2630 = vpack.c.b16 %v2582, %v2580
        %v2631 = vpack.c.b16 %v2585, %v2583
        %v2632 = vpack.c.b16 %v2586, %v2584
        %v2633 = vpack.c.b16 %v2589, %v2587
        %v2634 = vpack.c.b16 %v2590, %v2588
        %v2635 = vpack.c.b16 %v2593, %v2591
        %v2636 = vpack.c.b16 %v2594, %v2592
        %v2637 = vpack.c.b16 %v2597, %v2595
        %v2638 = vpack.c.b16 %v2598, %v2596
        %v2639 = vpack.c.b16 %v2601, %v2599
        %v2640 = vpack.c.b16 %v2602, %v2600
        %v2641 = vpack.c.b16 %v2605, %v2603
        %v2642 = vpack.c.b16 %v2606, %v2604
        %v2643 = vpack.c.b16 %v2609, %v2607
        %v2644 = vpack.c.b16 %v2610, %v2608
        %v2645 = vpack.c.b16 %v2613, %v2611
        %v2646 = vpack.c.b16 %v2614, %v2612
        %2679 = vmatpush.bf16.msra.mxu0 %v2629
        %2680 = vmatpush.bf16.msra.mxu0 %v2627
        %2681 = vmatpush.bf16.msra.mxu0 %v2625
        %2682 = vmatpush.bf16.msra.mxu0 %v2623
        %2683 = vmatpush.bf16.msra.mxu0 %v2621
        %2684 = vmatpush.bf16.msra.mxu0 %v2619
        %2685 = vmatpush.bf16.msra.mxu0 %v2617
        %2686 = vmatpush.bf16.msra.mxu0 %v2615
        %2687 = vmatmul.bf16.gmra.mxu0 %v2484
        %v2688 = vpop.f32.mrf.mxu0
        %v2689 = vadd.f32 0.0, %v2688
        %v2690 = vpop.f32.mrf.mxu0
        %2691 = vdwg.mxu0
        %2692 = vmatpush.bf16.msra.mxu0 %v2645
        %2693 = vmatpush.bf16.msra.mxu0 %v2643
        %2694 = vmatpush.bf16.msra.mxu0 %v2641
        %2695 = vmatpush.bf16.msra.mxu0 %v2639
        %2696 = vmatpush.bf16.msra.mxu0 %v2637
        %2697 = vmatpush.bf16.msra.mxu0 %v2635
        %2698 = vmatpush.bf16.msra.mxu0 %v2633
        %2699 = vmatpush.bf16.msra.mxu0 %v2631
        %2700 = vmatmul.bf16.gmra.mxu0 %v2485
        %v2701 = vpop.f32.mrf.mxu0
        %v2702 = vadd.f32 %v2689, %v2701
        %v2703 = vpop.f32.mrf.mxu0
        %2704 = vdwg.mxu0
        %2705 = vmatpush.bf16.msra.mxu0 %v2630
        %2706 = vmatpush.bf16.msra.mxu0 %v2628
        %2707 = vmatpush.bf16.msra.mxu0 %v2626
        %2708 = vmatpush.bf16.msra.mxu0 %v2624
        %2709 = vmatpush.bf16.msra.mxu0 %v2622
        %2710 = vmatpush.bf16.msra.mxu0 %v2620
        %2711 = vmatpush.bf16.msra.mxu0 %v2618
        %2712 = vmatpush.bf16.msra.mxu0 %v2616
        %2713 = vmatmul.bf16.gmra.mxu0 %v2484
        %v2714 = vpop.f32.mrf.mxu0
        %v2715 = vadd.f32 0.0, %v2714
        %v2716 = vpop.f32.mrf.mxu0
        %2717 = vdwg.mxu0
        %2718 = vmatpush.bf16.msra.mxu0 %v2646
        %2719 = vmatpush.bf16.msra.mxu0 %v2644
        %2720 = vmatpush.bf16.msra.mxu0 %v2642
        %2721 = vmatpush.bf16.msra.mxu0 %v2640
        %2722 = vmatpush.bf16.msra.mxu0 %v2638
        %2723 = vmatpush.bf16.msra.mxu0 %v2636
        %2724 = vmatpush.bf16.msra.mxu0 %v2634
        %2725 = vmatpush.bf16.msra.mxu0 %v2632
        %2726 = vmatmul.bf16.gmra.mxu0 %v2485
        %v2727 = vpop.f32.mrf.mxu0
        %v2728 = vadd.f32 %v2715, %v2727
        %v2729 = vpop.f32.mrf.mxu0
        %2730 = vdwg.mxu0
        %v2731 = vadd.f32 %v2424, %v2702
        %v2732 = vadd.f32 %v2450, %v2728
        %v2733 = vld [vmem:[#allocation15] sm:$0x3]
        %v2735 = vperm.slane %v2733, 0
        %v2736 = vperm.slane %v2733, 1
        %v2739 = vadd.f32 %v2731, %v2735
        %v2740 = vadd.f32 %v2732, %v2736
        %vm2741 = vcmp.gt.f32.partialorder %v2739, 0.0
        %vm2742 = vcmp.gt.f32.partialorder %v2740, 0.0
        %v2743 = vmul.f32 %v2739, 0.2
        %v2744 = vmul.f32 %v2740, 0.2
        %v2745 = vsel %vm2741, %v2739, %v2743
        %v2746 = vsel %vm2742, %v2740, %v2744
        %s2747 = scalar_lea.vmem [#allocation15], 2
        %v2748 = vld [vmem:[%s2747] sm:$0x3]
        %v2750 = vperm.slane %v2748, 0
        %v2751 = vperm.slane %v2748, 1
        %v2754 = vmul.f32 %v2745, %v2750
        %v2755 = vmul.f32 %v2746, %v2751
        %s2756 = scalar_lea.vmem [#allocation15], 4
        %v2757 = vld [vmem:[%s2756] sm:$0x3]
        %v2759 = vperm.slane %v2757, 0
        %v2760 = vperm.slane %v2757, 1
        %v2763 = vadd.f32 %v2754, %v2759
        %v2764 = vadd.f32 %v2755, %v2760
        %v2765 = vpack.c.bf16 %v2763, %v2763
        %v2766 = vpack.c.bf16 %v2764, %v2764
        %v2767 = vld [vmem:[%s10] sm:$0x1]
        %vm2768 = vcmask 31744
        %v2770 = vsel %vm2768, %v2767, 0
        %vm2772 = vcmask 1041408
        %v2774 = vsel %vm2772, %v2765, 0
        %v2777 = vsel %vm2772, %v2766, 0
        %2779 = vmatpush.bf16.msra.mxu0 0
        %2780 = vmatpush.bf16.msra.mxu0 0
        %2781 = vmatpush.bf16.msra.mxu0 0
        %2782 = vmatpush.bf16.msra.mxu0 0
        %2783 = vmatpush.bf16.msra.mxu0 0
        %2784 = vmatpush.bf16.msra.mxu0 0
        %2785 = vmatpush.bf16.msra.mxu0 0
        %2786 = vmatpush.bf16.msra.mxu0 %v2774
        %2787 = vmatmul.bf16.gmra.mxu0 %v2770
        %v2788 = vpop.f32.mrf.mxu0
        %v2789 = vadd.f32 0.0, %v2788
        %v2790 = vpop.f32.mrf.mxu0
        %2791 = vdwg.mxu0
        %2792 = vmatpush.bf16.msra.mxu0 0
        %2793 = vmatpush.bf16.msra.mxu0 0
        %2794 = vmatpush.bf16.msra.mxu0 0
        %2795 = vmatpush.bf16.msra.mxu0 0
        %2796 = vmatpush.bf16.msra.mxu0 0
        %2797 = vmatpush.bf16.msra.mxu0 0
        %2798 = vmatpush.bf16.msra.mxu0 0
        %2799 = vmatpush.bf16.msra.mxu0 %v2777
        %2800 = vmatmul.bf16.gmra.mxu0 %v2770
        %v2801 = vpop.f32.mrf.mxu0
        %v2802 = vadd.f32 0.0, %v2801
        %v2803 = vpop.f32.mrf.mxu0
        %2804 = vdwg.mxu0
        %v2805 = vpack.c.bf16 %v2789, %v2789
        %v2806 = vpack.c.bf16 %v2802, %v2802
        %v2807 = vld [vmem:[#allocation16] sm:$0xff]
        %v2808 = vld [vmem:[#allocation16 + $0x8] sm:$0xff]
        %v2809 = vld [vmem:[#allocation16 + $0x10] sm:$0xff]
        %v2810 = vld [vmem:[#allocation16 + $0x18] sm:$0xff]
        %v2811 = vld [vmem:[#allocation16 + $0x20] sm:$0xff]
        %v2812 = vld [vmem:[#allocation16 + $0x28] sm:$0xff]
        %v2813 = vld [vmem:[#allocation16 + $0x30] sm:$0xff]
        %v2814 = vld [vmem:[#allocation16 + $0x38] sm:$0xff]
        %v2815 = vld [vmem:[#allocation16 + $0x40] sm:$0xff]
        %v2816 = vld [vmem:[#allocation16 + $0x48] sm:$0xff]
        %v2817 = vld [vmem:[#allocation16 + $0x50] sm:$0xff]
        %v2818 = vld [vmem:[#allocation16 + $0x58] sm:$0xff]
        %v2819 = vld [vmem:[#allocation16 + $0x60] sm:$0xff]
        %v2820 = vld [vmem:[#allocation16 + $0x68] sm:$0xff]
        %v2821 = vld [vmem:[#allocation16 + $0x70] sm:$0xff]
        %v2822 = vld [vmem:[#allocation16 + $0x78] sm:$0xff]
        %v2823 = vld [vmem:[#allocation16 + $0x80] sm:$0xff]
        %v2824 = vld [vmem:[#allocation16 + $0x88] sm:$0xff]
        %v2825 = vld [vmem:[#allocation16 + $0x90] sm:$0xff]
        %v2826 = vld [vmem:[#allocation16 + $0x98] sm:$0xff]
        %v2827 = vld [vmem:[#allocation16 + $0xa0] sm:$0xff]
        %v2828 = vld [vmem:[#allocation16 + $0xa8] sm:$0xff]
        %v2829 = vld [vmem:[#allocation16 + $0xb0] sm:$0xff]
        %v2830 = vld [vmem:[#allocation16 + $0xb8] sm:$0xff]
        %v2831 = vld [vmem:[#allocation16 + $0xc0] sm:$0xff]
        %v2832 = vld [vmem:[#allocation16 + $0xc8] sm:$0xff]
        %v2833 = vld [vmem:[#allocation16 + $0xd0] sm:$0xff]
        %v2834 = vld [vmem:[#allocation16 + $0xd8] sm:$0xff]
        %v2835 = vld [vmem:[#allocation16 + $0xe0] sm:$0xff]
        %v2836 = vld [vmem:[#allocation16 + $0xe8] sm:$0xff]
        %v2837 = vld [vmem:[#allocation16 + $0xf0] sm:$0xff]
        %v2838 = vld [vmem:[#allocation16 + $0xf8] sm:$0xff]
        %s2839 = scalar_lea.vmem %s10, 1
        %v2840 = vld [vmem:[%s2839] sm:$0x1]
        %v2842 = vsel %vm2768, %v2840, 0
        %2844 = vmatpush.bf16.msra.mxu0 0
        %2845 = vmatpush.bf16.msra.mxu0 0
        %2846 = vmatpush.bf16.msra.mxu0 0
        %2847 = vmatpush.bf16.msra.mxu0 0
        %2848 = vmatpush.bf16.msra.mxu0 0
        %2849 = vmatpush.bf16.msra.mxu0 0
        %2850 = vmatpush.bf16.msra.mxu0 0
        %2851 = vmatpush.bf16.msra.mxu0 %v2774
        %2852 = vmatmul.bf16.gmra.mxu0 %v2842
        %v2853 = vpop.f32.mrf.mxu0
        %v2854 = vadd.f32 0.0, %v2853
        %v2855 = vpop.f32.mrf.mxu0
        %2856 = vdwg.mxu0
        %2857 = vmatpush.bf16.msra.mxu0 0
        %2858 = vmatpush.bf16.msra.mxu0 0
        %2859 = vmatpush.bf16.msra.mxu0 0
        %2860 = vmatpush.bf16.msra.mxu0 0
        %2861 = vmatpush.bf16.msra.mxu0 0
        %2862 = vmatpush.bf16.msra.mxu0 0
        %2863 = vmatpush.bf16.msra.mxu0 0
        %2864 = vmatpush.bf16.msra.mxu0 %v2777
        %2865 = vmatmul.bf16.gmra.mxu0 %v2842
        %v2866 = vpop.f32.mrf.mxu0
        %v2867 = vadd.f32 0.0, %v2866
        %v2868 = vpop.f32.mrf.mxu0
        %2869 = vdwg.mxu0
        %v2870 = vpack.c.bf16 %v2854, %v2854
        %v2871 = vpack.c.bf16 %v2867, %v2867
        %s2872 = scalar_lea.vmem [#allocation16], 256
        %v2873 = vld [vmem:[%s2872] sm:$0xff]
        %v2874 = vld [vmem:[%s2872 + $0x8] sm:$0xff]
        %v2875 = vld [vmem:[%s2872 + $0x10] sm:$0xff]
        %v2876 = vld [vmem:[%s2872 + $0x18] sm:$0xff]
        %v2877 = vld [vmem:[%s2872 + $0x20] sm:$0xff]
        %v2878 = vld [vmem:[%s2872 + $0x28] sm:$0xff]
        %v2879 = vld [vmem:[%s2872 + $0x30] sm:$0xff]
        %v2880 = vld [vmem:[%s2872 + $0x38] sm:$0xff]
        %v2881 = vld [vmem:[%s2872 + $0x40] sm:$0xff]
        %v2882 = vld [vmem:[%s2872 + $0x48] sm:$0xff]
        %v2883 = vld [vmem:[%s2872 + $0x50] sm:$0xff]
        %v2884 = vld [vmem:[%s2872 + $0x58] sm:$0xff]
        %v2885 = vld [vmem:[%s2872 + $0x60] sm:$0xff]
        %v2886 = vld [vmem:[%s2872 + $0x68] sm:$0xff]
        %v2887 = vld [vmem:[%s2872 + $0x70] sm:$0xff]
        %v2888 = vld [vmem:[%s2872 + $0x78] sm:$0xff]
        %v2889 = vld [vmem:[%s2872 + $0x80] sm:$0xff]
        %v2890 = vld [vmem:[%s2872 + $0x88] sm:$0xff]
        %v2891 = vld [vmem:[%s2872 + $0x90] sm:$0xff]
        %v2892 = vld [vmem:[%s2872 + $0x98] sm:$0xff]
        %v2893 = vld [vmem:[%s2872 + $0xa0] sm:$0xff]
        %v2894 = vld [vmem:[%s2872 + $0xa8] sm:$0xff]
        %v2895 = vld [vmem:[%s2872 + $0xb0] sm:$0xff]
        %v2896 = vld [vmem:[%s2872 + $0xb8] sm:$0xff]
        %v2897 = vld [vmem:[%s2872 + $0xc0] sm:$0xff]
        %v2898 = vld [vmem:[%s2872 + $0xc8] sm:$0xff]
        %v2899 = vld [vmem:[%s2872 + $0xd0] sm:$0xff]
        %v2900 = vld [vmem:[%s2872 + $0xd8] sm:$0xff]
        %v2901 = vld [vmem:[%s2872 + $0xe0] sm:$0xff]
        %v2902 = vld [vmem:[%s2872 + $0xe8] sm:$0xff]
        %v2903 = vld [vmem:[%s2872 + $0xf0] sm:$0xff]
        %v2904 = vld [vmem:[%s2872 + $0xf8] sm:$0xff]
        %v2937 = vunpack.c.l.b16 %v2873
        %v2938 = vunpack.c.h.b16 %v2873
        %v2939 = vunpack.c.l.b16 %v2874
        %v2940 = vunpack.c.h.b16 %v2874
        %v2941 = vunpack.c.l.b16 %v2875
        %v2942 = vunpack.c.h.b16 %v2875
        %v2943 = vunpack.c.l.b16 %v2876
        %v2944 = vunpack.c.h.b16 %v2876
        %v2945 = vunpack.c.l.b16 %v2877
        %v2946 = vunpack.c.h.b16 %v2877
        %v2947 = vunpack.c.l.b16 %v2878
        %v2948 = vunpack.c.h.b16 %v2878
        %v2949 = vunpack.c.l.b16 %v2879
        %v2950 = vunpack.c.h.b16 %v2879
        %v2951 = vunpack.c.l.b16 %v2880
        %v2952 = vunpack.c.h.b16 %v2880
        %v2953 = vunpack.c.l.b16 %v2881
        %v2954 = vunpack.c.h.b16 %v2881
        %v2955 = vunpack.c.l.b16 %v2882
        %v2956 = vunpack.c.h.b16 %v2882
        %v2957 = vunpack.c.l.b16 %v2883
        %v2958 = vunpack.c.h.b16 %v2883
        %v2959 = vunpack.c.l.b16 %v2884
        %v2960 = vunpack.c.h.b16 %v2884
        %v2961 = vunpack.c.l.b16 %v2885
        %v2962 = vunpack.c.h.b16 %v2885
        %v2963 = vunpack.c.l.b16 %v2886
        %v2964 = vunpack.c.h.b16 %v2886
        %v2965 = vunpack.c.l.b16 %v2887
        %v2966 = vunpack.c.h.b16 %v2887
        %v2967 = vunpack.c.l.b16 %v2888
        %v2968 = vunpack.c.h.b16 %v2888
        %v2969 = vunpack.c.l.b16 %v2889
        %v2970 = vunpack.c.h.b16 %v2889
        %v2971 = vunpack.c.l.b16 %v2890
        %v2972 = vunpack.c.h.b16 %v2890
        %v2973 = vunpack.c.l.b16 %v2891
        %v2974 = vunpack.c.h.b16 %v2891
        %v2975 = vunpack.c.l.b16 %v2892
        %v2976 = vunpack.c.h.b16 %v2892
        %v2977 = vunpack.c.l.b16 %v2893
        %v2978 = vunpack.c.h.b16 %v2893
        %v2979 = vunpack.c.l.b16 %v2894
        %v2980 = vunpack.c.h.b16 %v2894
        %v2981 = vunpack.c.l.b16 %v2895
        %v2982 = vunpack.c.h.b16 %v2895
        %v2983 = vunpack.c.l.b16 %v2896
        %v2984 = vunpack.c.h.b16 %v2896
        %v2985 = vunpack.c.l.b16 %v2897
        %v2986 = vunpack.c.h.b16 %v2897
        %v2987 = vunpack.c.l.b16 %v2898
        %v2988 = vunpack.c.h.b16 %v2898
        %v2989 = vunpack.c.l.b16 %v2899
        %v2990 = vunpack.c.h.b16 %v2899
        %v2991 = vunpack.c.l.b16 %v2900
        %v2992 = vunpack.c.h.b16 %v2900
        %v2993 = vunpack.c.l.b16 %v2901
        %v2994 = vunpack.c.h.b16 %v2901
        %v2995 = vunpack.c.l.b16 %v2902
        %v2996 = vunpack.c.h.b16 %v2902
        %v2997 = vunpack.c.l.b16 %v2903
        %v2998 = vunpack.c.h.b16 %v2903
        %v2999 = vunpack.c.l.b16 %v2904
        %v3000 = vunpack.c.h.b16 %v2904
        %v3001 = vpack.c.b16 %v2939, %v2937
        %v3002 = vpack.c.b16 %v2940, %v2938
        %v3003 = vpack.c.b16 %v2943, %v2941
        %v3004 = vpack.c.b16 %v2944, %v2942
        %v3005 = vpack.c.b16 %v2947, %v2945
        %v3006 = vpack.c.b16 %v2948, %v2946
        %v3007 = vpack.c.b16 %v2951, %v2949
        %v3008 = vpack.c.b16 %v2952, %v2950
        %v3009 = vpack.c.b16 %v2955, %v2953
        %v3010 = vpack.c.b16 %v2956, %v2954
        %v3011 = vpack.c.b16 %v2959, %v2957
        %v3012 = vpack.c.b16 %v2960, %v2958
        %v3013 = vpack.c.b16 %v2963, %v2961
        %v3014 = vpack.c.b16 %v2964, %v2962
        %v3015 = vpack.c.b16 %v2967, %v2965
        %v3016 = vpack.c.b16 %v2968, %v2966
        %v3017 = vpack.c.b16 %v2971, %v2969
        %v3018 = vpack.c.b16 %v2972, %v2970
        %v3019 = vpack.c.b16 %v2975, %v2973
        %v3020 = vpack.c.b16 %v2976, %v2974
        %v3021 = vpack.c.b16 %v2979, %v2977
        %v3022 = vpack.c.b16 %v2980, %v2978
        %v3023 = vpack.c.b16 %v2983, %v2981
        %v3024 = vpack.c.b16 %v2984, %v2982
        %v3025 = vpack.c.b16 %v2987, %v2985
        %v3026 = vpack.c.b16 %v2988, %v2986
        %v3027 = vpack.c.b16 %v2991, %v2989
        %v3028 = vpack.c.b16 %v2992, %v2990
        %v3029 = vpack.c.b16 %v2995, %v2993
        %v3030 = vpack.c.b16 %v2996, %v2994
        %v3031 = vpack.c.b16 %v2999, %v2997
        %v3032 = vpack.c.b16 %v3000, %v2998
        %3065 = vmatpush.bf16.msra.mxu0 %v3015
        %3066 = vmatpush.bf16.msra.mxu0 %v3013
        %3067 = vmatpush.bf16.msra.mxu0 %v3011
        %3068 = vmatpush.bf16.msra.mxu0 %v3009
        %3069 = vmatpush.bf16.msra.mxu0 %v3007
        %3070 = vmatpush.bf16.msra.mxu0 %v3005
        %3071 = vmatpush.bf16.msra.mxu0 %v3003
        %3072 = vmatpush.bf16.msra.mxu0 %v3001
        %3073 = vmatmul.bf16.gmra.mxu0 %v2870
        %v3074 = vpop.f32.mrf.mxu0
        %v3075 = vadd.f32 0.0, %v3074
        %v3076 = vpop.f32.mrf.mxu0
        %3077 = vdwg.mxu0
        %3078 = vmatpush.bf16.msra.mxu0 %v3031
        %3079 = vmatpush.bf16.msra.mxu0 %v3029
        %3080 = vmatpush.bf16.msra.mxu0 %v3027
        %3081 = vmatpush.bf16.msra.mxu0 %v3025
        %3082 = vmatpush.bf16.msra.mxu0 %v3023
        %3083 = vmatpush.bf16.msra.mxu0 %v3021
        %3084 = vmatpush.bf16.msra.mxu0 %v3019
        %3085 = vmatpush.bf16.msra.mxu0 %v3017
        %3086 = vmatmul.bf16.gmra.mxu0 %v2871
        %v3087 = vpop.f32.mrf.mxu0
        %v3088 = vadd.f32 %v3075, %v3087
        %v3089 = vpop.f32.mrf.mxu0
        %3090 = vdwg.mxu0
        %3091 = vmatpush.bf16.msra.mxu0 %v3016
        %3092 = vmatpush.bf16.msra.mxu0 %v3014
        %3093 = vmatpush.bf16.msra.mxu0 %v3012
        %3094 = vmatpush.bf16.msra.mxu0 %v3010
        %3095 = vmatpush.bf16.msra.mxu0 %v3008
        %3096 = vmatpush.bf16.msra.mxu0 %v3006
        %3097 = vmatpush.bf16.msra.mxu0 %v3004
        %3098 = vmatpush.bf16.msra.mxu0 %v3002
        %3099 = vmatmul.bf16.gmra.mxu0 %v2870
        %v3100 = vpop.f32.mrf.mxu0
        %v3101 = vadd.f32 0.0, %v3100
        %v3102 = vpop.f32.mrf.mxu0
        %3103 = vdwg.mxu0
        %3104 = vmatpush.bf16.msra.mxu0 %v3032
        %3105 = vmatpush.bf16.msra.mxu0 %v3030
        %3106 = vmatpush.bf16.msra.mxu0 %v3028
        %3107 = vmatpush.bf16.msra.mxu0 %v3026
        %3108 = vmatpush.bf16.msra.mxu0 %v3024
        %3109 = vmatpush.bf16.msra.mxu0 %v3022
        %3110 = vmatpush.bf16.msra.mxu0 %v3020
        %3111 = vmatpush.bf16.msra.mxu0 %v3018
        %3112 = vmatmul.bf16.gmra.mxu0 %v2871
        %v3113 = vpop.f32.mrf.mxu0
        %v3114 = vadd.f32 %v3101, %v3113
        %v3115 = vpop.f32.mrf.mxu0
        %3116 = vdwg.mxu0
        %v3149 = vunpack.c.l.b16 %v2807
        %v3150 = vunpack.c.h.b16 %v2807
        %v3151 = vunpack.c.l.b16 %v2808
        %v3152 = vunpack.c.h.b16 %v2808
        %v3153 = vunpack.c.l.b16 %v2809
        %v3154 = vunpack.c.h.b16 %v2809
        %v3155 = vunpack.c.l.b16 %v2810
        %v3156 = vunpack.c.h.b16 %v2810
        %v3157 = vunpack.c.l.b16 %v2811
        %v3158 = vunpack.c.h.b16 %v2811
        %v3159 = vunpack.c.l.b16 %v2812
        %v3160 = vunpack.c.h.b16 %v2812
        %v3161 = vunpack.c.l.b16 %v2813
        %v3162 = vunpack.c.h.b16 %v2813
        %v3163 = vunpack.c.l.b16 %v2814
        %v3164 = vunpack.c.h.b16 %v2814
        %v3165 = vunpack.c.l.b16 %v2815
        %v3166 = vunpack.c.h.b16 %v2815
        %v3167 = vunpack.c.l.b16 %v2816
        %v3168 = vunpack.c.h.b16 %v2816
        %v3169 = vunpack.c.l.b16 %v2817
        %v3170 = vunpack.c.h.b16 %v2817
        %v3171 = vunpack.c.l.b16 %v2818
        %v3172 = vunpack.c.h.b16 %v2818
        %v3173 = vunpack.c.l.b16 %v2819
        %v3174 = vunpack.c.h.b16 %v2819
        %v3175 = vunpack.c.l.b16 %v2820
        %v3176 = vunpack.c.h.b16 %v2820
        %v3177 = vunpack.c.l.b16 %v2821
        %v3178 = vunpack.c.h.b16 %v2821
        %v3179 = vunpack.c.l.b16 %v2822
        %v3180 = vunpack.c.h.b16 %v2822
        %v3181 = vunpack.c.l.b16 %v2823
        %v3182 = vunpack.c.h.b16 %v2823
        %v3183 = vunpack.c.l.b16 %v2824
        %v3184 = vunpack.c.h.b16 %v2824
        %v3185 = vunpack.c.l.b16 %v2825
        %v3186 = vunpack.c.h.b16 %v2825
        %v3187 = vunpack.c.l.b16 %v2826
        %v3188 = vunpack.c.h.b16 %v2826
        %v3189 = vunpack.c.l.b16 %v2827
        %v3190 = vunpack.c.h.b16 %v2827
        %v3191 = vunpack.c.l.b16 %v2828
        %v3192 = vunpack.c.h.b16 %v2828
        %v3193 = vunpack.c.l.b16 %v2829
        %v3194 = vunpack.c.h.b16 %v2829
        %v3195 = vunpack.c.l.b16 %v2830
        %v3196 = vunpack.c.h.b16 %v2830
        %v3197 = vunpack.c.l.b16 %v2831
        %v3198 = vunpack.c.h.b16 %v2831
        %v3199 = vunpack.c.l.b16 %v2832
        %v3200 = vunpack.c.h.b16 %v2832
        %v3201 = vunpack.c.l.b16 %v2833
        %v3202 = vunpack.c.h.b16 %v2833
        %v3203 = vunpack.c.l.b16 %v2834
        %v3204 = vunpack.c.h.b16 %v2834
        %v3205 = vunpack.c.l.b16 %v2835
        %v3206 = vunpack.c.h.b16 %v2835
        %v3207 = vunpack.c.l.b16 %v2836
        %v3208 = vunpack.c.h.b16 %v2836
        %v3209 = vunpack.c.l.b16 %v2837
        %v3210 = vunpack.c.h.b16 %v2837
        %v3211 = vunpack.c.l.b16 %v2838
        %v3212 = vunpack.c.h.b16 %v2838
        %v3213 = vpack.c.b16 %v3151, %v3149
        %v3214 = vpack.c.b16 %v3152, %v3150
        %v3215 = vpack.c.b16 %v3155, %v3153
        %v3216 = vpack.c.b16 %v3156, %v3154
        %v3217 = vpack.c.b16 %v3159, %v3157
        %v3218 = vpack.c.b16 %v3160, %v3158
        %v3219 = vpack.c.b16 %v3163, %v3161
        %v3220 = vpack.c.b16 %v3164, %v3162
        %v3221 = vpack.c.b16 %v3167, %v3165
        %v3222 = vpack.c.b16 %v3168, %v3166
        %v3223 = vpack.c.b16 %v3171, %v3169
        %v3224 = vpack.c.b16 %v3172, %v3170
        %v3225 = vpack.c.b16 %v3175, %v3173
        %v3226 = vpack.c.b16 %v3176, %v3174
        %v3227 = vpack.c.b16 %v3179, %v3177
        %v3228 = vpack.c.b16 %v3180, %v3178
        %v3229 = vpack.c.b16 %v3183, %v3181
        %v3230 = vpack.c.b16 %v3184, %v3182
        %v3231 = vpack.c.b16 %v3187, %v3185
        %v3232 = vpack.c.b16 %v3188, %v3186
        %v3233 = vpack.c.b16 %v3191, %v3189
        %v3234 = vpack.c.b16 %v3192, %v3190
        %v3235 = vpack.c.b16 %v3195, %v3193
        %v3236 = vpack.c.b16 %v3196, %v3194
        %v3237 = vpack.c.b16 %v3199, %v3197
        %v3238 = vpack.c.b16 %v3200, %v3198
        %v3239 = vpack.c.b16 %v3203, %v3201
        %v3240 = vpack.c.b16 %v3204, %v3202
        %v3241 = vpack.c.b16 %v3207, %v3205
        %v3242 = vpack.c.b16 %v3208, %v3206
        %v3243 = vpack.c.b16 %v3211, %v3209
        %v3244 = vpack.c.b16 %v3212, %v3210
        %3277 = vmatpush.bf16.msra.mxu0 %v3227
        %3278 = vmatpush.bf16.msra.mxu0 %v3225
        %3279 = vmatpush.bf16.msra.mxu0 %v3223
        %3280 = vmatpush.bf16.msra.mxu0 %v3221
        %3281 = vmatpush.bf16.msra.mxu0 %v3219
        %3282 = vmatpush.bf16.msra.mxu0 %v3217
        %3283 = vmatpush.bf16.msra.mxu0 %v3215
        %3284 = vmatpush.bf16.msra.mxu0 %v3213
        %3285 = vmatmul.bf16.gmra.mxu0 %v2805
        %v3286 = vpop.f32.mrf.mxu0
        %v3287 = vadd.f32 %v3088, %v3286
        %v3288 = vpop.f32.mrf.mxu0
        %3289 = vdwg.mxu0
        %3290 = vmatpush.bf16.msra.mxu0 %v3243
        %3291 = vmatpush.bf16.msra.mxu0 %v3241
        %3292 = vmatpush.bf16.msra.mxu0 %v3239
        %3293 = vmatpush.bf16.msra.mxu0 %v3237
        %3294 = vmatpush.bf16.msra.mxu0 %v3235
        %3295 = vmatpush.bf16.msra.mxu0 %v3233
        %3296 = vmatpush.bf16.msra.mxu0 %v3231
        %3297 = vmatpush.bf16.msra.mxu0 %v3229
        %3298 = vmatmul.bf16.gmra.mxu0 %v2806
        %v3299 = vpop.f32.mrf.mxu0
        %v3300 = vadd.f32 %v3287, %v3299
        %v3301 = vpop.f32.mrf.mxu0
        %3302 = vdwg.mxu0
        %3303 = vmatpush.bf16.msra.mxu0 %v3228
        %3304 = vmatpush.bf16.msra.mxu0 %v3226
        %3305 = vmatpush.bf16.msra.mxu0 %v3224
        %3306 = vmatpush.bf16.msra.mxu0 %v3222
        %3307 = vmatpush.bf16.msra.mxu0 %v3220
        %3308 = vmatpush.bf16.msra.mxu0 %v3218
        %3309 = vmatpush.bf16.msra.mxu0 %v3216
        %3310 = vmatpush.bf16.msra.mxu0 %v3214
        %3311 = vmatmul.bf16.gmra.mxu0 %v2805
        %v3312 = vpop.f32.mrf.mxu0
        %v3313 = vadd.f32 %v3114, %v3312
        %v3314 = vpop.f32.mrf.mxu0
        %3315 = vdwg.mxu0
        %3316 = vmatpush.bf16.msra.mxu0 %v3244
        %3317 = vmatpush.bf16.msra.mxu0 %v3242
        %3318 = vmatpush.bf16.msra.mxu0 %v3240
        %3319 = vmatpush.bf16.msra.mxu0 %v3238
        %3320 = vmatpush.bf16.msra.mxu0 %v3236
        %3321 = vmatpush.bf16.msra.mxu0 %v3234
        %3322 = vmatpush.bf16.msra.mxu0 %v3232
        %3323 = vmatpush.bf16.msra.mxu0 %v3230
        %3324 = vmatmul.bf16.gmra.mxu0 %v2806
        %v3325 = vpop.f32.mrf.mxu0
        %v3326 = vadd.f32 %v3313, %v3325
        %v3327 = vpop.f32.mrf.mxu0
        %3328 = vdwg.mxu0
        %s3329 = scalar_lea.vmem %s10, 2
        %v3330 = vld [vmem:[%s3329] sm:$0x1]
        %v3332 = vsel %vm2768, %v3330, 0
        %3334 = vmatpush.bf16.msra.mxu0 0
        %3335 = vmatpush.bf16.msra.mxu0 0
        %3336 = vmatpush.bf16.msra.mxu0 0
        %3337 = vmatpush.bf16.msra.mxu0 0
        %3338 = vmatpush.bf16.msra.mxu0 0
        %3339 = vmatpush.bf16.msra.mxu0 0
        %3340 = vmatpush.bf16.msra.mxu0 0
        %3341 = vmatpush.bf16.msra.mxu0 %v2774
        %3342 = vmatmul.bf16.gmra.mxu0 %v3332
        %v3343 = vpop.f32.mrf.mxu0
        %v3344 = vadd.f32 0.0, %v3343
        %v3345 = vpop.f32.mrf.mxu0
        %3346 = vdwg.mxu0
        %3347 = vmatpush.bf16.msra.mxu0 0
        %3348 = vmatpush.bf16.msra.mxu0 0
        %3349 = vmatpush.bf16.msra.mxu0 0
        %3350 = vmatpush.bf16.msra.mxu0 0
        %3351 = vmatpush.bf16.msra.mxu0 0
        %3352 = vmatpush.bf16.msra.mxu0 0
        %3353 = vmatpush.bf16.msra.mxu0 0
        %3354 = vmatpush.bf16.msra.mxu0 %v2777
        %3355 = vmatmul.bf16.gmra.mxu0 %v3332
        %v3356 = vpop.f32.mrf.mxu0
        %v3357 = vadd.f32 0.0, %v3356
        %v3358 = vpop.f32.mrf.mxu0
        %3359 = vdwg.mxu0
        %v3360 = vpack.c.bf16 %v3344, %v3344
        %v3361 = vpack.c.bf16 %v3357, %v3357
        %s3362 = scalar_lea.vmem [#allocation16], 512
        %v3363 = vld [vmem:[%s3362] sm:$0xff]
        %v3364 = vld [vmem:[%s3362 + $0x8] sm:$0xff]
        %v3365 = vld [vmem:[%s3362 + $0x10] sm:$0xff]
        %v3366 = vld [vmem:[%s3362 + $0x18] sm:$0xff]
        %v3367 = vld [vmem:[%s3362 + $0x20] sm:$0xff]
        %v3368 = vld [vmem:[%s3362 + $0x28] sm:$0xff]
        %v3369 = vld [vmem:[%s3362 + $0x30] sm:$0xff]
        %v3370 = vld [vmem:[%s3362 + $0x38] sm:$0xff]
        %v3371 = vld [vmem:[%s3362 + $0x40] sm:$0xff]
        %v3372 = vld [vmem:[%s3362 + $0x48] sm:$0xff]
        %v3373 = vld [vmem:[%s3362 + $0x50] sm:$0xff]
        %v3374 = vld [vmem:[%s3362 + $0x58] sm:$0xff]
        %v3375 = vld [vmem:[%s3362 + $0x60] sm:$0xff]
        %v3376 = vld [vmem:[%s3362 + $0x68] sm:$0xff]
        %v3377 = vld [vmem:[%s3362 + $0x70] sm:$0xff]
        %v3378 = vld [vmem:[%s3362 + $0x78] sm:$0xff]
        %v3379 = vld [vmem:[%s3362 + $0x80] sm:$0xff]
        %v3380 = vld [vmem:[%s3362 + $0x88] sm:$0xff]
        %v3381 = vld [vmem:[%s3362 + $0x90] sm:$0xff]
        %v3382 = vld [vmem:[%s3362 + $0x98] sm:$0xff]
        %v3383 = vld [vmem:[%s3362 + $0xa0] sm:$0xff]
        %v3384 = vld [vmem:[%s3362 + $0xa8] sm:$0xff]
        %v3385 = vld [vmem:[%s3362 + $0xb0] sm:$0xff]
        %v3386 = vld [vmem:[%s3362 + $0xb8] sm:$0xff]
        %v3387 = vld [vmem:[%s3362 + $0xc0] sm:$0xff]
        %v3388 = vld [vmem:[%s3362 + $0xc8] sm:$0xff]
        %v3389 = vld [vmem:[%s3362 + $0xd0] sm:$0xff]
        %v3390 = vld [vmem:[%s3362 + $0xd8] sm:$0xff]
        %v3391 = vld [vmem:[%s3362 + $0xe0] sm:$0xff]
        %v3392 = vld [vmem:[%s3362 + $0xe8] sm:$0xff]
        %v3393 = vld [vmem:[%s3362 + $0xf0] sm:$0xff]
        %v3394 = vld [vmem:[%s3362 + $0xf8] sm:$0xff]
        %v3427 = vunpack.c.l.b16 %v3363
        %v3428 = vunpack.c.h.b16 %v3363
        %v3429 = vunpack.c.l.b16 %v3364
        %v3430 = vunpack.c.h.b16 %v3364
        %v3431 = vunpack.c.l.b16 %v3365
        %v3432 = vunpack.c.h.b16 %v3365
        %v3433 = vunpack.c.l.b16 %v3366
        %v3434 = vunpack.c.h.b16 %v3366
        %v3435 = vunpack.c.l.b16 %v3367
        %v3436 = vunpack.c.h.b16 %v3367
        %v3437 = vunpack.c.l.b16 %v3368
        %v3438 = vunpack.c.h.b16 %v3368
        %v3439 = vunpack.c.l.b16 %v3369
        %v3440 = vunpack.c.h.b16 %v3369
        %v3441 = vunpack.c.l.b16 %v3370
        %v3442 = vunpack.c.h.b16 %v3370
        %v3443 = vunpack.c.l.b16 %v3371
        %v3444 = vunpack.c.h.b16 %v3371
        %v3445 = vunpack.c.l.b16 %v3372
        %v3446 = vunpack.c.h.b16 %v3372
        %v3447 = vunpack.c.l.b16 %v3373
        %v3448 = vunpack.c.h.b16 %v3373
        %v3449 = vunpack.c.l.b16 %v3374
        %v3450 = vunpack.c.h.b16 %v3374
        %v3451 = vunpack.c.l.b16 %v3375
        %v3452 = vunpack.c.h.b16 %v3375
        %v3453 = vunpack.c.l.b16 %v3376
        %v3454 = vunpack.c.h.b16 %v3376
        %v3455 = vunpack.c.l.b16 %v3377
        %v3456 = vunpack.c.h.b16 %v3377
        %v3457 = vunpack.c.l.b16 %v3378
        %v3458 = vunpack.c.h.b16 %v3378
        %v3459 = vunpack.c.l.b16 %v3379
        %v3460 = vunpack.c.h.b16 %v3379
        %v3461 = vunpack.c.l.b16 %v3380
        %v3462 = vunpack.c.h.b16 %v3380
        %v3463 = vunpack.c.l.b16 %v3381
        %v3464 = vunpack.c.h.b16 %v3381
        %v3465 = vunpack.c.l.b16 %v3382
        %v3466 = vunpack.c.h.b16 %v3382
        %v3467 = vunpack.c.l.b16 %v3383
        %v3468 = vunpack.c.h.b16 %v3383
        %v3469 = vunpack.c.l.b16 %v3384
        %v3470 = vunpack.c.h.b16 %v3384
        %v3471 = vunpack.c.l.b16 %v3385
        %v3472 = vunpack.c.h.b16 %v3385
        %v3473 = vunpack.c.l.b16 %v3386
        %v3474 = vunpack.c.h.b16 %v3386
        %v3475 = vunpack.c.l.b16 %v3387
        %v3476 = vunpack.c.h.b16 %v3387
        %v3477 = vunpack.c.l.b16 %v3388
        %v3478 = vunpack.c.h.b16 %v3388
        %v3479 = vunpack.c.l.b16 %v3389
        %v3480 = vunpack.c.h.b16 %v3389
        %v3481 = vunpack.c.l.b16 %v3390
        %v3482 = vunpack.c.h.b16 %v3390
        %v3483 = vunpack.c.l.b16 %v3391
        %v3484 = vunpack.c.h.b16 %v3391
        %v3485 = vunpack.c.l.b16 %v3392
        %v3486 = vunpack.c.h.b16 %v3392
        %v3487 = vunpack.c.l.b16 %v3393
        %v3488 = vunpack.c.h.b16 %v3393
        %v3489 = vunpack.c.l.b16 %v3394
        %v3490 = vunpack.c.h.b16 %v3394
        %v3491 = vpack.c.b16 %v3429, %v3427
        %v3492 = vpack.c.b16 %v3430, %v3428
        %v3493 = vpack.c.b16 %v3433, %v3431
        %v3494 = vpack.c.b16 %v3434, %v3432
        %v3495 = vpack.c.b16 %v3437, %v3435
        %v3496 = vpack.c.b16 %v3438, %v3436
        %v3497 = vpack.c.b16 %v3441, %v3439
        %v3498 = vpack.c.b16 %v3442, %v3440
        %v3499 = vpack.c.b16 %v3445, %v3443
        %v3500 = vpack.c.b16 %v3446, %v3444
        %v3501 = vpack.c.b16 %v3449, %v3447
        %v3502 = vpack.c.b16 %v3450, %v3448
        %v3503 = vpack.c.b16 %v3453, %v3451
        %v3504 = vpack.c.b16 %v3454, %v3452
        %v3505 = vpack.c.b16 %v3457, %v3455
        %v3506 = vpack.c.b16 %v3458, %v3456
        %v3507 = vpack.c.b16 %v3461, %v3459
        %v3508 = vpack.c.b16 %v3462, %v3460
        %v3509 = vpack.c.b16 %v3465, %v3463
        %v3510 = vpack.c.b16 %v3466, %v3464
        %v3511 = vpack.c.b16 %v3469, %v3467
        %v3512 = vpack.c.b16 %v3470, %v3468
        %v3513 = vpack.c.b16 %v3473, %v3471
        %v3514 = vpack.c.b16 %v3474, %v3472
        %v3515 = vpack.c.b16 %v3477, %v3475
        %v3516 = vpack.c.b16 %v3478, %v3476
        %v3517 = vpack.c.b16 %v3481, %v3479
        %v3518 = vpack.c.b16 %v3482, %v3480
        %v3519 = vpack.c.b16 %v3485, %v3483
        %v3520 = vpack.c.b16 %v3486, %v3484
        %v3521 = vpack.c.b16 %v3489, %v3487
        %v3522 = vpack.c.b16 %v3490, %v3488
        %3555 = vmatpush.bf16.msra.mxu0 %v3505
        %3556 = vmatpush.bf16.msra.mxu0 %v3503
        %3557 = vmatpush.bf16.msra.mxu0 %v3501
        %3558 = vmatpush.bf16.msra.mxu0 %v3499
        %3559 = vmatpush.bf16.msra.mxu0 %v3497
        %3560 = vmatpush.bf16.msra.mxu0 %v3495
        %3561 = vmatpush.bf16.msra.mxu0 %v3493
        %3562 = vmatpush.bf16.msra.mxu0 %v3491
        %3563 = vmatmul.bf16.gmra.mxu0 %v3360
        %v3564 = vpop.f32.mrf.mxu0
        %v3565 = vadd.f32 0.0, %v3564
        %v3566 = vpop.f32.mrf.mxu0
        %3567 = vdwg.mxu0
        %3568 = vmatpush.bf16.msra.mxu0 %v3521
        %3569 = vmatpush.bf16.msra.mxu0 %v3519
        %3570 = vmatpush.bf16.msra.mxu0 %v3517
        %3571 = vmatpush.bf16.msra.mxu0 %v3515
        %3572 = vmatpush.bf16.msra.mxu0 %v3513
        %3573 = vmatpush.bf16.msra.mxu0 %v3511
        %3574 = vmatpush.bf16.msra.mxu0 %v3509
        %3575 = vmatpush.bf16.msra.mxu0 %v3507
        %3576 = vmatmul.bf16.gmra.mxu0 %v3361
        %v3577 = vpop.f32.mrf.mxu0
        %v3578 = vadd.f32 %v3565, %v3577
        %v3579 = vpop.f32.mrf.mxu0
        %3580 = vdwg.mxu0
        %3581 = vmatpush.bf16.msra.mxu0 %v3506
        %3582 = vmatpush.bf16.msra.mxu0 %v3504
        %3583 = vmatpush.bf16.msra.mxu0 %v3502
        %3584 = vmatpush.bf16.msra.mxu0 %v3500
        %3585 = vmatpush.bf16.msra.mxu0 %v3498
        %3586 = vmatpush.bf16.msra.mxu0 %v3496
        %3587 = vmatpush.bf16.msra.mxu0 %v3494
        %3588 = vmatpush.bf16.msra.mxu0 %v3492
        %3589 = vmatmul.bf16.gmra.mxu0 %v3360
        %v3590 = vpop.f32.mrf.mxu0
        %v3591 = vadd.f32 0.0, %v3590
        %v3592 = vpop.f32.mrf.mxu0
        %3593 = vdwg.mxu0
        %3594 = vmatpush.bf16.msra.mxu0 %v3522
        %3595 = vmatpush.bf16.msra.mxu0 %v3520
        %3596 = vmatpush.bf16.msra.mxu0 %v3518
        %3597 = vmatpush.bf16.msra.mxu0 %v3516
        %3598 = vmatpush.bf16.msra.mxu0 %v3514
        %3599 = vmatpush.bf16.msra.mxu0 %v3512
        %3600 = vmatpush.bf16.msra.mxu0 %v3510
        %3601 = vmatpush.bf16.msra.mxu0 %v3508
        %3602 = vmatmul.bf16.gmra.mxu0 %v3361
        %v3603 = vpop.f32.mrf.mxu0
        %v3604 = vadd.f32 %v3591, %v3603
        %v3605 = vpop.f32.mrf.mxu0
        %3606 = vdwg.mxu0
        %v3607 = vadd.f32 %v3300, %v3578
        %v3608 = vadd.f32 %v3326, %v3604
        %v3609 = vld [vmem:[%s12] sm:$0x3]
        %v3611 = vperm.slane %v3609, 0
        %v3612 = vperm.slane %v3609, 1
        %v3615 = vadd.f32 %v3607, %v3611
        %v3616 = vadd.f32 %v3608, %v3612
        %vm3617 = vcmp.gt.f32.partialorder %v3615, 0.0
        %vm3618 = vcmp.gt.f32.partialorder %v3616, 0.0
        %v3619 = vmul.f32 %v3615, 0.2
        %v3620 = vmul.f32 %v3616, 0.2
        %v3621 = vsel %vm3617, %v3615, %v3619
        %v3622 = vsel %vm3618, %v3616, %v3620
        %s3623 = scalar_lea.vmem %s12, 2
        %v3624 = vld [vmem:[%s3623] sm:$0x3]
        %v3626 = vperm.slane %v3624, 0
        %v3627 = vperm.slane %v3624, 1
        %v3630 = vmul.f32 %v3621, %v3626
        %v3631 = vmul.f32 %v3622, %v3627
        %s3632 = scalar_lea.vmem %s12, 4
        %v3633 = vld [vmem:[%s3632] sm:$0x3]
        %v3635 = vperm.slane %v3633, 0
        %v3636 = vperm.slane %v3633, 1
        %v3639 = vadd.f32 %v3630, %v3635
        %v3640 = vadd.f32 %v3631, %v3636
        %v3641 = vpack.c.bf16 %v3639, %v3639
        %v3642 = vpack.c.bf16 %v3640, %v3640
        %v3643 = vld [vmem:[%s13] sm:$0x1]
        %vm3644 = vcmask 15360
        %v3646 = vsel %vm3644, %v3643, 0
        %vm3648 = vcmask 1040384
        %v3650 = vsel %vm3648, %v3641, 0
        %v3653 = vsel %vm3648, %v3642, 0
        %3655 = vmatpush.bf16.msra.mxu0 0
        %3656 = vmatpush.bf16.msra.mxu0 0
        %3657 = vmatpush.bf16.msra.mxu0 0
        %3658 = vmatpush.bf16.msra.mxu0 0
        %3659 = vmatpush.bf16.msra.mxu0 0
        %3660 = vmatpush.bf16.msra.mxu0 0
        %3661 = vmatpush.bf16.msra.mxu0 0
        %3662 = vmatpush.bf16.msra.mxu0 %v3650
        %3663 = vmatmul.bf16.gmra.mxu0 %v3646
        %v3664 = vpop.f32.mrf.mxu0
        %v3665 = vadd.f32 0.0, %v3664
        %v3666 = vpop.f32.mrf.mxu0
        %3667 = vdwg.mxu0
        %3668 = vmatpush.bf16.msra.mxu0 0
        %3669 = vmatpush.bf16.msra.mxu0 0
        %3670 = vmatpush.bf16.msra.mxu0 0
        %3671 = vmatpush.bf16.msra.mxu0 0
        %3672 = vmatpush.bf16.msra.mxu0 0
        %3673 = vmatpush.bf16.msra.mxu0 0
        %3674 = vmatpush.bf16.msra.mxu0 0
        %3675 = vmatpush.bf16.msra.mxu0 %v3653
        %3676 = vmatmul.bf16.gmra.mxu0 %v3646
        %v3677 = vpop.f32.mrf.mxu0
        %v3678 = vadd.f32 0.0, %v3677
        %v3679 = vpop.f32.mrf.mxu0
        %3680 = vdwg.mxu0
        %v3681 = vpack.c.bf16 %v3665, %v3665
        %v3682 = vpack.c.bf16 %v3678, %v3678
        %v3683 = vld [vmem:[#allocation18] sm:$0xf]
        %v3684 = vld [vmem:[#allocation18 + $0x4] sm:$0xf]
        %v3685 = vld [vmem:[#allocation18 + $0x8] sm:$0xf]
        %v3686 = vld [vmem:[#allocation18 + $0xc] sm:$0xf]
        %v3687 = vld [vmem:[#allocation18 + $0x10] sm:$0xf]
        %v3688 = vld [vmem:[#allocation18 + $0x14] sm:$0xf]
        %v3689 = vld [vmem:[#allocation18 + $0x18] sm:$0xf]
        %v3690 = vld [vmem:[#allocation18 + $0x1c] sm:$0xf]
        %v3691 = vld [vmem:[#allocation18 + $0x20] sm:$0xf]
        %v3692 = vld [vmem:[#allocation18 + $0x24] sm:$0xf]
        %v3693 = vld [vmem:[#allocation18 + $0x28] sm:$0xf]
        %v3694 = vld [vmem:[#allocation18 + $0x2c] sm:$0xf]
        %v3695 = vld [vmem:[#allocation18 + $0x30] sm:$0xf]
        %v3696 = vld [vmem:[#allocation18 + $0x34] sm:$0xf]
        %v3697 = vld [vmem:[#allocation18 + $0x38] sm:$0xf]
        %v3698 = vld [vmem:[#allocation18 + $0x3c] sm:$0xf]
        %v3699 = vld [vmem:[#allocation18 + $0x40] sm:$0xf]
        %v3700 = vld [vmem:[#allocation18 + $0x44] sm:$0xf]
        %v3701 = vld [vmem:[#allocation18 + $0x48] sm:$0xf]
        %v3702 = vld [vmem:[#allocation18 + $0x4c] sm:$0xf]
        %v3703 = vld [vmem:[#allocation18 + $0x50] sm:$0xf]
        %v3704 = vld [vmem:[#allocation18 + $0x54] sm:$0xf]
        %v3705 = vld [vmem:[#allocation18 + $0x58] sm:$0xf]
        %v3706 = vld [vmem:[#allocation18 + $0x5c] sm:$0xf]
        %v3707 = vld [vmem:[#allocation18 + $0x60] sm:$0xf]
        %v3708 = vld [vmem:[#allocation18 + $0x64] sm:$0xf]
        %v3709 = vld [vmem:[#allocation18 + $0x68] sm:$0xf]
        %v3710 = vld [vmem:[#allocation18 + $0x6c] sm:$0xf]
        %v3711 = vld [vmem:[#allocation18 + $0x70] sm:$0xf]
        %v3712 = vld [vmem:[#allocation18 + $0x74] sm:$0xf]
        %v3713 = vld [vmem:[#allocation18 + $0x78] sm:$0xf]
        %v3714 = vld [vmem:[#allocation18 + $0x7c] sm:$0xf]
        %s3715 = scalar_lea.vmem %s13, 1
        %v3716 = vld [vmem:[%s3715] sm:$0x1]
        %v3718 = vsel %vm3644, %v3716, 0
        %3720 = vmatpush.bf16.msra.mxu0 0
        %3721 = vmatpush.bf16.msra.mxu0 0
        %3722 = vmatpush.bf16.msra.mxu0 0
        %3723 = vmatpush.bf16.msra.mxu0 0
        %3724 = vmatpush.bf16.msra.mxu0 0
        %3725 = vmatpush.bf16.msra.mxu0 0
        %3726 = vmatpush.bf16.msra.mxu0 0
        %3727 = vmatpush.bf16.msra.mxu0 %v3650
        %3728 = vmatmul.bf16.gmra.mxu0 %v3718
        %v3729 = vpop.f32.mrf.mxu0
        %v3730 = vadd.f32 0.0, %v3729
        %v3731 = vpop.f32.mrf.mxu0
        %3732 = vdwg.mxu0
        %3733 = vmatpush.bf16.msra.mxu0 0
        %3734 = vmatpush.bf16.msra.mxu0 0
        %3735 = vmatpush.bf16.msra.mxu0 0
        %3736 = vmatpush.bf16.msra.mxu0 0
        %3737 = vmatpush.bf16.msra.mxu0 0
        %3738 = vmatpush.bf16.msra.mxu0 0
        %3739 = vmatpush.bf16.msra.mxu0 0
        %3740 = vmatpush.bf16.msra.mxu0 %v3653
        %3741 = vmatmul.bf16.gmra.mxu0 %v3718
        %v3742 = vpop.f32.mrf.mxu0
        %v3743 = vadd.f32 0.0, %v3742
        %v3744 = vpop.f32.mrf.mxu0
        %3745 = vdwg.mxu0
        %v3746 = vpack.c.bf16 %v3730, %v3730
        %v3747 = vpack.c.bf16 %v3743, %v3743
        %s3748 = scalar_lea.vmem [#allocation18], 128
        %v3749 = vld [vmem:[%s3748] sm:$0xf]
        %v3750 = vld [vmem:[%s3748 + $0x4] sm:$0xf]
        %v3751 = vld [vmem:[%s3748 + $0x8] sm:$0xf]
        %v3752 = vld [vmem:[%s3748 + $0xc] sm:$0xf]
        %v3753 = vld [vmem:[%s3748 + $0x10] sm:$0xf]
        %v3754 = vld [vmem:[%s3748 + $0x14] sm:$0xf]
        %v3755 = vld [vmem:[%s3748 + $0x18] sm:$0xf]
        %v3756 = vld [vmem:[%s3748 + $0x1c] sm:$0xf]
        %v3757 = vld [vmem:[%s3748 + $0x20] sm:$0xf]
        %v3758 = vld [vmem:[%s3748 + $0x24] sm:$0xf]
        %v3759 = vld [vmem:[%s3748 + $0x28] sm:$0xf]
        %v3760 = vld [vmem:[%s3748 + $0x2c] sm:$0xf]
        %v3761 = vld [vmem:[%s3748 + $0x30] sm:$0xf]
        %v3762 = vld [vmem:[%s3748 + $0x34] sm:$0xf]
        %v3763 = vld [vmem:[%s3748 + $0x38] sm:$0xf]
        %v3764 = vld [vmem:[%s3748 + $0x3c] sm:$0xf]
        %v3765 = vld [vmem:[%s3748 + $0x40] sm:$0xf]
        %v3766 = vld [vmem:[%s3748 + $0x44] sm:$0xf]
        %v3767 = vld [vmem:[%s3748 + $0x48] sm:$0xf]
        %v3768 = vld [vmem:[%s3748 + $0x4c] sm:$0xf]
        %v3769 = vld [vmem:[%s3748 + $0x50] sm:$0xf]
        %v3770 = vld [vmem:[%s3748 + $0x54] sm:$0xf]
        %v3771 = vld [vmem:[%s3748 + $0x58] sm:$0xf]
        %v3772 = vld [vmem:[%s3748 + $0x5c] sm:$0xf]
        %v3773 = vld [vmem:[%s3748 + $0x60] sm:$0xf]
        %v3774 = vld [vmem:[%s3748 + $0x64] sm:$0xf]
        %v3775 = vld [vmem:[%s3748 + $0x68] sm:$0xf]
        %v3776 = vld [vmem:[%s3748 + $0x6c] sm:$0xf]
        %v3777 = vld [vmem:[%s3748 + $0x70] sm:$0xf]
        %v3778 = vld [vmem:[%s3748 + $0x74] sm:$0xf]
        %v3779 = vld [vmem:[%s3748 + $0x78] sm:$0xf]
        %v3780 = vld [vmem:[%s3748 + $0x7c] sm:$0xf]
        %v3813 = vunpack.c.l.b16 %v3749
        %v3814 = vunpack.c.l.b16 %v3750
        %v3815 = vunpack.c.l.b16 %v3751
        %v3816 = vunpack.c.l.b16 %v3752
        %v3817 = vunpack.c.l.b16 %v3753
        %v3818 = vunpack.c.l.b16 %v3754
        %v3819 = vunpack.c.l.b16 %v3755
        %v3820 = vunpack.c.l.b16 %v3756
        %v3821 = vunpack.c.l.b16 %v3757
        %v3822 = vunpack.c.l.b16 %v3758
        %v3823 = vunpack.c.l.b16 %v3759
        %v3824 = vunpack.c.l.b16 %v3760
        %v3825 = vunpack.c.l.b16 %v3761
        %v3826 = vunpack.c.l.b16 %v3762
        %v3827 = vunpack.c.l.b16 %v3763
        %v3828 = vunpack.c.l.b16 %v3764
        %v3829 = vunpack.c.l.b16 %v3765
        %v3830 = vunpack.c.l.b16 %v3766
        %v3831 = vunpack.c.l.b16 %v3767
        %v3832 = vunpack.c.l.b16 %v3768
        %v3833 = vunpack.c.l.b16 %v3769
        %v3834 = vunpack.c.l.b16 %v3770
        %v3835 = vunpack.c.l.b16 %v3771
        %v3836 = vunpack.c.l.b16 %v3772
        %v3837 = vunpack.c.l.b16 %v3773
        %v3838 = vunpack.c.l.b16 %v3774
        %v3839 = vunpack.c.l.b16 %v3775
        %v3840 = vunpack.c.l.b16 %v3776
        %v3841 = vunpack.c.l.b16 %v3777
        %v3842 = vunpack.c.l.b16 %v3778
        %v3843 = vunpack.c.l.b16 %v3779
        %v3844 = vunpack.c.l.b16 %v3780
        %v3845 = vpack.c.b16 %v3814, %v3813
        %v3846 = vpack.c.b16 %v3816, %v3815
        %v3847 = vpack.c.b16 %v3818, %v3817
        %v3848 = vpack.c.b16 %v3820, %v3819
        %v3849 = vpack.c.b16 %v3822, %v3821
        %v3850 = vpack.c.b16 %v3824, %v3823
        %v3851 = vpack.c.b16 %v3826, %v3825
        %v3852 = vpack.c.b16 %v3828, %v3827
        %v3853 = vpack.c.b16 %v3830, %v3829
        %v3854 = vpack.c.b16 %v3832, %v3831
        %v3855 = vpack.c.b16 %v3834, %v3833
        %v3856 = vpack.c.b16 %v3836, %v3835
        %v3857 = vpack.c.b16 %v3838, %v3837
        %v3858 = vpack.c.b16 %v3840, %v3839
        %v3859 = vpack.c.b16 %v3842, %v3841
        %v3860 = vpack.c.b16 %v3844, %v3843
        %3877 = vmatpush.bf16.msra.mxu0 %v3852
        %3878 = vmatpush.bf16.msra.mxu0 %v3851
        %3879 = vmatpush.bf16.msra.mxu0 %v3850
        %3880 = vmatpush.bf16.msra.mxu0 %v3849
        %3881 = vmatpush.bf16.msra.mxu0 %v3848
        %3882 = vmatpush.bf16.msra.mxu0 %v3847
        %3883 = vmatpush.bf16.msra.mxu0 %v3846
        %3884 = vmatpush.bf16.msra.mxu0 %v3845
        %3885 = vmatmul.bf16.gmra.mxu0 %v3746
        %v3886 = vpop.f32.mrf.mxu0
        %v3887 = vadd.f32 0.0, %v3886
        %v3888 = vpop.f32.mrf.mxu0
        %3889 = vdwg.mxu0
        %3890 = vmatpush.bf16.msra.mxu0 %v3860
        %3891 = vmatpush.bf16.msra.mxu0 %v3859
        %3892 = vmatpush.bf16.msra.mxu0 %v3858
        %3893 = vmatpush.bf16.msra.mxu0 %v3857
        %3894 = vmatpush.bf16.msra.mxu0 %v3856
        %3895 = vmatpush.bf16.msra.mxu0 %v3855
        %3896 = vmatpush.bf16.msra.mxu0 %v3854
        %3897 = vmatpush.bf16.msra.mxu0 %v3853
        %3898 = vmatmul.bf16.gmra.mxu0 %v3747
        %v3899 = vpop.f32.mrf.mxu0
        %v3900 = vadd.f32 %v3887, %v3899
        %v3901 = vpop.f32.mrf.mxu0
        %3902 = vdwg.mxu0
        %v3935 = vunpack.c.l.b16 %v3683
        %v3936 = vunpack.c.l.b16 %v3684
        %v3937 = vunpack.c.l.b16 %v3685
        %v3938 = vunpack.c.l.b16 %v3686
        %v3939 = vunpack.c.l.b16 %v3687
        %v3940 = vunpack.c.l.b16 %v3688
        %v3941 = vunpack.c.l.b16 %v3689
        %v3942 = vunpack.c.l.b16 %v3690
        %v3943 = vunpack.c.l.b16 %v3691
        %v3944 = vunpack.c.l.b16 %v3692
        %v3945 = vunpack.c.l.b16 %v3693
        %v3946 = vunpack.c.l.b16 %v3694
        %v3947 = vunpack.c.l.b16 %v3695
        %v3948 = vunpack.c.l.b16 %v3696
        %v3949 = vunpack.c.l.b16 %v3697
        %v3950 = vunpack.c.l.b16 %v3698
        %v3951 = vunpack.c.l.b16 %v3699
        %v3952 = vunpack.c.l.b16 %v3700
        %v3953 = vunpack.c.l.b16 %v3701
        %v3954 = vunpack.c.l.b16 %v3702
        %v3955 = vunpack.c.l.b16 %v3703
        %v3956 = vunpack.c.l.b16 %v3704
        %v3957 = vunpack.c.l.b16 %v3705
        %v3958 = vunpack.c.l.b16 %v3706
        %v3959 = vunpack.c.l.b16 %v3707
        %v3960 = vunpack.c.l.b16 %v3708
        %v3961 = vunpack.c.l.b16 %v3709
        %v3962 = vunpack.c.l.b16 %v3710
        %v3963 = vunpack.c.l.b16 %v3711
        %v3964 = vunpack.c.l.b16 %v3712
        %v3965 = vunpack.c.l.b16 %v3713
        %v3966 = vunpack.c.l.b16 %v3714
        %v3967 = vpack.c.b16 %v3936, %v3935
        %v3968 = vpack.c.b16 %v3938, %v3937
        %v3969 = vpack.c.b16 %v3940, %v3939
        %v3970 = vpack.c.b16 %v3942, %v3941
        %v3971 = vpack.c.b16 %v3944, %v3943
        %v3972 = vpack.c.b16 %v3946, %v3945
        %v3973 = vpack.c.b16 %v3948, %v3947
        %v3974 = vpack.c.b16 %v3950, %v3949
        %v3975 = vpack.c.b16 %v3952, %v3951
        %v3976 = vpack.c.b16 %v3954, %v3953
        %v3977 = vpack.c.b16 %v3956, %v3955
        %v3978 = vpack.c.b16 %v3958, %v3957
        %v3979 = vpack.c.b16 %v3960, %v3959
        %v3980 = vpack.c.b16 %v3962, %v3961
        %v3981 = vpack.c.b16 %v3964, %v3963
        %v3982 = vpack.c.b16 %v3966, %v3965
        %3999 = vmatpush.bf16.msra.mxu0 %v3974
        %4000 = vmatpush.bf16.msra.mxu0 %v3973
        %4001 = vmatpush.bf16.msra.mxu0 %v3972
        %4002 = vmatpush.bf16.msra.mxu0 %v3971
        %4003 = vmatpush.bf16.msra.mxu0 %v3970
        %4004 = vmatpush.bf16.msra.mxu0 %v3969
        %4005 = vmatpush.bf16.msra.mxu0 %v3968
        %4006 = vmatpush.bf16.msra.mxu0 %v3967
        %4007 = vmatmul.bf16.gmra.mxu0 %v3681
        %v4008 = vpop.f32.mrf.mxu0
        %v4009 = vadd.f32 %v3900, %v4008
        %v4010 = vpop.f32.mrf.mxu0
        %4011 = vdwg.mxu0
        %4012 = vmatpush.bf16.msra.mxu0 %v3982
        %4013 = vmatpush.bf16.msra.mxu0 %v3981
        %4014 = vmatpush.bf16.msra.mxu0 %v3980
        %4015 = vmatpush.bf16.msra.mxu0 %v3979
        %4016 = vmatpush.bf16.msra.mxu0 %v3978
        %4017 = vmatpush.bf16.msra.mxu0 %v3977
        %4018 = vmatpush.bf16.msra.mxu0 %v3976
        %4019 = vmatpush.bf16.msra.mxu0 %v3975
        %4020 = vmatmul.bf16.gmra.mxu0 %v3682
        %v4021 = vpop.f32.mrf.mxu0
        %v4022 = vadd.f32 %v4009, %v4021
        %v4023 = vpop.f32.mrf.mxu0
        %4024 = vdwg.mxu0
        %v4025 = vld [vmem:[#allocation19] sm:$0x1]
        %v4026 = vadd.f32 %v4022, %v4025
        %v4027 = vlaneseq
        %v4028 = vand.u32 %v4027, 127
        %v4029 = vsub.f32 0.0, %v4026
        %v4030 = vmul.f32 %v4029, 1.442695
        %v4031 = vpow.pop %v4030
        %v4032 = vadd.f32 %v4031, 1.0
        %v4033 = vrcp.pop %v4032
        %v4034 = vmul.f32 %v4032, %v4033
        %v4035 = vsub.f32 1.0, %v4034
        %v4036 = vmul.f32 %v4033, %v4035
        %v4037 = vadd.f32 %v4033, %v4036
        %vm4038 = vweird.f32 %v4032
        %vm4039 = vweird.f32 %v4033
        %vm4040 = vmor %vm4038, %vm4039
        %v4041 = vsel %vm4040, %v4033, %v4037
        %v4042 = vand.u32 2147483647, %v4032
        %vm4043 = vcmp.eq.f32.partialorder %v4042, 8.507059e+37
        %v4044 = vand.u32 %v4032, 2147483648
        %v4045 = vor.u32 1.1754944e-38, %v4044
        %v4046 = vsel %vm4043, %v4045, %v4041
        %v4047 = vmul.f32 1.0, %v4046
        %vm4048 = vcmp.ge.s32.totalorder %v4028, 1
        %vm4049 = vcmp.lt.s32.totalorder %v4028, 11
        %vm4050 = vmand %vm4048, %vm4049
        %v4051 = vsel %vm4050, %v4026, -1e+30
        %v4052 = vsel %vm3648, %v4051, -inf
        %4053 = vmax.xlane.f32.xlu0 %v4052
        %v4054 = vpop.xlane.xlu0 %4053
        %v4055 = vsub.f32 %v4051, %v4054
        %v4056 = vmul.f32 %v4055, 1.442695
        %v4057 = vpow.pop %v4056
        %v4058 = vsel %vm4050, 1, 0
        %v4059 = vcvt.s32.f32 %v4058
        %v4060 = vmul.f32 %v4057, %v4059
        %v4061 = vsel %vm3648, %v4060, 0.0
        %4062 = vadd.xlane.f32.xlu0 %v4061
        %v4063 = vpop.xlane.xlu0 %4062
        %v4064 = vrcp.pop %v4063
        %v4065 = vmul.f32 %v4063, %v4064
        %v4066 = vsub.f32 1.0, %v4065
        %v4067 = vmul.f32 %v4064, %v4066
        %v4068 = vadd.f32 %v4064, %v4067
        %vm4069 = vweird.f32 %v4063
        %vm4070 = vweird.f32 %v4064
        %vm4071 = vmor %vm4069, %vm4070
        %v4072 = vsel %vm4071, %v4064, %v4068
        %v4073 = vand.u32 2147483647, %v4063
        %vm4074 = vcmp.eq.f32.partialorder %v4073, 8.507059e+37
        %v4075 = vand.u32 %v4063, 2147483648
        %v4076 = vor.u32 1.1754944e-38, %v4075
        %v4077 = vsel %vm4074, %v4076, %v4072
        %v4078 = vmul.f32 %v4060, %v4077
        %vm4079 = vcmp.eq.s32.totalorder %v4028, 0
        %v4080 = vsel %vm4079, %v4047, %v4078
        %4081 = vst [vmem:[%s719] sm:$0x1] %v4080
        %p4082 = scmp.lt.s32.totalorder %s36, 1
        %s4083 = scalar_select %p4082, %s36, 1
        %s4084 = scalar_lea.vmem %s16, %s4083
        // Predicated region
        $region133: #{discriminator_forward.1} parent=83 // pred_check
          %p4085 = pneg %p395
        $region134: #{discriminator_forward.1} parent=83 // pred_check_branch
          %4087 = sbr.rel (%p4085) target = $region136
        $region135: #{discriminator_forward.1} parent=83 // pred_region
          _
        $region136: #{discriminator_forward.1} parent=83 // pred_fallthru
          _
      $region84: #{discriminator_forward.1} parent=5 // pred_fallthru
        _
      %p4088 = scmp.le.s32.totalorder 2, %s31
      // Predicated region
      $region137: #{discriminator_forward.1} parent=5 // pred_check
        %p4089 = pneg %p4088
      $region138: #{discriminator_forward.1} parent=5 // pred_check_branch
        %4091 = sbr.rel (%p4089) target = $region140
      $region139: #{discriminator_forward.1} parent=5 // pred_region
        %s4092 = ssub.s32 %s31, 2
        // Predicated region
        $region141: #{discriminator_forward.1} parent=139 // pred_check
          %p4093 = pneg %p401
        $region142: #{discriminator_forward.1} parent=139 // pred_check_branch
          %4095 = sbr.rel (%p4093) target = $region144
        $region143: #{discriminator_forward.1} parent=139 // pred_region
          %p4096 = scmp.lt.s32.totalorder %s37, 1
          %s4097 = scalar_select %p4096, %s37, 1
          %s4098 = scalar_lea.vmem %s16, %s4097
        $region144: #{discriminator_forward.1} parent=139 // pred_fallthru
          _
      $region140: #{discriminator_forward.1} parent=5 // pred_fallthru
        _
    $region6: #{discriminator_forward.1} parent=1 // loop_footer
      %s35 = sadd.s32 1, %s31
    $region7: #{discriminator_forward.1} parent=1 // loop_footer_branch
      %30 = sbr.rel target = $region3
    $region8: #{discriminator_forward.1} parent=1 // loop_exit
      _
    %4099 = vsyncpa [#allocation3], 1
    %s4100 = scalar_lea.sflag [#allocation3], 1
    %4101 = vsyncpa %s4100, 1
    %4102 = vsyncpa [#allocation5], 1
    %4103 = vsyncpa [#allocation8], 1
    %4104 = vsyncpa [#allocation11], 1
    %4105 = vsyncpa [#allocation14], 1
    %4106 = vsyncpa [#allocation17], 1
    %4107 = vsyncpa [#allocation20], 1

</llo_original>
